<compile_context>
chip_gen: v7x
topology: tpu7x:2x2x1
jax: 0.10.0
libtpu: 0.0.40
codegen_flags: <defaults>
</compile_context>

<pallas_src>
import functools

import jax
import jax.numpy as jnp
from jax.experimental import pallas as pl
from jax.experimental.pallas import tpu as pltpu

N_EMBD = 64
BLOCK_SIZE = 64
N_HEAD = 4
HEAD_SIZE = N_EMBD // N_HEAD
HIDDEN = 4 * N_EMBD
LN_EPS = 1e-5          # torch.nn.LayerNorm default
NEG_BIG = -1e30        # finite "masked" additive bias


def _layernorm(x, w, b):
    # x: (rows, C); w, b: (1, C). Biased variance, like torch.nn.LayerNorm.
    mu = jnp.mean(x, axis=-1, keepdims=True)
    var = jnp.mean((x - mu) ** 2, axis=-1, keepdims=True)
    return (x - mu) * jax.lax.rsqrt(var + LN_EPS) * w + b


# ----------------------------------------------------------------------------
# Fused transformer-block kernel.
# x_ref / y_ref are (rows, C) with rows = (batch chunk) * T; LayerNorm / QKV /
# proj / MLP matmuls run on the flattened rows, attention runs per local batch
# element with all heads stacked along the sublane axis.
# ----------------------------------------------------------------------------
def block_kernel(x_ref, ln1_w, ln1_b, wqkv, wproj, bproj,
                 ln2_w, ln2_b, w1, b1, w2, b2, y_ref, *, bt, t, c):
    x = x_ref[...]                                        # (bt*t, c) f32

    # --------------- LayerNorm 1 + fused QKV projection ----------------
    xn = _layernorm(x, ln1_w[...], ln1_b[...])
    qkv = jnp.dot(xn.astype(jnp.bfloat16), wqkv[...],
                  preferred_element_type=jnp.float32)     # (rows, 3C) f32
    qkv_b = qkv.astype(jnp.bfloat16)                      # single full-slab cast

    # -------- per-invocation constant masks (built once, reused) --------
    # Block mask (N_HEAD*T, C): stacked row-block h keeps only head h's
    # HEAD_SIZE channels.  Built with compares only (no int division).
    col_id = jax.lax.broadcasted_iota(jnp.int32, (t, c), 1)
    head_masks = [
        jnp.where((col_id >= h * HEAD_SIZE) & (col_id < (h + 1) * HEAD_SIZE),
                  1.0, 0.0).astype(jnp.float32)
        for h in range(N_HEAD)
    ]
    block_mask_f = jnp.concatenate(head_masks, axis=0)    # (N_HEAD*T, C) f32
    block_mask_b = block_mask_f.astype(jnp.bfloat16)

    # Stacked causal additive bias (N_HEAD*T, T): 0 allowed / -1e30 masked.
    qi = jax.lax.broadcasted_iota(jnp.int32, (t, t), 0)
    kj = jax.lax.broadcasted_iota(jnp.int32, (t, t), 1)
    causal_1 = jnp.where(qi >= kj, 0.0, NEG_BIG).astype(jnp.float32)
    causal_bias = jnp.concatenate([causal_1] * N_HEAD, axis=0)

    # --------------- head-stacked causal self-attention -----------------
    att_rows = []
    for b in range(bt):                                   # small static unroll
        r0 = b * t
        q = qkv_b[r0:r0 + t, 0:c]                         # (T, C) bf16 (pre-scaled)
        k = qkv_b[r0:r0 + t, c:2 * c]                     # (T, C) bf16
        v = qkv_b[r0:r0 + t, 2 * c:3 * c]                 # (T, C) bf16

        # Block-structured Q: row-block h keeps only head h's channels, so a
        # single full-depth (C) contraction with K gives every head's scores.
        q_bd = jnp.concatenate([q] * N_HEAD, axis=0) * block_mask_b  # (4T, C)

        scores = jax.lax.dot_general(                     # (4T, T) = q_bd @ k.T
            q_bd, k, (((1,), (1,)), ((), ())),
            preferred_element_type=jnp.float32)
        scores = scores + causal_bias
        scores = scores - jnp.max(scores, axis=-1, keepdims=True)
        p = jnp.exp(scores)                               # one stacked softmax
        p = p * pl.reciprocal(jnp.sum(p, axis=-1, keepdims=True), approx=True)

        m = jnp.dot(p.astype(jnp.bfloat16), v,
                    preferred_element_type=jnp.float32)   # (4T, C) f32
        m = m * block_mask_f                              # keep head h's columns
        att = m[0:t, :]                                   # sum row blocks -> (T, C)
        for h in range(1, N_HEAD):
            att = att + m[h * t:(h + 1) * t, :]
        att_rows.append(att)
    att = att_rows[0] if bt == 1 else jnp.concatenate(att_rows, axis=0)

    sa = jnp.dot(att.astype(jnp.bfloat16), wproj[...],
                 preferred_element_type=jnp.float32) + bproj[...]
    x = x + sa                                            # residual 1

    # ------------------------------ MLP ---------------------------------
    xn2 = _layernorm(x, ln2_w[...], ln2_b[...])
    hdn = jnp.maximum(
        jnp.dot(xn2.astype(jnp.bfloat16), w1[...],
                preferred_element_type=jnp.float32) + b1[...], 0.0)
    ff = jnp.dot(hdn.astype(jnp.bfloat16), w2[...],
                 preferred_element_type=jnp.float32) + b2[...]
    y_ref[...] = x + ff                                   # residual 2


# ----------------------------------------------------------------------------
# Wrapper
# ----------------------------------------------------------------------------
_PARAM_ORDER = ("ln1_w", "ln1_b", "wqkv", "wproj", "bproj",
                "ln2_w", "ln2_b", "w1", "b1", "w2", "b2")


def _choose_batch_chunk(B, T, target_rows=128):
    # Largest divisor of B with chunk*T <= max(target_rows, T): keeps >=128
    # rows per grid step (per-step overhead ~0.35us) without over-unrolling
    # the in-kernel batch loop; remaining batch goes on the grid ("parallel").
    best = 1
    for cand in range(1, B + 1):
        if B % cand == 0 and cand * T <= max(target_rows, T):
            best = cand
    return best


def transformer_block(x, p, *, batch_chunk=None):
    B, T, C = x.shape
    if batch_chunk is None:
        batch_chunk = _choose_batch_chunk(B, T)
    assert B % batch_chunk == 0
    rows = batch_chunk * T

    def full_spec(a):
        return pl.BlockSpec(a.shape, lambda i, _nd=a.ndim: (0,) * _nd)

    in_specs = [pl.BlockSpec((rows, C), lambda i: (i, 0))]
    in_specs += [full_spec(p[name]) for name in _PARAM_ORDER]

    kern = functools.partial(block_kernel, bt=batch_chunk, t=T, c=C)
    xf = x.reshape(B * T, C)                  # flatten batch into rows (free)
    yf = pl.pallas_call(
        kern,
        out_shape=jax.ShapeDtypeStruct((B * T, C), jnp.float32),
        grid=(B // batch_chunk,),
        in_specs=in_specs,
        out_specs=pl.BlockSpec((rows, C), lambda i: (i, 0)),
        compiler_params=pltpu.CompilerParams(
            dimension_semantics=("parallel",)),
    )(xf, *[p[name] for name in _PARAM_ORDER])
    return yf.reshape(B, T, C)


# ----------------------------------------------------------------------------
# Parameters: raw f32 per-head weights (reference layout) + packed kernel form.
# Linear weights are stored (in_features, out_features): y = x @ W + b.
# ----------------------------------------------------------------------------
def init_raw_params(key):
    def w(k, shape, scale=0.02):
        return (scale * jax.random.normal(k, shape)).astype(jnp.float32)

    ks = jax.random.split(key, 8)
    return {
        "ln1_w": jnp.ones((1, N_EMBD), jnp.float32),
        "ln1_b": jnp.zeros((1, N_EMBD), jnp.float32),
        "wq": w(ks[0], (N_HEAD, N_EMBD, HEAD_SIZE)),
        "wk": w(ks[1], (N_HEAD, N_EMBD, HEAD_SIZE)),
        "wv": w(ks[2], (N_HEAD, N_EMBD, HEAD_SIZE)),
        "wproj": w(ks[3], (N_EMBD, N_EMBD)),
        "bproj": w(ks[4], (1, N_EMBD)),
        "ln2_w": jnp.ones((1, N_EMBD), jnp.float32),
        "ln2_b": jnp.zeros((1, N_EMBD), jnp.float32),
        "w1": w(ks[5], (N_EMBD, HIDDEN)),
        "b1": w(ks[6], (1, HIDDEN)),
        "w2": w(ks[7], (HIDDEN, N_EMBD)),
        "b2": jnp.zeros((1, N_EMBD), jnp.float32),
    }


def pack_params(raw):
    C = N_EMBD
    scale = C ** (-0.5)   # reference quirk: scales by n_embd (64), not head_size
    wq = jnp.transpose(raw["wq"], (1, 0, 2)).reshape(C, C) * scale  # fold scale
    wk = jnp.transpose(raw["wk"], (1, 0, 2)).reshape(C, C)
    wv = jnp.transpose(raw["wv"], (1, 0, 2)).reshape(C, C)
    wqkv = jnp.concatenate([wq, wk, wv], axis=-1)                   # (C, 3C)
    return {
        "ln1_w": raw["ln1_w"], "ln1_b": raw["ln1_b"],
        "wqkv": wqkv.astype(jnp.bfloat16),
        "wproj": raw["wproj"].astype(jnp.bfloat16),
        "bproj": raw["bproj"],
        "ln2_w": raw["ln2_w"], "ln2_b": raw["ln2_b"],
        "w1": raw["w1"].astype(jnp.bfloat16), "b1": raw["b1"],
        "w2": raw["w2"].astype(jnp.bfloat16), "b2": raw["b2"],
    }


# Pure-JAX f32 reference (mirrors the PyTorch module exactly).
def reference_block(x, raw):
    B, T, C = x.shape

    def ln(v, w, b):
        mu = v.mean(-1, keepdims=True)
        var = ((v - mu) ** 2).mean(-1, keepdims=True)
        return (v - mu) / jnp.sqrt(var + LN_EPS) * w[0] + b[0]

    xn = ln(x, raw["ln1_w"], raw["ln1_b"])
    mask = jnp.tril(jnp.ones((T, T), bool))
    heads = []
    for h in range(N_HEAD):
        q = xn @ raw["wq"][h]
        k = xn @ raw["wk"][h]
        v = xn @ raw["wv"][h]
        wei = (q @ jnp.swapaxes(k, -1, -2)) * (C ** (-0.5))
        wei = jnp.where(mask, wei, -jnp.inf)
        wei = jax.nn.softmax(wei, axis=-1)
        heads.append(wei @ v)
    att = jnp.concatenate(heads, axis=-1)
    x = x + (att @ raw["wproj"] + raw["bproj"][0])
    xn2 = ln(x, raw["ln2_w"], raw["ln2_b"])
    ff = jnp.maximum(xn2 @ raw["w1"] + raw["b1"][0], 0.0) @ raw["w2"] + raw["b2"][0]
    return x + ff


if __name__ == "__main__":
    root = jax.random.PRNGKey(0)
    k_params, k_x = jax.random.split(root)
    raw = init_raw_params(k_params)
    params = pack_params(raw)

    B, T, C = 2, BLOCK_SIZE, N_EMBD
    x = jax.random.normal(k_x, (B, T, C), dtype=jnp.float32)

    y = transformer_block(x, params)
    jax.block_until_ready(y)
    assert y.shape == (B, T, C), y.shape
    assert y.dtype == jnp.float32

    # Loose tolerance: bf16 MXU operands + approx reciprocal vs f32 reference.
    ref = reference_block(x, raw)
    max_err = float(jnp.max(jnp.abs(y - ref)))
    assert max_err < 5e-2, f"mismatch vs reference: max abs err = {max_err}"

    print("KERNEL_OK")
</pallas_src>

<mosaic_0001>
module attributes {stable_mosaic.version = 11 : i64} {
  func.func @block_kernel(%arg0: i32, %arg1: memref<128x64xf32, #tpu.memory_space<vmem>>, %arg2: memref<1x64xf32, #tpu.memory_space<vmem>>, %arg3: memref<1x64xf32, #tpu.memory_space<vmem>>, %arg4: memref<64x192xbf16, #tpu.memory_space<vmem>>, %arg5: memref<64x64xbf16, #tpu.memory_space<vmem>>, %arg6: memref<1x64xf32, #tpu.memory_space<vmem>>, %arg7: memref<1x64xf32, #tpu.memory_space<vmem>>, %arg8: memref<1x64xf32, #tpu.memory_space<vmem>>, %arg9: memref<64x256xbf16, #tpu.memory_space<vmem>>, %arg10: memref<1x256xf32, #tpu.memory_space<vmem>>, %arg11: memref<256x64xbf16, #tpu.memory_space<vmem>>, %arg12: memref<1x64xf32, #tpu.memory_space<vmem>>, %arg13: memref<128x64xf32, #tpu.memory_space<vmem>>) attributes {dimension_semantics = [#tpu.dimension_semantics<parallel>], iteration_bounds = array<i64: 1>, scalar_prefetch = 0 : i64, scratch_operands = 0 : i64, tpu.core_type = #tpu.core_type<tc>, window_params = [{transform_indices = @transform_0, window_bounds = array<i64: 128, 64>}, {pipeline_mode = #tpu.pipeline_mode<synchronous>, transform_indices = @transform_1, window_bounds = array<i64: 1, 64>}, {pipeline_mode = #tpu.pipeline_mode<synchronous>, transform_indices = @transform_2, window_bounds = array<i64: 1, 64>}, {pipeline_mode = #tpu.pipeline_mode<synchronous>, transform_indices = @transform_3, window_bounds = array<i64: 64, 192>}, {pipeline_mode = #tpu.pipeline_mode<synchronous>, transform_indices = @transform_4, window_bounds = array<i64: 64, 64>}, {pipeline_mode = #tpu.pipeline_mode<synchronous>, transform_indices = @transform_5, window_bounds = array<i64: 1, 64>}, {pipeline_mode = #tpu.pipeline_mode<synchronous>, transform_indices = @transform_6, window_bounds = array<i64: 1, 64>}, {pipeline_mode = #tpu.pipeline_mode<synchronous>, transform_indices = @transform_7, window_bounds = array<i64: 1, 64>}, {pipeline_mode = #tpu.pipeline_mode<synchronous>, transform_indices = @transform_8, window_bounds = array<i64: 64, 256>}, {pipeline_mode = #tpu.pipeline_mode<synchronous>, transform_indices = @transform_9, window_bounds = array<i64: 1, 256>}, {pipeline_mode = #tpu.pipeline_mode<synchronous>, transform_indices = @transform_10, window_bounds = array<i64: 256, 64>}, {pipeline_mode = #tpu.pipeline_mode<synchronous>, transform_indices = @transform_11, window_bounds = array<i64: 1, 64>}, {transform_indices = @transform_12, window_bounds = array<i64: 128, 64>}]} {
    %c0 = arith.constant 0 : index
    %c0_0 = arith.constant 0 : index
    %0 = vector.load %arg1[%c0, %c0_0] : memref<128x64xf32, #tpu.memory_space<vmem>>, vector<128x64xf32>
    %c0_1 = arith.constant 0 : index
    %c0_2 = arith.constant 0 : index
    %1 = vector.load %arg2[%c0_1, %c0_2] : memref<1x64xf32, #tpu.memory_space<vmem>>, vector<1x64xf32>
    %c0_3 = arith.constant 0 : index
    %c0_4 = arith.constant 0 : index
    %2 = vector.load %arg3[%c0_3, %c0_4] : memref<1x64xf32, #tpu.memory_space<vmem>>, vector<1x64xf32>
    %cst = arith.constant dense<0.000000e+00> : vector<128xf32>
    %3 = vector.multi_reduction <add>, %0, %cst [1] : vector<128x64xf32> to vector<128xf32>
    %4 = vector.shape_cast %3 : vector<128xf32> to vector<128x1xf32>
    %cst_5 = arith.constant 6.400000e+01 : f32
    %5 = vector.broadcast %cst_5 : f32 to vector<128x1xf32>
    %6 = arith.divf %4, %5 : vector<128x1xf32>
    %7 = vector.broadcast %6 : vector<128x1xf32> to vector<128x64xf32>
    %8 = arith.subf %0, %7 : vector<128x64xf32>
    %9 = arith.mulf %8, %8 : vector<128x64xf32>
    %cst_6 = arith.constant dense<0.000000e+00> : vector<128xf32>
    %10 = vector.multi_reduction <add>, %9, %cst_6 [1] : vector<128x64xf32> to vector<128xf32>
    %11 = vector.shape_cast %10 : vector<128xf32> to vector<128x1xf32>
    %cst_7 = arith.constant 6.400000e+01 : f32
    %12 = vector.broadcast %cst_7 : f32 to vector<128x1xf32>
    %13 = arith.divf %11, %12 : vector<128x1xf32>
    %14 = vector.broadcast %6 : vector<128x1xf32> to vector<128x64xf32>
    %15 = arith.subf %0, %14 : vector<128x64xf32>
    %cst_8 = arith.constant 9.99999974E-6 : f32
    %16 = vector.broadcast %cst_8 : f32 to vector<128x1xf32>
    %17 = arith.addf %13, %16 : vector<128x1xf32>
    %18 = math.rsqrt %17 : vector<128x1xf32>
    %19 = vector.broadcast %18 : vector<128x1xf32> to vector<128x64xf32>
    %20 = arith.mulf %15, %19 : vector<128x64xf32>
    %21 = vector.broadcast %1 : vector<1x64xf32> to vector<128x64xf32>
    %22 = arith.mulf %20, %21 : vector<128x64xf32>
    %23 = vector.broadcast %2 : vector<1x64xf32> to vector<128x64xf32>
    %24 = arith.addf %22, %23 : vector<128x64xf32>
    %25 = arith.truncf %24 : vector<128x64xf32> to vector<128x64xbf16>
    %c0_9 = arith.constant 0 : index
    %c0_10 = arith.constant 0 : index
    %26 = vector.load %arg4[%c0_9, %c0_10] : memref<64x192xbf16, #tpu.memory_space<vmem>>, vector<64x192xbf16>
    %cst_11 = arith.constant dense<0.000000e+00> : vector<128x192xf32>
    %27 = tpu.matmul %25, %26, %cst_11 {dimension_numbers = #tpu.dot_dimension_numbers<[1], [0], [0], [1], [0, 0, 1, 1], [], []>} : vector<128x64xbf16>, vector<64x192xbf16>, vector<128x192xf32> -> vector<128x192xf32>
    %28 = arith.truncf %27 : vector<128x192xf32> to vector<128x192xbf16>
    %29 = tpu.iota {dimensions = array<i32: 1>} : vector<64x64xi32>
    %c0_i32 = arith.constant 0 : i32
    %30 = vector.broadcast %c0_i32 : i32 to vector<64x64xi32>
    %31 = arith.cmpi sge, %29, %30 : vector<64x64xi32>
    %c16_i32 = arith.constant 16 : i32
    %32 = vector.broadcast %c16_i32 : i32 to vector<64x64xi32>
    %33 = arith.cmpi slt, %29, %32 : vector<64x64xi32>
    %34 = arith.andi %31, %33 : vector<64x64xi1>
    %cst_12 = arith.constant 1.000000e+00 : f32
    %cst_13 = arith.constant 0.000000e+00 : f32
    %35 = vector.broadcast %cst_12 : f32 to vector<64x64xf32>
    %36 = vector.broadcast %cst_13 : f32 to vector<64x64xf32>
    %37 = arith.select %34, %35, %36 : vector<64x64xi1>, vector<64x64xf32>
    %c16_i32_14 = arith.constant 16 : i32
    %38 = vector.broadcast %c16_i32_14 : i32 to vector<64x64xi32>
    %39 = arith.cmpi sge, %29, %38 : vector<64x64xi32>
    %c32_i32 = arith.constant 32 : i32
    %40 = vector.broadcast %c32_i32 : i32 to vector<64x64xi32>
    %41 = arith.cmpi slt, %29, %40 : vector<64x64xi32>
    %42 = arith.andi %39, %41 : vector<64x64xi1>
    %cst_15 = arith.constant 1.000000e+00 : f32
    %cst_16 = arith.constant 0.000000e+00 : f32
    %43 = vector.broadcast %cst_15 : f32 to vector<64x64xf32>
    %44 = vector.broadcast %cst_16 : f32 to vector<64x64xf32>
    %45 = arith.select %42, %43, %44 : vector<64x64xi1>, vector<64x64xf32>
    %c32_i32_17 = arith.constant 32 : i32
    %46 = vector.broadcast %c32_i32_17 : i32 to vector<64x64xi32>
    %47 = arith.cmpi sge, %29, %46 : vector<64x64xi32>
    %c48_i32 = arith.constant 48 : i32
    %48 = vector.broadcast %c48_i32 : i32 to vector<64x64xi32>
    %49 = arith.cmpi slt, %29, %48 : vector<64x64xi32>
    %50 = arith.andi %47, %49 : vector<64x64xi1>
    %cst_18 = arith.constant 1.000000e+00 : f32
    %cst_19 = arith.constant 0.000000e+00 : f32
    %51 = vector.broadcast %cst_18 : f32 to vector<64x64xf32>
    %52 = vector.broadcast %cst_19 : f32 to vector<64x64xf32>
    %53 = arith.select %50, %51, %52 : vector<64x64xi1>, vector<64x64xf32>
    %c48_i32_20 = arith.constant 48 : i32
    %54 = vector.broadcast %c48_i32_20 : i32 to vector<64x64xi32>
    %55 = arith.cmpi sge, %29, %54 : vector<64x64xi32>
    %c64_i32 = arith.constant 64 : i32
    %56 = vector.broadcast %c64_i32 : i32 to vector<64x64xi32>
    %57 = arith.cmpi slt, %29, %56 : vector<64x64xi32>
    %58 = arith.andi %55, %57 : vector<64x64xi1>
    %cst_21 = arith.constant 1.000000e+00 : f32
    %cst_22 = arith.constant 0.000000e+00 : f32
    %59 = vector.broadcast %cst_21 : f32 to vector<64x64xf32>
    %60 = vector.broadcast %cst_22 : f32 to vector<64x64xf32>
    %61 = arith.select %58, %59, %60 : vector<64x64xi1>, vector<64x64xf32>
    %62 = tpu.concatenate %37, %45, %53, %61 in 0 : vector<64x64xf32>, vector<64x64xf32>, vector<64x64xf32>, vector<64x64xf32> -> vector<256x64xf32>
    %63 = arith.truncf %62 : vector<256x64xf32> to vector<256x64xbf16>
    %64 = tpu.iota {dimensions = array<i32: 0>} : vector<64x64xi32>
    %65 = tpu.iota {dimensions = array<i32: 1>} : vector<64x64xi32>
    %66 = arith.cmpi sge, %64, %65 : vector<64x64xi32>
    %cst_23 = arith.constant 0.000000e+00 : f32
    %cst_24 = arith.constant -1.000000e+30 : f32
    %67 = vector.broadcast %cst_23 : f32 to vector<64x64xf32>
    %68 = vector.broadcast %cst_24 : f32 to vector<64x64xf32>
    %69 = arith.select %66, %67, %68 : vector<64x64xi1>, vector<64x64xf32>
    %70 = tpu.concatenate %69, %69, %69, %69 in 0 : vector<64x64xf32>, vector<64x64xf32>, vector<64x64xf32>, vector<64x64xf32> -> vector<256x64xf32>
    %71 = vector.extract_strided_slice %28 {offsets = [0, 0], sizes = [64, 64], strides = [1, 1]} : vector<128x192xbf16> to vector<64x64xbf16>
    %72 = vector.extract_strided_slice %28 {offsets = [0, 64], sizes = [64, 64], strides = [1, 1]} : vector<128x192xbf16> to vector<64x64xbf16>
    %73 = vector.extract_strided_slice %28 {offsets = [0, 128], sizes = [64, 64], strides = [1, 1]} : vector<128x192xbf16> to vector<64x64xbf16>
    %74 = tpu.concatenate %71, %71, %71, %71 in 0 : vector<64x64xbf16>, vector<64x64xbf16>, vector<64x64xbf16>, vector<64x64xbf16> -> vector<256x64xbf16>
    %75 = arith.mulf %74, %63 : vector<256x64xbf16>
    %cst_25 = arith.constant dense<0.000000e+00> : vector<256x64xf32>
    %76 = tpu.matmul %75, %72, %cst_25 {dimension_numbers = #tpu.dot_dimension_numbers<[1], [1], [0], [0], [0, 0, 1, 0], [], []>} : vector<256x64xbf16>, vector<64x64xbf16>, vector<256x64xf32> -> vector<256x64xf32>
    %77 = arith.addf %76, %70 : vector<256x64xf32>
    %cst_26 = arith.constant dense<0xFF800000> : vector<256xf32>
    %78 = vector.multi_reduction <maximumf>, %77, %cst_26 [1] : vector<256x64xf32> to vector<256xf32>
    %79 = vector.shape_cast %78 : vector<256xf32> to vector<256x1xf32>
    %80 = vector.broadcast %79 : vector<256x1xf32> to vector<256x64xf32>
    %81 = arith.subf %77, %80 : vector<256x64xf32>
    %82 = math.exp %81 : vector<256x64xf32>
    %cst_27 = arith.constant dense<0.000000e+00> : vector<256xf32>
    %83 = vector.multi_reduction <add>, %82, %cst_27 [1] : vector<256x64xf32> to vector<256xf32>
    %84 = vector.shape_cast %83 : vector<256xf32> to vector<256x1xf32>
    %85 = tpu.reciprocal %84 {approx = true} : vector<256x1xf32> -> vector<256x1xf32>
    %86 = vector.broadcast %85 : vector<256x1xf32> to vector<256x64xf32>
    %87 = arith.mulf %82, %86 : vector<256x64xf32>
    %88 = arith.truncf %87 : vector<256x64xf32> to vector<256x64xbf16>
    %cst_28 = arith.constant dense<0.000000e+00> : vector<256x64xf32>
    %89 = tpu.matmul %88, %73, %cst_28 {dimension_numbers = #tpu.dot_dimension_numbers<[1], [0], [0], [1], [0, 0, 1, 1], [], []>} : vector<256x64xbf16>, vector<64x64xbf16>, vector<256x64xf32> -> vector<256x64xf32>
    %90 = arith.mulf %89, %62 : vector<256x64xf32>
    %91 = vector.extract_strided_slice %90 {offsets = [0, 0], sizes = [64, 64], strides = [1, 1]} : vector<256x64xf32> to vector<64x64xf32>
    %92 = vector.extract_strided_slice %90 {offsets = [64, 0], sizes = [64, 64], strides = [1, 1]} : vector<256x64xf32> to vector<64x64xf32>
    %93 = arith.addf %91, %92 : vector<64x64xf32>
    %94 = vector.extract_strided_slice %90 {offsets = [128, 0], sizes = [64, 64], strides = [1, 1]} : vector<256x64xf32> to vector<64x64xf32>
    %95 = arith.addf %93, %94 : vector<64x64xf32>
    %96 = vector.extract_strided_slice %90 {offsets = [192, 0], sizes = [64, 64], strides = [1, 1]} : vector<256x64xf32> to vector<64x64xf32>
    %97 = arith.addf %95, %96 : vector<64x64xf32>
    %98 = vector.extract_strided_slice %28 {offsets = [64, 0], sizes = [64, 64], strides = [1, 1]} : vector<128x192xbf16> to vector<64x64xbf16>
    %99 = vector.extract_strided_slice %28 {offsets = [64, 64], sizes = [64, 64], strides = [1, 1]} : vector<128x192xbf16> to vector<64x64xbf16>
    %100 = vector.extract_strided_slice %28 {offsets = [64, 128], sizes = [64, 64], strides = [1, 1]} : vector<128x192xbf16> to vector<64x64xbf16>
    %101 = tpu.concatenate %98, %98, %98, %98 in 0 : vector<64x64xbf16>, vector<64x64xbf16>, vector<64x64xbf16>, vector<64x64xbf16> -> vector<256x64xbf16>
    %102 = arith.mulf %101, %63 : vector<256x64xbf16>
    %cst_29 = arith.constant dense<0.000000e+00> : vector<256x64xf32>
    %103 = tpu.matmul %102, %99, %cst_29 {dimension_numbers = #tpu.dot_dimension_numbers<[1], [1], [0], [0], [0, 0, 1, 0], [], []>} : vector<256x64xbf16>, vector<64x64xbf16>, vector<256x64xf32> -> vector<256x64xf32>
    %104 = arith.addf %103, %70 : vector<256x64xf32>
    %cst_30 = arith.constant dense<0xFF800000> : vector<256xf32>
    %105 = vector.multi_reduction <maximumf>, %104, %cst_30 [1] : vector<256x64xf32> to vector<256xf32>
    %106 = vector.shape_cast %105 : vector<256xf32> to vector<256x1xf32>
    %107 = vector.broadcast %106 : vector<256x1xf32> to vector<256x64xf32>
    %108 = arith.subf %104, %107 : vector<256x64xf32>
    %109 = math.exp %108 : vector<256x64xf32>
    %cst_31 = arith.constant dense<0.000000e+00> : vector<256xf32>
    %110 = vector.multi_reduction <add>, %109, %cst_31 [1] : vector<256x64xf32> to vector<256xf32>
    %111 = vector.shape_cast %110 : vector<256xf32> to vector<256x1xf32>
    %112 = tpu.reciprocal %111 {approx = true} : vector<256x1xf32> -> vector<256x1xf32>
    %113 = vector.broadcast %112 : vector<256x1xf32> to vector<256x64xf32>
    %114 = arith.mulf %109, %113 : vector<256x64xf32>
    %115 = arith.truncf %114 : vector<256x64xf32> to vector<256x64xbf16>
    %cst_32 = arith.constant dense<0.000000e+00> : vector<256x64xf32>
    %116 = tpu.matmul %115, %100, %cst_32 {dimension_numbers = #tpu.dot_dimension_numbers<[1], [0], [0], [1], [0, 0, 1, 1], [], []>} : vector<256x64xbf16>, vector<64x64xbf16>, vector<256x64xf32> -> vector<256x64xf32>
    %117 = arith.mulf %116, %62 : vector<256x64xf32>
    %118 = vector.extract_strided_slice %117 {offsets = [0, 0], sizes = [64, 64], strides = [1, 1]} : vector<256x64xf32> to vector<64x64xf32>
    %119 = vector.extract_strided_slice %117 {offsets = [64, 0], sizes = [64, 64], strides = [1, 1]} : vector<256x64xf32> to vector<64x64xf32>
    %120 = arith.addf %118, %119 : vector<64x64xf32>
    %121 = vector.extract_strided_slice %117 {offsets = [128, 0], sizes = [64, 64], strides = [1, 1]} : vector<256x64xf32> to vector<64x64xf32>
    %122 = arith.addf %120, %121 : vector<64x64xf32>
    %123 = vector.extract_strided_slice %117 {offsets = [192, 0], sizes = [64, 64], strides = [1, 1]} : vector<256x64xf32> to vector<64x64xf32>
    %124 = arith.addf %122, %123 : vector<64x64xf32>
    %125 = tpu.concatenate %97, %124 in 0 : vector<64x64xf32>, vector<64x64xf32> -> vector<128x64xf32>
    %126 = arith.truncf %125 : vector<128x64xf32> to vector<128x64xbf16>
    %c0_33 = arith.constant 0 : index
    %c0_34 = arith.constant 0 : index
    %127 = vector.load %arg5[%c0_33, %c0_34] : memref<64x64xbf16, #tpu.memory_space<vmem>>, vector<64x64xbf16>
    %cst_35 = arith.constant dense<0.000000e+00> : vector<128x64xf32>
    %128 = tpu.matmul %126, %127, %cst_35 {dimension_numbers = #tpu.dot_dimension_numbers<[1], [0], [0], [1], [0, 0, 1, 1], [], []>} : vector<128x64xbf16>, vector<64x64xbf16>, vector<128x64xf32> -> vector<128x64xf32>
    %c0_36 = arith.constant 0 : index
    %c0_37 = arith.constant 0 : index
    %129 = vector.load %arg6[%c0_36, %c0_37] : memref<1x64xf32, #tpu.memory_space<vmem>>, vector<1x64xf32>
    %130 = vector.broadcast %129 : vector<1x64xf32> to vector<128x64xf32>
    %131 = arith.addf %128, %130 : vector<128x64xf32>
    %132 = arith.addf %0, %131 : vector<128x64xf32>
    %c0_38 = arith.constant 0 : index
    %c0_39 = arith.constant 0 : index
    %133 = vector.load %arg7[%c0_38, %c0_39] : memref<1x64xf32, #tpu.memory_space<vmem>>, vector<1x64xf32>
    %c0_40 = arith.constant 0 : index
    %c0_41 = arith.constant 0 : index
    %134 = vector.load %arg8[%c0_40, %c0_41] : memref<1x64xf32, #tpu.memory_space<vmem>>, vector<1x64xf32>
    %cst_42 = arith.constant dense<0.000000e+00> : vector<128xf32>
    %135 = vector.multi_reduction <add>, %132, %cst_42 [1] : vector<128x64xf32> to vector<128xf32>
    %136 = vector.shape_cast %135 : vector<128xf32> to vector<128x1xf32>
    %cst_43 = arith.constant 6.400000e+01 : f32
    %137 = vector.broadcast %cst_43 : f32 to vector<128x1xf32>
    %138 = arith.divf %136, %137 : vector<128x1xf32>
    %139 = vector.broadcast %138 : vector<128x1xf32> to vector<128x64xf32>
    %140 = arith.subf %132, %139 : vector<128x64xf32>
    %141 = arith.mulf %140, %140 : vector<128x64xf32>
    %cst_44 = arith.constant dense<0.000000e+00> : vector<128xf32>
    %142 = vector.multi_reduction <add>, %141, %cst_44 [1] : vector<128x64xf32> to vector<128xf32>
    %143 = vector.shape_cast %142 : vector<128xf32> to vector<128x1xf32>
    %cst_45 = arith.constant 6.400000e+01 : f32
    %144 = vector.broadcast %cst_45 : f32 to vector<128x1xf32>
    %145 = arith.divf %143, %144 : vector<128x1xf32>
    %146 = vector.broadcast %138 : vector<128x1xf32> to vector<128x64xf32>
    %147 = arith.subf %132, %146 : vector<128x64xf32>
    %cst_46 = arith.constant 9.99999974E-6 : f32
    %148 = vector.broadcast %cst_46 : f32 to vector<128x1xf32>
    %149 = arith.addf %145, %148 : vector<128x1xf32>
    %150 = math.rsqrt %149 : vector<128x1xf32>
    %151 = vector.broadcast %150 : vector<128x1xf32> to vector<128x64xf32>
    %152 = arith.mulf %147, %151 : vector<128x64xf32>
    %153 = vector.broadcast %133 : vector<1x64xf32> to vector<128x64xf32>
    %154 = arith.mulf %152, %153 : vector<128x64xf32>
    %155 = vector.broadcast %134 : vector<1x64xf32> to vector<128x64xf32>
    %156 = arith.addf %154, %155 : vector<128x64xf32>
    %157 = arith.truncf %156 : vector<128x64xf32> to vector<128x64xbf16>
    %c0_47 = arith.constant 0 : index
    %c0_48 = arith.constant 0 : index
    %158 = vector.load %arg9[%c0_47, %c0_48] : memref<64x256xbf16, #tpu.memory_space<vmem>>, vector<64x256xbf16>
    %cst_49 = arith.constant dense<0.000000e+00> : vector<128x256xf32>
    %159 = tpu.matmul %157, %158, %cst_49 {dimension_numbers = #tpu.dot_dimension_numbers<[1], [0], [0], [1], [0, 0, 1, 1], [], []>} : vector<128x64xbf16>, vector<64x256xbf16>, vector<128x256xf32> -> vector<128x256xf32>
    %c0_50 = arith.constant 0 : index
    %c0_51 = arith.constant 0 : index
    %160 = vector.load %arg10[%c0_50, %c0_51] : memref<1x256xf32, #tpu.memory_space<vmem>>, vector<1x256xf32>
    %161 = vector.broadcast %160 : vector<1x256xf32> to vector<128x256xf32>
    %162 = arith.addf %159, %161 : vector<128x256xf32>
    %cst_52 = arith.constant 0.000000e+00 : f32
    %163 = vector.broadcast %cst_52 : f32 to vector<128x256xf32>
    %164 = arith.maximumf %162, %163 : vector<128x256xf32>
    %165 = arith.truncf %164 : vector<128x256xf32> to vector<128x256xbf16>
    %c0_53 = arith.constant 0 : index
    %c0_54 = arith.constant 0 : index
    %166 = vector.load %arg11[%c0_53, %c0_54] : memref<256x64xbf16, #tpu.memory_space<vmem>>, vector<256x64xbf16>
    %cst_55 = arith.constant dense<0.000000e+00> : vector<128x64xf32>
    %167 = tpu.matmul %165, %166, %cst_55 {dimension_numbers = #tpu.dot_dimension_numbers<[1], [0], [0], [1], [0, 0, 1, 1], [], []>} : vector<128x256xbf16>, vector<256x64xbf16>, vector<128x64xf32> -> vector<128x64xf32>
    %c0_56 = arith.constant 0 : index
    %c0_57 = arith.constant 0 : index
    %168 = vector.load %arg12[%c0_56, %c0_57] : memref<1x64xf32, #tpu.memory_space<vmem>>, vector<1x64xf32>
    %169 = vector.broadcast %168 : vector<1x64xf32> to vector<128x64xf32>
    %170 = arith.addf %167, %169 : vector<128x64xf32>
    %171 = arith.addf %132, %170 : vector<128x64xf32>
    %c0_58 = arith.constant 0 : index
    %c0_59 = arith.constant 0 : index
    %172 = vector.load %arg13[%c0_58, %c0_59] : memref<128x64xf32, #tpu.memory_space<vmem>>, vector<128x64xf32>
    tpu.vector_store %arg13[%c0_58, %c0_59], %171 {strides = array<i32>} : memref<128x64xf32, #tpu.memory_space<vmem>>, vector<128x64xf32>,
    return
  }
  func.func @transform_0(%arg0: i32) -> (i32, i32) {
    %c0_i32 = arith.constant 0 : i32
    %c0_i32_0 = arith.constant 0 : i32
    return %arg0, %c0_i32 : i32, i32
  }
  func.func @transform_1(%arg0: i32) -> (i32, i32) {
    %c0_i32 = arith.constant 0 : i32
    %c0_i32_0 = arith.constant 0 : i32
    %c0_i32_1 = arith.constant 0 : i32
    return %c0_i32, %c0_i32_0 : i32, i32
  }
  func.func @transform_2(%arg0: i32) -> (i32, i32) {
    %c0_i32 = arith.constant 0 : i32
    %c0_i32_0 = arith.constant 0 : i32
    %c0_i32_1 = arith.constant 0 : i32
    return %c0_i32, %c0_i32_0 : i32, i32
  }
  func.func @transform_3(%arg0: i32) -> (i32, i32) {
    %c0_i32 = arith.constant 0 : i32
    %c0_i32_0 = arith.constant 0 : i32
    %c0_i32_1 = arith.constant 0 : i32
    return %c0_i32, %c0_i32_0 : i32, i32
  }
  func.func @transform_4(%arg0: i32) -> (i32, i32) {
    %c0_i32 = arith.constant 0 : i32
    %c0_i32_0 = arith.constant 0 : i32
    %c0_i32_1 = arith.constant 0 : i32
    return %c0_i32, %c0_i32_0 : i32, i32
  }
  func.func @transform_5(%arg0: i32) -> (i32, i32) {
    %c0_i32 = arith.constant 0 : i32
    %c0_i32_0 = arith.constant 0 : i32
    %c0_i32_1 = arith.constant 0 : i32
    return %c0_i32, %c0_i32_0 : i32, i32
  }
  func.func @transform_6(%arg0: i32) -> (i32, i32) {
    %c0_i32 = arith.constant 0 : i32
    %c0_i32_0 = arith.constant 0 : i32
    %c0_i32_1 = arith.constant 0 : i32
    return %c0_i32, %c0_i32_0 : i32, i32
  }
  func.func @transform_7(%arg0: i32) -> (i32, i32) {
    %c0_i32 = arith.constant 0 : i32
    %c0_i32_0 = arith.constant 0 : i32
    %c0_i32_1 = arith.constant 0 : i32
    return %c0_i32, %c0_i32_0 : i32, i32
  }
  func.func @transform_8(%arg0: i32) -> (i32, i32) {
    %c0_i32 = arith.constant 0 : i32
    %c0_i32_0 = arith.constant 0 : i32
    %c0_i32_1 = arith.constant 0 : i32
    return %c0_i32, %c0_i32_0 : i32, i32
  }
  func.func @transform_9(%arg0: i32) -> (i32, i32) {
    %c0_i32 = arith.constant 0 : i32
    %c0_i32_0 = arith.constant 0 : i32
    %c0_i32_1 = arith.constant 0 : i32
    return %c0_i32, %c0_i32_0 : i32, i32
  }
  func.func @transform_10(%arg0: i32) -> (i32, i32) {
    %c0_i32 = arith.constant 0 : i32
    %c0_i32_0 = arith.constant 0 : i32
    %c0_i32_1 = arith.constant 0 : i32
    return %c0_i32, %c0_i32_0 : i32, i32
  }
  func.func @transform_11(%arg0: i32) -> (i32, i32) {
    %c0_i32 = arith.constant 0 : i32
    %c0_i32_0 = arith.constant 0 : i32
    %c0_i32_1 = arith.constant 0 : i32
    return %c0_i32, %c0_i32_0 : i32, i32
  }
  func.func @transform_12(%arg0: i32) -> (i32, i32) {
    %c0_i32 = arith.constant 0 : i32
    %c0_i32_0 = arith.constant 0 : i32
    return %arg0, %c0_i32 : i32, i32
  }
}

</mosaic_0001>

<llo_original>
// kernel: tpu_custom_call.1
$region0: #{tpu_custom_call.1}
  #allocation0 [shape = 'u32[]', space=smem, size = 0x4, offset = 0x4, fixed_abs, tag = 'smem constant byte address 0x4 - core index']
  #allocation1 [shape = 'u32[144,128]{1,0:T(1,128)}', space=vmem, size = 0x12000, scoped, tag = 'internal scratch']
  %s0 = inlined_call_operand.vmem [shape: f32[128,64], index: 0, kind: input, shape index: {}]
  %s1 = inlined_call_operand.vmem [shape: f32[1,64], index: 1, kind: input, shape index: {}]
  %s2 = inlined_call_operand.vmem [shape: f32[1,64], index: 2, kind: input, shape index: {}]
  %s3 = inlined_call_operand.vmem [shape: bf16[64,192], index: 3, kind: input, shape index: {}]
  %s4 = inlined_call_operand.vmem [shape: bf16[64,64], index: 4, kind: input, shape index: {}]
  %s5 = inlined_call_operand.vmem [shape: f32[1,64], index: 5, kind: input, shape index: {}]
  %s6 = inlined_call_operand.vmem [shape: f32[1,64], index: 6, kind: input, shape index: {}]
  %s7 = inlined_call_operand.vmem [shape: f32[1,64], index: 7, kind: input, shape index: {}]
  %s8 = inlined_call_operand.vmem [shape: bf16[64,256], index: 8, kind: input, shape index: {}]
  %s9 = inlined_call_operand.vmem [shape: f32[1,256], index: 9, kind: input, shape index: {}]
  %s10 = inlined_call_operand.vmem [shape: bf16[256,64], index: 10, kind: input, shape index: {}]
  %s11 = inlined_call_operand.vmem [shape: f32[1,64], index: 11, kind: input, shape index: {}]
  %s12 = inlined_call_operand.vmem [shape: f32[128,64], index: 12, kind: output, shape index: {}]
  %s13 = sld [smem:[#allocation0]]
  $region58: #{tpu_custom_call.1} parent=0
    _
  %s15 = ssub.s32 1, %s13
  %s16 = scalar_select 0, %s15, %s13
  // Predicated region
  $region2: #{tpu_custom_call.1} parent=0 // pred_check
    _
  $region3: #{tpu_custom_call.1} parent=0 // pred_check_branch
    %18 = sbr.rel (0) target = $region5
  $region4: #{tpu_custom_call.1} parent=0 // pred_region
    _
  $region5: #{tpu_custom_call.1} parent=0 // pred_fallthru
    _
  // Predicated region
  $region6: #{tpu_custom_call.1} parent=0 // pred_check
    _
  $region7: #{tpu_custom_call.1} parent=0 // pred_check_branch
    %20 = sbr.rel (0) target = $region9
  $region8: #{tpu_custom_call.1} parent=0 // pred_region
    _
  $region9: #{tpu_custom_call.1} parent=0 // pred_fallthru
    _
  // Predicated region
  $region10: #{tpu_custom_call.1} parent=0 // pred_check
    _
  $region11: #{tpu_custom_call.1} parent=0 // pred_check_branch
    %22 = sbr.rel (0) target = $region13
  $region12: #{tpu_custom_call.1} parent=0 // pred_region
    _
  $region13: #{tpu_custom_call.1} parent=0 // pred_fallthru
    _
  // Predicated region
  $region14: #{tpu_custom_call.1} parent=0 // pred_check
    _
  $region15: #{tpu_custom_call.1} parent=0 // pred_check_branch
    %24 = sbr.rel (0) target = $region17
  $region16: #{tpu_custom_call.1} parent=0 // pred_region
    _
  $region17: #{tpu_custom_call.1} parent=0 // pred_fallthru
    _
  // Predicated region
  $region18: #{tpu_custom_call.1} parent=0 // pred_check
    _
  $region19: #{tpu_custom_call.1} parent=0 // pred_check_branch
    %26 = sbr.rel (0) target = $region21
  $region20: #{tpu_custom_call.1} parent=0 // pred_region
    _
  $region21: #{tpu_custom_call.1} parent=0 // pred_fallthru
    _
  // Predicated region
  $region22: #{tpu_custom_call.1} parent=0 // pred_check
    _
  $region23: #{tpu_custom_call.1} parent=0 // pred_check_branch
    %28 = sbr.rel (0) target = $region25
  $region24: #{tpu_custom_call.1} parent=0 // pred_region
    _
  $region25: #{tpu_custom_call.1} parent=0 // pred_fallthru
    _
  // Predicated region
  $region26: #{tpu_custom_call.1} parent=0 // pred_check
    _
  $region27: #{tpu_custom_call.1} parent=0 // pred_check_branch
    %30 = sbr.rel (0) target = $region29
  $region28: #{tpu_custom_call.1} parent=0 // pred_region
    _
  $region29: #{tpu_custom_call.1} parent=0 // pred_fallthru
    _
  // Predicated region
  $region30: #{tpu_custom_call.1} parent=0 // pred_check
    _
  $region31: #{tpu_custom_call.1} parent=0 // pred_check_branch
    %32 = sbr.rel (0) target = $region33
  $region32: #{tpu_custom_call.1} parent=0 // pred_region
    _
  $region33: #{tpu_custom_call.1} parent=0 // pred_fallthru
    _
  // Predicated region
  $region34: #{tpu_custom_call.1} parent=0 // pred_check
    _
  $region35: #{tpu_custom_call.1} parent=0 // pred_check_branch
    %34 = sbr.rel (0) target = $region37
  $region36: #{tpu_custom_call.1} parent=0 // pred_region
    _
  $region37: #{tpu_custom_call.1} parent=0 // pred_fallthru
    _
  // Predicated region
  $region38: #{tpu_custom_call.1} parent=0 // pred_check
    _
  $region39: #{tpu_custom_call.1} parent=0 // pred_check_branch
    %36 = sbr.rel (0) target = $region41
  $region40: #{tpu_custom_call.1} parent=0 // pred_region
    _
  $region41: #{tpu_custom_call.1} parent=0 // pred_fallthru
    _
  // Predicated region
  $region42: #{tpu_custom_call.1} parent=0 // pred_check
    _
  $region43: #{tpu_custom_call.1} parent=0 // pred_check_branch
    %38 = sbr.rel (0) target = $region45
  $region44: #{tpu_custom_call.1} parent=0 // pred_region
    _
  $region45: #{tpu_custom_call.1} parent=0 // pred_fallthru
    _
  // Predicated region
  $region46: #{tpu_custom_call.1} parent=0 // pred_check
    _
  $region47: #{tpu_custom_call.1} parent=0 // pred_check_branch
    %40 = sbr.rel (0) target = $region49
  $region48: #{tpu_custom_call.1} parent=0 // pred_region
    _
  $region49: #{tpu_custom_call.1} parent=0 // pred_fallthru
    _
  %v42 = vld [vmem:[%s0] sm:$0xff]
  %v43 = vld [vmem:[%s0 + $0x8] sm:$0xff]
  %v44 = vld [vmem:[%s0 + $0x10] sm:$0xff]
  %v45 = vld [vmem:[%s0 + $0x18] sm:$0xff]
  %v46 = vld [vmem:[%s0 + $0x20] sm:$0xff]
  %v47 = vld [vmem:[%s0 + $0x28] sm:$0xff]
  %v48 = vld [vmem:[%s0 + $0x30] sm:$0xff]
  %v49 = vld [vmem:[%s0 + $0x38] sm:$0xff]
  %v50 = vld [vmem:[%s0 + $0x40] sm:$0xff]
  %v51 = vld [vmem:[%s0 + $0x48] sm:$0xff]
  %v52 = vld [vmem:[%s0 + $0x50] sm:$0xff]
  %v53 = vld [vmem:[%s0 + $0x58] sm:$0xff]
  %v54 = vld [vmem:[%s0 + $0x60] sm:$0xff]
  %v55 = vld [vmem:[%s0 + $0x68] sm:$0xff]
  %v56 = vld [vmem:[%s0 + $0x70] sm:$0xff]
  %v57 = vld [vmem:[%s0 + $0x78] sm:$0xff]
  %v58 = vld [vmem:[%s1] sm:$0x1]
  %v59 = vld [vmem:[%s2] sm:$0x1]
  %vm60 = vcmask 523264
  %v61 = vsel %vm60, %v42, 0.0
  %62 = vadd.xlane.f32.xlu0 %v61
  %v63 = vpop.xlane.xlu0 %62
  %v64 = vsel %vm60, %v43, 0.0
  %65 = vadd.xlane.f32.xlu0 %v64
  %v66 = vpop.xlane.xlu0 %65
  %v67 = vsel %vm60, %v44, 0.0
  %68 = vadd.xlane.f32.xlu0 %v67
  %v69 = vpop.xlane.xlu0 %68
  %v70 = vsel %vm60, %v45, 0.0
  %71 = vadd.xlane.f32.xlu0 %v70
  %v72 = vpop.xlane.xlu0 %71
  %v73 = vsel %vm60, %v46, 0.0
  %74 = vadd.xlane.f32.xlu0 %v73
  %v75 = vpop.xlane.xlu0 %74
  %v76 = vsel %vm60, %v47, 0.0
  %77 = vadd.xlane.f32.xlu0 %v76
  %v78 = vpop.xlane.xlu0 %77
  %v79 = vsel %vm60, %v48, 0.0
  %80 = vadd.xlane.f32.xlu0 %v79
  %v81 = vpop.xlane.xlu0 %80
  %v82 = vsel %vm60, %v49, 0.0
  %83 = vadd.xlane.f32.xlu0 %v82
  %v84 = vpop.xlane.xlu0 %83
  %v85 = vsel %vm60, %v50, 0.0
  %86 = vadd.xlane.f32.xlu0 %v85
  %v87 = vpop.xlane.xlu0 %86
  %v88 = vsel %vm60, %v51, 0.0
  %89 = vadd.xlane.f32.xlu0 %v88
  %v90 = vpop.xlane.xlu0 %89
  %v91 = vsel %vm60, %v52, 0.0
  %92 = vadd.xlane.f32.xlu0 %v91
  %v93 = vpop.xlane.xlu0 %92
  %v94 = vsel %vm60, %v53, 0.0
  %95 = vadd.xlane.f32.xlu0 %v94
  %v96 = vpop.xlane.xlu0 %95
  %v97 = vsel %vm60, %v54, 0.0
  %98 = vadd.xlane.f32.xlu0 %v97
  %v99 = vpop.xlane.xlu0 %98
  %v100 = vsel %vm60, %v55, 0.0
  %101 = vadd.xlane.f32.xlu0 %v100
  %v102 = vpop.xlane.xlu0 %101
  %v103 = vsel %vm60, %v56, 0.0
  %104 = vadd.xlane.f32.xlu0 %v103
  %v105 = vpop.xlane.xlu0 %104
  %v106 = vsel %vm60, %v57, 0.0
  %107 = vadd.xlane.f32.xlu0 %v106
  %v108 = vpop.xlane.xlu0 %107
  %v109 = vrcp.pop 64.0
  %v110 = vmul.f32 %v63, %v109
  %v111 = vmul.f32 %v66, %v109
  %v112 = vmul.f32 %v69, %v109
  %v113 = vmul.f32 %v72, %v109
  %v114 = vmul.f32 %v75, %v109
  %v115 = vmul.f32 %v78, %v109
  %v116 = vmul.f32 %v81, %v109
  %v117 = vmul.f32 %v84, %v109
  %v118 = vmul.f32 %v87, %v109
  %v119 = vmul.f32 %v90, %v109
  %v120 = vmul.f32 %v93, %v109
  %v121 = vmul.f32 %v96, %v109
  %v122 = vmul.f32 %v99, %v109
  %v123 = vmul.f32 %v102, %v109
  %v124 = vmul.f32 %v105, %v109
  %v125 = vmul.f32 %v108, %v109
  %v126 = vsub.f32 %v42, %v110
  %v127 = vsub.f32 %v43, %v111
  %v128 = vsub.f32 %v44, %v112
  %v129 = vsub.f32 %v45, %v113
  %v130 = vsub.f32 %v46, %v114
  %v131 = vsub.f32 %v47, %v115
  %v132 = vsub.f32 %v48, %v116
  %v133 = vsub.f32 %v49, %v117
  %v134 = vsub.f32 %v50, %v118
  %v135 = vsub.f32 %v51, %v119
  %v136 = vsub.f32 %v52, %v120
  %v137 = vsub.f32 %v53, %v121
  %v138 = vsub.f32 %v54, %v122
  %v139 = vsub.f32 %v55, %v123
  %v140 = vsub.f32 %v56, %v124
  %v141 = vsub.f32 %v57, %v125
  %v142 = vmul.f32 %v126, %v126
  %v143 = vmul.f32 %v127, %v127
  %v144 = vmul.f32 %v128, %v128
  %v145 = vmul.f32 %v129, %v129
  %v146 = vmul.f32 %v130, %v130
  %v147 = vmul.f32 %v131, %v131
  %v148 = vmul.f32 %v132, %v132
  %v149 = vmul.f32 %v133, %v133
  %v150 = vmul.f32 %v134, %v134
  %v151 = vmul.f32 %v135, %v135
  %v152 = vmul.f32 %v136, %v136
  %v153 = vmul.f32 %v137, %v137
  %v154 = vmul.f32 %v138, %v138
  %v155 = vmul.f32 %v139, %v139
  %v156 = vmul.f32 %v140, %v140
  %v157 = vmul.f32 %v141, %v141
  %v158 = vsel %vm60, %v142, 0.0
  %159 = vadd.xlane.f32.xlu0 %v158
  %v160 = vpop.xlane.xlu0 %159
  %v161 = vsel %vm60, %v143, 0.0
  %162 = vadd.xlane.f32.xlu0 %v161
  %v163 = vpop.xlane.xlu0 %162
  %v164 = vsel %vm60, %v144, 0.0
  %165 = vadd.xlane.f32.xlu0 %v164
  %v166 = vpop.xlane.xlu0 %165
  %v167 = vsel %vm60, %v145, 0.0
  %168 = vadd.xlane.f32.xlu0 %v167
  %v169 = vpop.xlane.xlu0 %168
  %v170 = vsel %vm60, %v146, 0.0
  %171 = vadd.xlane.f32.xlu0 %v170
  %v172 = vpop.xlane.xlu0 %171
  %v173 = vsel %vm60, %v147, 0.0
  %174 = vadd.xlane.f32.xlu0 %v173
  %v175 = vpop.xlane.xlu0 %174
  %v176 = vsel %vm60, %v148, 0.0
  %177 = vadd.xlane.f32.xlu0 %v176
  %v178 = vpop.xlane.xlu0 %177
  %v179 = vsel %vm60, %v149, 0.0
  %180 = vadd.xlane.f32.xlu0 %v179
  %v181 = vpop.xlane.xlu0 %180
  %v182 = vsel %vm60, %v150, 0.0
  %183 = vadd.xlane.f32.xlu0 %v182
  %v184 = vpop.xlane.xlu0 %183
  %v185 = vsel %vm60, %v151, 0.0
  %186 = vadd.xlane.f32.xlu0 %v185
  %v187 = vpop.xlane.xlu0 %186
  %v188 = vsel %vm60, %v152, 0.0
  %189 = vadd.xlane.f32.xlu0 %v188
  %v190 = vpop.xlane.xlu0 %189
  %v191 = vsel %vm60, %v153, 0.0
  %192 = vadd.xlane.f32.xlu0 %v191
  %v193 = vpop.xlane.xlu0 %192
  %v194 = vsel %vm60, %v154, 0.0
  %195 = vadd.xlane.f32.xlu0 %v194
  %v196 = vpop.xlane.xlu0 %195
  %v197 = vsel %vm60, %v155, 0.0
  %198 = vadd.xlane.f32.xlu0 %v197
  %v199 = vpop.xlane.xlu0 %198
  %v200 = vsel %vm60, %v156, 0.0
  %201 = vadd.xlane.f32.xlu0 %v200
  %v202 = vpop.xlane.xlu0 %201
  %v203 = vsel %vm60, %v157, 0.0
  %204 = vadd.xlane.f32.xlu0 %v203
  %v205 = vpop.xlane.xlu0 %204
  %v206 = vmul.f32 %v160, %v109
  %v207 = vmul.f32 %v163, %v109
  %v208 = vmul.f32 %v166, %v109
  %v209 = vmul.f32 %v169, %v109
  %v210 = vmul.f32 %v172, %v109
  %v211 = vmul.f32 %v175, %v109
  %v212 = vmul.f32 %v178, %v109
  %v213 = vmul.f32 %v181, %v109
  %v214 = vmul.f32 %v184, %v109
  %v215 = vmul.f32 %v187, %v109
  %v216 = vmul.f32 %v190, %v109
  %v217 = vmul.f32 %v193, %v109
  %v218 = vmul.f32 %v196, %v109
  %v219 = vmul.f32 %v199, %v109
  %v220 = vmul.f32 %v202, %v109
  %v221 = vmul.f32 %v205, %v109
  %v222 = vadd.f32 %v206, 1e-05
  %v223 = vadd.f32 %v207, 1e-05
  %v224 = vadd.f32 %v208, 1e-05
  %v225 = vadd.f32 %v209, 1e-05
  %v226 = vadd.f32 %v210, 1e-05
  %v227 = vadd.f32 %v211, 1e-05
  %v228 = vadd.f32 %v212, 1e-05
  %v229 = vadd.f32 %v213, 1e-05
  %v230 = vadd.f32 %v214, 1e-05
  %v231 = vadd.f32 %v215, 1e-05
  %v232 = vadd.f32 %v216, 1e-05
  %v233 = vadd.f32 %v217, 1e-05
  %v234 = vadd.f32 %v218, 1e-05
  %v235 = vadd.f32 %v219, 1e-05
  %v236 = vadd.f32 %v220, 1e-05
  %v237 = vadd.f32 %v221, 1e-05
  %v238 = vrsqrt.pop %v222
  %v239 = vrsqrt.pop %v223
  %v240 = vrsqrt.pop %v224
  %v241 = vrsqrt.pop %v225
  %v242 = vrsqrt.pop %v226
  %v243 = vrsqrt.pop %v227
  %v244 = vrsqrt.pop %v228
  %v245 = vrsqrt.pop %v229
  %v246 = vrsqrt.pop %v230
  %v247 = vrsqrt.pop %v231
  %v248 = vrsqrt.pop %v232
  %v249 = vrsqrt.pop %v233
  %v250 = vrsqrt.pop %v234
  %v251 = vrsqrt.pop %v235
  %v252 = vrsqrt.pop %v236
  %v253 = vrsqrt.pop %v237
  %v254 = vmul.f32 %v126, %v238
  %v255 = vmul.f32 %v127, %v239
  %v256 = vmul.f32 %v128, %v240
  %v257 = vmul.f32 %v129, %v241
  %v258 = vmul.f32 %v130, %v242
  %v259 = vmul.f32 %v131, %v243
  %v260 = vmul.f32 %v132, %v244
  %v261 = vmul.f32 %v133, %v245
  %v262 = vmul.f32 %v134, %v246
  %v263 = vmul.f32 %v135, %v247
  %v264 = vmul.f32 %v136, %v248
  %v265 = vmul.f32 %v137, %v249
  %v266 = vmul.f32 %v138, %v250
  %v267 = vmul.f32 %v139, %v251
  %v268 = vmul.f32 %v140, %v252
  %v269 = vmul.f32 %v141, %v253
  %v271 = vlaneseq
  %v272 = vshrl.u32 %v271, 7
  %v273 = vsub.s32 0, %v272
  %v274 = vrot.slane %v58, %v273
  %v276 = vmul.f32 %v254, %v274
  %v277 = vmul.f32 %v255, %v274
  %v278 = vmul.f32 %v256, %v274
  %v279 = vmul.f32 %v257, %v274
  %v280 = vmul.f32 %v258, %v274
  %v281 = vmul.f32 %v259, %v274
  %v282 = vmul.f32 %v260, %v274
  %v283 = vmul.f32 %v261, %v274
  %v284 = vmul.f32 %v262, %v274
  %v285 = vmul.f32 %v263, %v274
  %v286 = vmul.f32 %v264, %v274
  %v287 = vmul.f32 %v265, %v274
  %v288 = vmul.f32 %v266, %v274
  %v289 = vmul.f32 %v267, %v274
  %v290 = vmul.f32 %v268, %v274
  %v291 = vmul.f32 %v269, %v274
  %v293 = vlaneseq
  %v294 = vshrl.u32 %v293, 7
  %v295 = vsub.s32 0, %v294
  %v296 = vrot.slane %v59, %v295
  %v298 = vadd.f32 %v276, %v296
  %v299 = vadd.f32 %v277, %v296
  %v300 = vadd.f32 %v278, %v296
  %v301 = vadd.f32 %v279, %v296
  %v302 = vadd.f32 %v280, %v296
  %v303 = vadd.f32 %v281, %v296
  %v304 = vadd.f32 %v282, %v296
  %v305 = vadd.f32 %v283, %v296
  %v306 = vadd.f32 %v284, %v296
  %v307 = vadd.f32 %v285, %v296
  %v308 = vadd.f32 %v286, %v296
  %v309 = vadd.f32 %v287, %v296
  %v310 = vadd.f32 %v288, %v296
  %v311 = vadd.f32 %v289, %v296
  %v312 = vadd.f32 %v290, %v296
  %v313 = vadd.f32 %v291, %v296
  %v314 = vpack.c.bf16 %v299, %v298
  %v315 = vpack.c.bf16 %v301, %v300
  %v316 = vpack.c.bf16 %v303, %v302
  %v317 = vpack.c.bf16 %v305, %v304
  %v318 = vpack.c.bf16 %v307, %v306
  %v319 = vpack.c.bf16 %v309, %v308
  %v320 = vpack.c.bf16 %v311, %v310
  %v321 = vpack.c.bf16 %v313, %v312
  %v322 = vld [vmem:[%s3] sm:$0xff]
  %v323 = vld [vmem:[%s3 + $0x8] sm:$0xff]
  %v324 = vld [vmem:[%s3 + $0x10] sm:$0xff]
  %v325 = vld [vmem:[%s3 + $0x18] sm:$0xff]
  %v326 = vld [vmem:[%s3 + $0x20] sm:$0xff]
  %v327 = vld [vmem:[%s3 + $0x28] sm:$0xff]
  %v328 = vld [vmem:[%s3 + $0x30] sm:$0xff]
  %v329 = vld [vmem:[%s3 + $0x38] sm:$0xff]
  %v338 = vunpack.c.l.b16 %v322
  %v339 = vunpack.c.h.b16 %v322
  %v340 = vunpack.c.l.b16 %v323
  %v341 = vunpack.c.h.b16 %v323
  %v342 = vunpack.c.l.b16 %v324
  %v343 = vunpack.c.h.b16 %v324
  %v344 = vunpack.c.l.b16 %v325
  %v345 = vunpack.c.h.b16 %v325
  %v346 = vunpack.c.l.b16 %v326
  %v347 = vunpack.c.h.b16 %v326
  %v348 = vunpack.c.l.b16 %v327
  %v349 = vunpack.c.h.b16 %v327
  %v350 = vunpack.c.l.b16 %v328
  %v351 = vunpack.c.h.b16 %v328
  %v352 = vunpack.c.l.b16 %v329
  %v353 = vunpack.c.h.b16 %v329
  %v354 = vpack.c.b16 %v340, %v338
  %v355 = vpack.c.b16 %v341, %v339
  %v356 = vpack.c.b16 %v344, %v342
  %v357 = vpack.c.b16 %v345, %v343
  %v358 = vpack.c.b16 %v348, %v346
  %v359 = vpack.c.b16 %v349, %v347
  %v360 = vpack.c.b16 %v352, %v350
  %v361 = vpack.c.b16 %v353, %v351
  %v371 = vsel %vm60, %v314, 0
  %v374 = vsel %vm60, %v315, 0
  %v377 = vsel %vm60, %v316, 0
  %v380 = vsel %vm60, %v317, 0
  %v383 = vsel %vm60, %v318, 0
  %v386 = vsel %vm60, %v319, 0
  %v389 = vsel %vm60, %v320, 0
  %v392 = vsel %vm60, %v321, 0
  %394 = vmatprep.subr.bf16.mxu0 %v355
  %395 = vmatpush1.bf16.msra.mxu0 %v354
  %396 = vmatprep.subr.bf16.mxu0 %v357
  %397 = vmatpush1.bf16.msra.mxu0 %v356
  %398 = vmatprep.subr.bf16.mxu0 %v359
  %399 = vmatpush1.bf16.msra.mxu0 %v358
  %400 = vmatprep.subr.bf16.mxu0 %v361
  %401 = vmatpush1.bf16.msra.mxu0 %v360
  %402 = vmatprep.subr.bf16.mxu0 0
  %403 = vmatpush1.bf16.msra.mxu0 0
  %404 = vmatprep.subr.bf16.mxu0 0
  %405 = vmatpush1.bf16.msra.mxu0 0
  %406 = vmatprep.subr.bf16.mxu0 0
  %407 = vmatpush1.bf16.msra.mxu0 0
  %408 = vmatprep.subr.bf16.mxu0 0
  %409 = vmatpush1.bf16.msra.mxu0 0
  %410 = vmatprep.subr.bf16.mxu0 0
  %411 = vmatpush1.bf16.msra.mxu0 0
  %412 = vmatprep.subr.bf16.mxu0 0
  %413 = vmatpush1.bf16.msra.mxu0 0
  %414 = vmatprep.subr.bf16.mxu0 0
  %415 = vmatpush1.bf16.msra.mxu0 0
  %416 = vmatprep.subr.bf16.mxu0 0
  %417 = vmatpush1.bf16.msra.mxu0 0
  %418 = vmatprep.subr.bf16.mxu0 0
  %419 = vmatpush1.bf16.msra.mxu0 0
  %420 = vmatprep.subr.bf16.mxu0 0
  %421 = vmatpush1.bf16.msra.mxu0 0
  %422 = vmatprep.subr.bf16.mxu0 0
  %423 = vmatpush1.bf16.msra.mxu0 0
  %424 = vmatprep.subr.bf16.mxu0 0
  %425 = vmatpush1.bf16.msra.mxu0 0
  %426 = vmatprep.mubr.bf16.mxu0 0
  %427 = vmatmul.mubr.bf16.gmra.mrb[0].mxu0 %v371
  %v428 = vpop.f32.mrb[0].mxu0
  %v429 = vadd.f32 0.0, %v428
  %v430 = vpop.f32.mrb[0].mxu0
  %v431 = vadd.f32 0.0, %v430
  %v432 = vpop.f32.mrb[0].mxu0
  %v433 = vadd.f32 0.0, %v432
  %v434 = vpop.f32.mrb[0].mxu0
  %v435 = vadd.f32 0.0, %v434
  %436 = vmatprep.mubr.bf16.mxu0 0
  %437 = vmatmul.mubr.bf16.gmra.mrb[0].mxu0 %v374
  %v438 = vpop.f32.mrb[0].mxu0
  %v439 = vadd.f32 0.0, %v438
  %v440 = vpop.f32.mrb[0].mxu0
  %v441 = vadd.f32 0.0, %v440
  %v442 = vpop.f32.mrb[0].mxu0
  %v443 = vadd.f32 0.0, %v442
  %v444 = vpop.f32.mrb[0].mxu0
  %v445 = vadd.f32 0.0, %v444
  %446 = vmatprep.mubr.bf16.mxu0 0
  %447 = vmatmul.mubr.bf16.gmra.mrb[0].mxu0 %v377
  %v448 = vpop.f32.mrb[0].mxu0
  %v449 = vadd.f32 0.0, %v448
  %v450 = vpop.f32.mrb[0].mxu0
  %v451 = vadd.f32 0.0, %v450
  %v452 = vpop.f32.mrb[0].mxu0
  %v453 = vadd.f32 0.0, %v452
  %v454 = vpop.f32.mrb[0].mxu0
  %v455 = vadd.f32 0.0, %v454
  %456 = vmatprep.mubr.bf16.mxu0 0
  %457 = vmatmul.mubr.bf16.gmra.mrb[0].mxu0 %v380
  %v458 = vpop.f32.mrb[0].mxu0
  %v459 = vadd.f32 0.0, %v458
  %v460 = vpop.f32.mrb[0].mxu0
  %v461 = vadd.f32 0.0, %v460
  %v462 = vpop.f32.mrb[0].mxu0
  %v463 = vadd.f32 0.0, %v462
  %v464 = vpop.f32.mrb[0].mxu0
  %v465 = vadd.f32 0.0, %v464
  %466 = vmatprep.mubr.bf16.mxu0 0
  %467 = vmatmul.mubr.bf16.gmra.mrb[0].mxu0 %v383
  %v468 = vpop.f32.mrb[0].mxu0
  %v469 = vadd.f32 0.0, %v468
  %v470 = vpop.f32.mrb[0].mxu0
  %v471 = vadd.f32 0.0, %v470
  %v472 = vpop.f32.mrb[0].mxu0
  %v473 = vadd.f32 0.0, %v472
  %v474 = vpop.f32.mrb[0].mxu0
  %v475 = vadd.f32 0.0, %v474
  %476 = vmatprep.mubr.bf16.mxu0 0
  %477 = vmatmul.mubr.bf16.gmra.mrb[0].mxu0 %v386
  %v478 = vpop.f32.mrb[0].mxu0
  %v479 = vadd.f32 0.0, %v478
  %v480 = vpop.f32.mrb[0].mxu0
  %v481 = vadd.f32 0.0, %v480
  %v482 = vpop.f32.mrb[0].mxu0
  %v483 = vadd.f32 0.0, %v482
  %v484 = vpop.f32.mrb[0].mxu0
  %v485 = vadd.f32 0.0, %v484
  %486 = vmatprep.mubr.bf16.mxu0 0
  %487 = vmatmul.mubr.bf16.gmra.mrb[0].mxu0 %v389
  %v488 = vpop.f32.mrb[0].mxu0
  %v489 = vadd.f32 0.0, %v488
  %v490 = vpop.f32.mrb[0].mxu0
  %v491 = vadd.f32 0.0, %v490
  %v492 = vpop.f32.mrb[0].mxu0
  %v493 = vadd.f32 0.0, %v492
  %v494 = vpop.f32.mrb[0].mxu0
  %v495 = vadd.f32 0.0, %v494
  %496 = vmatprep.mubr.bf16.mxu0 0
  %497 = vmatmul.mubr.bf16.gmra.mrb[0].mxu0 %v392
  %v498 = vpop.f32.mrb[0].mxu0
  %v499 = vadd.f32 0.0, %v498
  %v500 = vpop.f32.mrb[0].mxu0
  %v501 = vadd.f32 0.0, %v500
  %v502 = vpop.f32.mrb[0].mxu0
  %v503 = vadd.f32 0.0, %v502
  %v504 = vpop.f32.mrb[0].mxu0
  %v505 = vadd.f32 0.0, %v504
  %506 = vdwg.mxu0
  %v507 = vpack.c.bf16 %v433, %v429
  %v508 = vpack.c.bf16 %v435, %v431
  %v509 = vpack.c.bf16 %v443, %v439
  %v510 = vpack.c.bf16 %v445, %v441
  %v511 = vpack.c.bf16 %v453, %v449
  %v512 = vpack.c.bf16 %v455, %v451
  %v513 = vpack.c.bf16 %v463, %v459
  %v514 = vpack.c.bf16 %v465, %v461
  %v515 = vpack.c.bf16 %v473, %v469
  %v516 = vpack.c.bf16 %v475, %v471
  %v517 = vpack.c.bf16 %v483, %v479
  %v518 = vpack.c.bf16 %v485, %v481
  %v519 = vpack.c.bf16 %v493, %v489
  %v520 = vpack.c.bf16 %v495, %v491
  %v521 = vpack.c.bf16 %v503, %v499
  %v522 = vpack.c.bf16 %v505, %v501
  %v523 = vlaneseq
  %v524 = vand.u32 %v523, 127
  %vm525 = vcmp.ge.s32.totalorder %v524, 0
  %vm526 = vcmp.lt.s32.totalorder %v524, 16
  %vm527 = vmand %vm525, %vm526
  %v528 = vsel %vm527, 1.0, 0.0
  %vm529 = vcmp.ge.s32.totalorder %v524, 16
  %vm530 = vcmp.lt.s32.totalorder %v524, 32
  %vm531 = vmand %vm529, %vm530
  %v532 = vsel %vm531, 1.0, 0.0
  %vm533 = vcmp.ge.s32.totalorder %v524, 32
  %vm534 = vcmp.lt.s32.totalorder %v524, 48
  %vm535 = vmand %vm533, %vm534
  %v536 = vsel %vm535, 1.0, 0.0
  %vm537 = vcmp.ge.s32.totalorder %v524, 48
  %vm538 = vcmp.lt.s32.totalorder %v524, 64
  %vm539 = vmand %vm537, %vm538
  %v540 = vsel %vm539, 1.0, 0.0
  %v541 = vpack.c.bf16 %v528, %v528
  %v542 = vpack.c.bf16 %v532, %v532
  %v543 = vpack.c.bf16 %v536, %v536
  %v544 = vpack.c.bf16 %v540, %v540
  %v545 = vlaneseq
  %v546 = vshrl.u32 %v545, 7
  %v547 = vadd.s32 %v546, 8
  %v548 = vadd.s32 %v546, 16
  %v549 = vadd.s32 %v546, 24
  %v550 = vadd.s32 %v546, 32
  %v551 = vadd.s32 %v546, 40
  %v552 = vadd.s32 %v546, 48
  %v553 = vadd.s32 %v546, 56
  %vm554 = vcmp.ge.s32.totalorder %v546, %v524
  %vm555 = vcmp.ge.s32.totalorder %v547, %v524
  %vm556 = vcmp.ge.s32.totalorder %v548, %v524
  %vm557 = vcmp.ge.s32.totalorder %v549, %v524
  %vm558 = vcmp.ge.s32.totalorder %v550, %v524
  %vm559 = vcmp.ge.s32.totalorder %v551, %v524
  %vm560 = vcmp.ge.s32.totalorder %v552, %v524
  %vm561 = vcmp.ge.s32.totalorder %v553, %v524
  %v562 = vsel %vm554, 0.0, -1e+30
  %v563 = vsel %vm555, 0.0, -1e+30
  %v564 = vsel %vm556, 0.0, -1e+30
  %v565 = vsel %vm557, 0.0, -1e+30
  %v566 = vsel %vm558, 0.0, -1e+30
  %v567 = vsel %vm559, 0.0, -1e+30
  %v568 = vsel %vm560, 0.0, -1e+30
  %v569 = vsel %vm561, 0.0, -1e+30
  %v570 = vmul.bf16 %v507, %v541
  %v571 = vmul.bf16 %v509, %v541
  %v572 = vmul.bf16 %v511, %v541
  %v573 = vmul.bf16 %v513, %v541
  %v574 = vmul.bf16 %v507, %v542
  %v575 = vmul.bf16 %v509, %v542
  %v576 = vmul.bf16 %v511, %v542
  %v577 = vmul.bf16 %v513, %v542
  %v578 = vmul.bf16 %v507, %v543
  %v579 = vmul.bf16 %v509, %v543
  %v580 = vmul.bf16 %v511, %v543
  %v581 = vmul.bf16 %v513, %v543
  %v582 = vmul.bf16 %v507, %v544
  %v583 = vmul.bf16 %v509, %v544
  %v584 = vmul.bf16 %v511, %v544
  %v585 = vmul.bf16 %v513, %v544
  %590 = vrot.lane.b32.xlu0 %v507, 64
  %v591 = vpop.permute.xlu0 %590
  %592 = vrot.lane.b32.xlu0 %v509, 64
  %v593 = vpop.permute.xlu0 %592
  %594 = vrot.lane.b32.xlu0 %v511, 64
  %v595 = vpop.permute.xlu0 %594
  %596 = vrot.lane.b32.xlu0 %v513, 64
  %v597 = vpop.permute.xlu0 %596
  %v599 = vsel %vm60, %v570, 0
  %v602 = vsel %vm60, %v571, 0
  %v605 = vsel %vm60, %v572, 0
  %v608 = vsel %vm60, %v573, 0
  %v611 = vsel %vm60, %v574, 0
  %v614 = vsel %vm60, %v575, 0
  %v617 = vsel %vm60, %v576, 0
  %v620 = vsel %vm60, %v577, 0
  %v623 = vsel %vm60, %v578, 0
  %v626 = vsel %vm60, %v579, 0
  %v629 = vsel %vm60, %v580, 0
  %v632 = vsel %vm60, %v581, 0
  %v635 = vsel %vm60, %v582, 0
  %v638 = vsel %vm60, %v583, 0
  %v641 = vsel %vm60, %v584, 0
  %v644 = vsel %vm60, %v585, 0
  %v647 = vsel %vm60, %v591, 0
  %v650 = vsel %vm60, %v593, 0
  %v653 = vsel %vm60, %v595, 0
  %v656 = vsel %vm60, %v597, 0
  %658 = vmatprep.subr.bf16.mxu0 0
  %659 = vmatpush1.bf16.xpose.msra.mxu0 %v647
  %660 = vmatprep.subr.bf16.mxu0 0
  %661 = vmatpush1.bf16.xpose.msra.mxu0 %v650
  %662 = vmatprep.subr.bf16.mxu0 0
  %663 = vmatpush1.bf16.xpose.msra.mxu0 %v653
  %664 = vmatprep.subr.bf16.mxu0 0
  %665 = vmatpush1.bf16.xpose.msra.mxu0 %v656
  %666 = vmatprep.subr.bf16.mxu0 0
  %667 = vmatpush1.bf16.xpose.msra.mxu0 0
  %668 = vmatprep.subr.bf16.mxu0 0
  %669 = vmatpush1.bf16.xpose.msra.mxu0 0
  %670 = vmatprep.subr.bf16.mxu0 0
  %671 = vmatpush1.bf16.xpose.msra.mxu0 0
  %672 = vmatprep.subr.bf16.mxu0 0
  %673 = vmatpush1.bf16.xpose.msra.mxu0 0
  %674 = vmatprep.subr.bf16.mxu0 0
  %675 = vmatpush1.bf16.xpose.msra.mxu0 0
  %676 = vmatprep.subr.bf16.mxu0 0
  %677 = vmatpush1.bf16.xpose.msra.mxu0 0
  %678 = vmatprep.subr.bf16.mxu0 0
  %679 = vmatpush1.bf16.xpose.msra.mxu0 0
  %680 = vmatprep.subr.bf16.mxu0 0
  %681 = vmatpush1.bf16.xpose.msra.mxu0 0
  %682 = vmatprep.subr.bf16.mxu0 0
  %683 = vmatpush1.bf16.xpose.msra.mxu0 0
  %684 = vmatprep.subr.bf16.mxu0 0
  %685 = vmatpush1.bf16.xpose.msra.mxu0 0
  %686 = vmatprep.subr.bf16.mxu0 0
  %687 = vmatpush1.bf16.xpose.msra.mxu0 0
  %688 = vmatprep.subr.bf16.mxu0 0
  %689 = vmatpush1.bf16.xpose.msra.mxu0 0
  %690 = vmatprep.mubr.bf16.mxu0 0
  %691 = vmatmul.mubr.bf16.gmra.mrb[0].mxu0 %v599
  %v692 = vpop.f32.mrb[0].mxu0
  %v693 = vadd.f32 %v562, %v692
  %v694 = vpop.f32.mrb[0].mxu0
  %v695 = vpop.f32.mrb[0].mxu0
  %v696 = vadd.f32 %v563, %v695
  %v697 = vpop.f32.mrb[0].mxu0
  %698 = vmatprep.mubr.bf16.mxu0 0
  %699 = vmatmul.mubr.bf16.gmra.mrb[0].mxu0 %v602
  %v700 = vpop.f32.mrb[0].mxu0
  %v701 = vadd.f32 %v564, %v700
  %v702 = vpop.f32.mrb[0].mxu0
  %v703 = vpop.f32.mrb[0].mxu0
  %v704 = vadd.f32 %v565, %v703
  %v705 = vpop.f32.mrb[0].mxu0
  %706 = vmatprep.mubr.bf16.mxu0 0
  %707 = vmatmul.mubr.bf16.gmra.mrb[0].mxu0 %v605
  %v708 = vpop.f32.mrb[0].mxu0
  %v709 = vadd.f32 %v566, %v708
  %v710 = vpop.f32.mrb[0].mxu0
  %v711 = vpop.f32.mrb[0].mxu0
  %v712 = vadd.f32 %v567, %v711
  %v713 = vpop.f32.mrb[0].mxu0
  %714 = vmatprep.mubr.bf16.mxu0 0
  %715 = vmatmul.mubr.bf16.gmra.mrb[0].mxu0 %v608
  %v716 = vpop.f32.mrb[0].mxu0
  %v717 = vadd.f32 %v568, %v716
  %v718 = vpop.f32.mrb[0].mxu0
  %v719 = vpop.f32.mrb[0].mxu0
  %v720 = vadd.f32 %v569, %v719
  %v721 = vpop.f32.mrb[0].mxu0
  %722 = vmatprep.mubr.bf16.mxu0 0
  %723 = vmatmul.mubr.bf16.gmra.mrb[0].mxu0 %v611
  %v724 = vpop.f32.mrb[0].mxu0
  %v725 = vadd.f32 %v562, %v724
  %v726 = vpop.f32.mrb[0].mxu0
  %v727 = vpop.f32.mrb[0].mxu0
  %v728 = vadd.f32 %v563, %v727
  %v729 = vpop.f32.mrb[0].mxu0
  %730 = vmatprep.mubr.bf16.mxu0 0
  %731 = vmatmul.mubr.bf16.gmra.mrb[0].mxu0 %v614
  %v732 = vpop.f32.mrb[0].mxu0
  %v733 = vadd.f32 %v564, %v732
  %v734 = vpop.f32.mrb[0].mxu0
  %v735 = vpop.f32.mrb[0].mxu0
  %v736 = vadd.f32 %v565, %v735
  %v737 = vpop.f32.mrb[0].mxu0
  %738 = vmatprep.mubr.bf16.mxu0 0
  %739 = vmatmul.mubr.bf16.gmra.mrb[0].mxu0 %v617
  %v740 = vpop.f32.mrb[0].mxu0
  %v741 = vadd.f32 %v566, %v740
  %v742 = vpop.f32.mrb[0].mxu0
  %v743 = vpop.f32.mrb[0].mxu0
  %v744 = vadd.f32 %v567, %v743
  %v745 = vpop.f32.mrb[0].mxu0
  %746 = vmatprep.mubr.bf16.mxu0 0
  %747 = vmatmul.mubr.bf16.gmra.mrb[0].mxu0 %v620
  %v748 = vpop.f32.mrb[0].mxu0
  %v749 = vadd.f32 %v568, %v748
  %v750 = vpop.f32.mrb[0].mxu0
  %v751 = vpop.f32.mrb[0].mxu0
  %v752 = vadd.f32 %v569, %v751
  %v753 = vpop.f32.mrb[0].mxu0
  %754 = vmatprep.mubr.bf16.mxu0 0
  %755 = vmatmul.mubr.bf16.gmra.mrb[0].mxu0 %v623
  %v756 = vpop.f32.mrb[0].mxu0
  %v757 = vadd.f32 %v562, %v756
  %v758 = vpop.f32.mrb[0].mxu0
  %v759 = vpop.f32.mrb[0].mxu0
  %v760 = vadd.f32 %v563, %v759
  %v761 = vpop.f32.mrb[0].mxu0
  %762 = vmatprep.mubr.bf16.mxu0 0
  %763 = vmatmul.mubr.bf16.gmra.mrb[0].mxu0 %v626
  %v764 = vpop.f32.mrb[0].mxu0
  %v765 = vadd.f32 %v564, %v764
  %v766 = vpop.f32.mrb[0].mxu0
  %v767 = vpop.f32.mrb[0].mxu0
  %v768 = vadd.f32 %v565, %v767
  %v769 = vpop.f32.mrb[0].mxu0
  %770 = vmatprep.mubr.bf16.mxu0 0
  %771 = vmatmul.mubr.bf16.gmra.mrb[0].mxu0 %v629
  %v772 = vpop.f32.mrb[0].mxu0
  %v773 = vadd.f32 %v566, %v772
  %v774 = vpop.f32.mrb[0].mxu0
  %v775 = vpop.f32.mrb[0].mxu0
  %v776 = vadd.f32 %v567, %v775
  %v777 = vpop.f32.mrb[0].mxu0
  %778 = vmatprep.mubr.bf16.mxu0 0
  %779 = vmatmul.mubr.bf16.gmra.mrb[0].mxu0 %v632
  %v780 = vpop.f32.mrb[0].mxu0
  %v781 = vadd.f32 %v568, %v780
  %v782 = vpop.f32.mrb[0].mxu0
  %v783 = vpop.f32.mrb[0].mxu0
  %v784 = vadd.f32 %v569, %v783
  %v785 = vpop.f32.mrb[0].mxu0
  %786 = vmatprep.mubr.bf16.mxu0 0
  %787 = vmatmul.mubr.bf16.gmra.mrb[0].mxu0 %v635
  %v788 = vpop.f32.mrb[0].mxu0
  %v789 = vadd.f32 %v562, %v788
  %v790 = vpop.f32.mrb[0].mxu0
  %v791 = vpop.f32.mrb[0].mxu0
  %v792 = vadd.f32 %v563, %v791
  %v793 = vpop.f32.mrb[0].mxu0
  %794 = vmatprep.mubr.bf16.mxu0 0
  %795 = vmatmul.mubr.bf16.gmra.mrb[0].mxu0 %v638
  %v796 = vpop.f32.mrb[0].mxu0
  %v797 = vadd.f32 %v564, %v796
  %v798 = vpop.f32.mrb[0].mxu0
  %v799 = vpop.f32.mrb[0].mxu0
  %v800 = vadd.f32 %v565, %v799
  %v801 = vpop.f32.mrb[0].mxu0
  %802 = vmatprep.mubr.bf16.mxu0 0
  %803 = vmatmul.mubr.bf16.gmra.mrb[0].mxu0 %v641
  %v804 = vpop.f32.mrb[0].mxu0
  %v805 = vadd.f32 %v566, %v804
  %v806 = vpop.f32.mrb[0].mxu0
  %v807 = vpop.f32.mrb[0].mxu0
  %v808 = vadd.f32 %v567, %v807
  %v809 = vpop.f32.mrb[0].mxu0
  %810 = vmatprep.mubr.bf16.mxu0 0
  %811 = vmatmul.mubr.bf16.gmra.mrb[0].mxu0 %v644
  %v812 = vpop.f32.mrb[0].mxu0
  %v813 = vadd.f32 %v568, %v812
  %v814 = vpop.f32.mrb[0].mxu0
  %v815 = vpop.f32.mrb[0].mxu0
  %v816 = vadd.f32 %v569, %v815
  %v817 = vpop.f32.mrb[0].mxu0
  %818 = vdwg.mxu0
  %v819 = vsel %vm60, %v693, -inf
  %820 = vmax.xlane.f32.xlu0 %v819
  %v821 = vpop.xlane.xlu0 %820
  %v822 = vsel %vm60, %v696, -inf
  %823 = vmax.xlane.f32.xlu0 %v822
  %v824 = vpop.xlane.xlu0 %823
  %v825 = vsel %vm60, %v701, -inf
  %826 = vmax.xlane.f32.xlu0 %v825
  %v827 = vpop.xlane.xlu0 %826
  %v828 = vsel %vm60, %v704, -inf
  %829 = vmax.xlane.f32.xlu0 %v828
  %v830 = vpop.xlane.xlu0 %829
  %v831 = vsel %vm60, %v709, -inf
  %832 = vmax.xlane.f32.xlu0 %v831
  %v833 = vpop.xlane.xlu0 %832
  %v834 = vsel %vm60, %v712, -inf
  %835 = vmax.xlane.f32.xlu0 %v834
  %v836 = vpop.xlane.xlu0 %835
  %v837 = vsel %vm60, %v717, -inf
  %838 = vmax.xlane.f32.xlu0 %v837
  %v839 = vpop.xlane.xlu0 %838
  %v840 = vsel %vm60, %v720, -inf
  %841 = vmax.xlane.f32.xlu0 %v840
  %v842 = vpop.xlane.xlu0 %841
  %v843 = vsel %vm60, %v725, -inf
  %844 = vmax.xlane.f32.xlu0 %v843
  %v845 = vpop.xlane.xlu0 %844
  %v846 = vsel %vm60, %v728, -inf
  %847 = vmax.xlane.f32.xlu0 %v846
  %v848 = vpop.xlane.xlu0 %847
  %v849 = vsel %vm60, %v733, -inf
  %850 = vmax.xlane.f32.xlu0 %v849
  %v851 = vpop.xlane.xlu0 %850
  %v852 = vsel %vm60, %v736, -inf
  %853 = vmax.xlane.f32.xlu0 %v852
  %v854 = vpop.xlane.xlu0 %853
  %v855 = vsel %vm60, %v741, -inf
  %856 = vmax.xlane.f32.xlu0 %v855
  %v857 = vpop.xlane.xlu0 %856
  %v858 = vsel %vm60, %v744, -inf
  %859 = vmax.xlane.f32.xlu0 %v858
  %v860 = vpop.xlane.xlu0 %859
  %v861 = vsel %vm60, %v749, -inf
  %862 = vmax.xlane.f32.xlu0 %v861
  %v863 = vpop.xlane.xlu0 %862
  %v864 = vsel %vm60, %v752, -inf
  %865 = vmax.xlane.f32.xlu0 %v864
  %v866 = vpop.xlane.xlu0 %865
  %v867 = vsel %vm60, %v757, -inf
  %868 = vmax.xlane.f32.xlu0 %v867
  %v869 = vpop.xlane.xlu0 %868
  %v870 = vsel %vm60, %v760, -inf
  %871 = vmax.xlane.f32.xlu0 %v870
  %v872 = vpop.xlane.xlu0 %871
  %v873 = vsel %vm60, %v765, -inf
  %874 = vmax.xlane.f32.xlu0 %v873
  %v875 = vpop.xlane.xlu0 %874
  %v876 = vsel %vm60, %v768, -inf
  %877 = vmax.xlane.f32.xlu0 %v876
  %v878 = vpop.xlane.xlu0 %877
  %v879 = vsel %vm60, %v773, -inf
  %880 = vmax.xlane.f32.xlu0 %v879
  %v881 = vpop.xlane.xlu0 %880
  %v882 = vsel %vm60, %v776, -inf
  %883 = vmax.xlane.f32.xlu0 %v882
  %v884 = vpop.xlane.xlu0 %883
  %v885 = vsel %vm60, %v781, -inf
  %886 = vmax.xlane.f32.xlu0 %v885
  %v887 = vpop.xlane.xlu0 %886
  %v888 = vsel %vm60, %v784, -inf
  %889 = vmax.xlane.f32.xlu0 %v888
  %v890 = vpop.xlane.xlu0 %889
  %v891 = vsel %vm60, %v789, -inf
  %892 = vmax.xlane.f32.xlu0 %v891
  %v893 = vpop.xlane.xlu0 %892
  %v894 = vsel %vm60, %v792, -inf
  %895 = vmax.xlane.f32.xlu0 %v894
  %v896 = vpop.xlane.xlu0 %895
  %v897 = vsel %vm60, %v797, -inf
  %898 = vmax.xlane.f32.xlu0 %v897
  %v899 = vpop.xlane.xlu0 %898
  %v900 = vsel %vm60, %v800, -inf
  %901 = vmax.xlane.f32.xlu0 %v900
  %v902 = vpop.xlane.xlu0 %901
  %v903 = vsel %vm60, %v805, -inf
  %904 = vmax.xlane.f32.xlu0 %v903
  %v905 = vpop.xlane.xlu0 %904
  %v906 = vsel %vm60, %v808, -inf
  %907 = vmax.xlane.f32.xlu0 %v906
  %v908 = vpop.xlane.xlu0 %907
  %v909 = vsel %vm60, %v813, -inf
  %910 = vmax.xlane.f32.xlu0 %v909
  %v911 = vpop.xlane.xlu0 %910
  %v912 = vsel %vm60, %v816, -inf
  %913 = vmax.xlane.f32.xlu0 %v912
  %v914 = vpop.xlane.xlu0 %913
  %v915 = vsub.f32 %v693, %v821
  %v916 = vsub.f32 %v696, %v824
  %v917 = vsub.f32 %v701, %v827
  %v918 = vsub.f32 %v704, %v830
  %v919 = vsub.f32 %v709, %v833
  %v920 = vsub.f32 %v712, %v836
  %v921 = vsub.f32 %v717, %v839
  %v922 = vsub.f32 %v720, %v842
  %v923 = vsub.f32 %v725, %v845
  %v924 = vsub.f32 %v728, %v848
  %v925 = vsub.f32 %v733, %v851
  %v926 = vsub.f32 %v736, %v854
  %v927 = vsub.f32 %v741, %v857
  %v928 = vsub.f32 %v744, %v860
  %v929 = vsub.f32 %v749, %v863
  %v930 = vsub.f32 %v752, %v866
  %v931 = vsub.f32 %v757, %v869
  %v932 = vsub.f32 %v760, %v872
  %v933 = vsub.f32 %v765, %v875
  %v934 = vsub.f32 %v768, %v878
  %v935 = vsub.f32 %v773, %v881
  %v936 = vsub.f32 %v776, %v884
  %v937 = vsub.f32 %v781, %v887
  %v938 = vsub.f32 %v784, %v890
  %v939 = vsub.f32 %v789, %v893
  %v940 = vsub.f32 %v792, %v896
  %v941 = vsub.f32 %v797, %v899
  %v942 = vsub.f32 %v800, %v902
  %v943 = vsub.f32 %v805, %v905
  %v944 = vsub.f32 %v808, %v908
  %v945 = vsub.f32 %v813, %v911
  %v946 = vsub.f32 %v816, %v914
  %v947 = vmul.f32 %v915, 1.442695
  %v948 = vpow.pop %v947
  %v949 = vmul.f32 %v916, 1.442695
  %v950 = vpow.pop %v949
  %v951 = vmul.f32 %v917, 1.442695
  %v952 = vpow.pop %v951
  %v953 = vmul.f32 %v918, 1.442695
  %v954 = vpow.pop %v953
  %v955 = vmul.f32 %v919, 1.442695
  %v956 = vpow.pop %v955
  %v957 = vmul.f32 %v920, 1.442695
  %v958 = vpow.pop %v957
  %v959 = vmul.f32 %v921, 1.442695
  %v960 = vpow.pop %v959
  %v961 = vmul.f32 %v922, 1.442695
  %v962 = vpow.pop %v961
  %v963 = vmul.f32 %v923, 1.442695
  %v964 = vpow.pop %v963
  %v965 = vmul.f32 %v924, 1.442695
  %v966 = vpow.pop %v965
  %v967 = vmul.f32 %v925, 1.442695
  %v968 = vpow.pop %v967
  %v969 = vmul.f32 %v926, 1.442695
  %v970 = vpow.pop %v969
  %v971 = vmul.f32 %v927, 1.442695
  %v972 = vpow.pop %v971
  %v973 = vmul.f32 %v928, 1.442695
  %v974 = vpow.pop %v973
  %v975 = vmul.f32 %v929, 1.442695
  %v976 = vpow.pop %v975
  %v977 = vmul.f32 %v930, 1.442695
  %v978 = vpow.pop %v977
  %v979 = vmul.f32 %v931, 1.442695
  %v980 = vpow.pop %v979
  %v981 = vmul.f32 %v932, 1.442695
  %v982 = vpow.pop %v981
  %v983 = vmul.f32 %v933, 1.442695
  %v984 = vpow.pop %v983
  %v985 = vmul.f32 %v934, 1.442695
  %v986 = vpow.pop %v985
  %v987 = vmul.f32 %v935, 1.442695
  %v988 = vpow.pop %v987
  %v989 = vmul.f32 %v936, 1.442695
  %v990 = vpow.pop %v989
  %v991 = vmul.f32 %v937, 1.442695
  %v992 = vpow.pop %v991
  %v993 = vmul.f32 %v938, 1.442695
  %v994 = vpow.pop %v993
  %v995 = vmul.f32 %v939, 1.442695
  %v996 = vpow.pop %v995
  %v997 = vmul.f32 %v940, 1.442695
  %v998 = vpow.pop %v997
  %v999 = vmul.f32 %v941, 1.442695
  %v1000 = vpow.pop %v999
  %v1001 = vmul.f32 %v942, 1.442695
  %v1002 = vpow.pop %v1001
  %v1003 = vmul.f32 %v943, 1.442695
  %v1004 = vpow.pop %v1003
  %v1005 = vmul.f32 %v944, 1.442695
  %v1006 = vpow.pop %v1005
  %v1007 = vmul.f32 %v945, 1.442695
  %v1008 = vpow.pop %v1007
  %v1009 = vmul.f32 %v946, 1.442695
  %v1010 = vpow.pop %v1009
  %v1011 = vsel %vm60, %v948, 0.0
  %1012 = vadd.xlane.f32.xlu0 %v1011
  %v1013 = vpop.xlane.xlu0 %1012
  %v1014 = vsel %vm60, %v950, 0.0
  %1015 = vadd.xlane.f32.xlu0 %v1014
  %v1016 = vpop.xlane.xlu0 %1015
  %v1017 = vsel %vm60, %v952, 0.0
  %1018 = vadd.xlane.f32.xlu0 %v1017
  %v1019 = vpop.xlane.xlu0 %1018
  %v1020 = vsel %vm60, %v954, 0.0
  %1021 = vadd.xlane.f32.xlu0 %v1020
  %v1022 = vpop.xlane.xlu0 %1021
  %v1023 = vsel %vm60, %v956, 0.0
  %1024 = vadd.xlane.f32.xlu0 %v1023
  %v1025 = vpop.xlane.xlu0 %1024
  %v1026 = vsel %vm60, %v958, 0.0
  %1027 = vadd.xlane.f32.xlu0 %v1026
  %v1028 = vpop.xlane.xlu0 %1027
  %v1029 = vsel %vm60, %v960, 0.0
  %1030 = vadd.xlane.f32.xlu0 %v1029
  %v1031 = vpop.xlane.xlu0 %1030
  %v1032 = vsel %vm60, %v962, 0.0
  %1033 = vadd.xlane.f32.xlu0 %v1032
  %v1034 = vpop.xlane.xlu0 %1033
  %v1035 = vsel %vm60, %v964, 0.0
  %1036 = vadd.xlane.f32.xlu0 %v1035
  %v1037 = vpop.xlane.xlu0 %1036
  %v1038 = vsel %vm60, %v966, 0.0
  %1039 = vadd.xlane.f32.xlu0 %v1038
  %v1040 = vpop.xlane.xlu0 %1039
  %v1041 = vsel %vm60, %v968, 0.0
  %1042 = vadd.xlane.f32.xlu0 %v1041
  %v1043 = vpop.xlane.xlu0 %1042
  %v1044 = vsel %vm60, %v970, 0.0
  %1045 = vadd.xlane.f32.xlu0 %v1044
  %v1046 = vpop.xlane.xlu0 %1045
  %v1047 = vsel %vm60, %v972, 0.0
  %1048 = vadd.xlane.f32.xlu0 %v1047
  %v1049 = vpop.xlane.xlu0 %1048
  %v1050 = vsel %vm60, %v974, 0.0
  %1051 = vadd.xlane.f32.xlu0 %v1050
  %v1052 = vpop.xlane.xlu0 %1051
  %v1053 = vsel %vm60, %v976, 0.0
  %1054 = vadd.xlane.f32.xlu0 %v1053
  %v1055 = vpop.xlane.xlu0 %1054
  %v1056 = vsel %vm60, %v978, 0.0
  %1057 = vadd.xlane.f32.xlu0 %v1056
  %v1058 = vpop.xlane.xlu0 %1057
  %v1059 = vsel %vm60, %v980, 0.0
  %1060 = vadd.xlane.f32.xlu0 %v1059
  %v1061 = vpop.xlane.xlu0 %1060
  %v1062 = vsel %vm60, %v982, 0.0
  %1063 = vadd.xlane.f32.xlu0 %v1062
  %v1064 = vpop.xlane.xlu0 %1063
  %v1065 = vsel %vm60, %v984, 0.0
  %1066 = vadd.xlane.f32.xlu0 %v1065
  %v1067 = vpop.xlane.xlu0 %1066
  %v1068 = vsel %vm60, %v986, 0.0
  %1069 = vadd.xlane.f32.xlu0 %v1068
  %v1070 = vpop.xlane.xlu0 %1069
  %v1071 = vsel %vm60, %v988, 0.0
  %1072 = vadd.xlane.f32.xlu0 %v1071
  %v1073 = vpop.xlane.xlu0 %1072
  %v1074 = vsel %vm60, %v990, 0.0
  %1075 = vadd.xlane.f32.xlu0 %v1074
  %v1076 = vpop.xlane.xlu0 %1075
  %v1077 = vsel %vm60, %v992, 0.0
  %1078 = vadd.xlane.f32.xlu0 %v1077
  %v1079 = vpop.xlane.xlu0 %1078
  %v1080 = vsel %vm60, %v994, 0.0
  %1081 = vadd.xlane.f32.xlu0 %v1080
  %v1082 = vpop.xlane.xlu0 %1081
  %v1083 = vsel %vm60, %v996, 0.0
  %1084 = vadd.xlane.f32.xlu0 %v1083
  %v1085 = vpop.xlane.xlu0 %1084
  %v1086 = vsel %vm60, %v998, 0.0
  %1087 = vadd.xlane.f32.xlu0 %v1086
  %v1088 = vpop.xlane.xlu0 %1087
  %v1089 = vsel %vm60, %v1000, 0.0
  %1090 = vadd.xlane.f32.xlu0 %v1089
  %v1091 = vpop.xlane.xlu0 %1090
  %v1092 = vsel %vm60, %v1002, 0.0
  %1093 = vadd.xlane.f32.xlu0 %v1092
  %v1094 = vpop.xlane.xlu0 %1093
  %v1095 = vsel %vm60, %v1004, 0.0
  %1096 = vadd.xlane.f32.xlu0 %v1095
  %v1097 = vpop.xlane.xlu0 %1096
  %v1098 = vsel %vm60, %v1006, 0.0
  %1099 = vadd.xlane.f32.xlu0 %v1098
  %v1100 = vpop.xlane.xlu0 %1099
  %v1101 = vsel %vm60, %v1008, 0.0
  %1102 = vadd.xlane.f32.xlu0 %v1101
  %v1103 = vpop.xlane.xlu0 %1102
  %v1104 = vsel %vm60, %v1010, 0.0
  %1105 = vadd.xlane.f32.xlu0 %v1104
  %v1106 = vpop.xlane.xlu0 %1105
  %v1107 = vrcp.pop %v1013
  %v1108 = vrcp.pop %v1016
  %v1109 = vrcp.pop %v1019
  %v1110 = vrcp.pop %v1022
  %v1111 = vrcp.pop %v1025
  %v1112 = vrcp.pop %v1028
  %v1113 = vrcp.pop %v1031
  %v1114 = vrcp.pop %v1034
  %v1115 = vrcp.pop %v1037
  %v1116 = vrcp.pop %v1040
  %v1117 = vrcp.pop %v1043
  %v1118 = vrcp.pop %v1046
  %v1119 = vrcp.pop %v1049
  %v1120 = vrcp.pop %v1052
  %v1121 = vrcp.pop %v1055
  %v1122 = vrcp.pop %v1058
  %v1123 = vrcp.pop %v1061
  %v1124 = vrcp.pop %v1064
  %v1125 = vrcp.pop %v1067
  %v1126 = vrcp.pop %v1070
  %v1127 = vrcp.pop %v1073
  %v1128 = vrcp.pop %v1076
  %v1129 = vrcp.pop %v1079
  %v1130 = vrcp.pop %v1082
  %v1131 = vrcp.pop %v1085
  %v1132 = vrcp.pop %v1088
  %v1133 = vrcp.pop %v1091
  %v1134 = vrcp.pop %v1094
  %v1135 = vrcp.pop %v1097
  %v1136 = vrcp.pop %v1100
  %v1137 = vrcp.pop %v1103
  %v1138 = vrcp.pop %v1106
  %v1139 = vmul.f32 %v948, %v1107
  %v1140 = vmul.f32 %v950, %v1108
  %v1141 = vmul.f32 %v952, %v1109
  %v1142 = vmul.f32 %v954, %v1110
  %v1143 = vmul.f32 %v956, %v1111
  %v1144 = vmul.f32 %v958, %v1112
  %v1145 = vmul.f32 %v960, %v1113
  %v1146 = vmul.f32 %v962, %v1114
  %v1147 = vmul.f32 %v964, %v1115
  %v1148 = vmul.f32 %v966, %v1116
  %v1149 = vmul.f32 %v968, %v1117
  %v1150 = vmul.f32 %v970, %v1118
  %v1151 = vmul.f32 %v972, %v1119
  %v1152 = vmul.f32 %v974, %v1120
  %v1153 = vmul.f32 %v976, %v1121
  %v1154 = vmul.f32 %v978, %v1122
  %v1155 = vmul.f32 %v980, %v1123
  %v1156 = vmul.f32 %v982, %v1124
  %v1157 = vmul.f32 %v984, %v1125
  %v1158 = vmul.f32 %v986, %v1126
  %v1159 = vmul.f32 %v988, %v1127
  %v1160 = vmul.f32 %v990, %v1128
  %v1161 = vmul.f32 %v992, %v1129
  %v1162 = vmul.f32 %v994, %v1130
  %v1163 = vmul.f32 %v996, %v1131
  %v1164 = vmul.f32 %v998, %v1132
  %v1165 = vmul.f32 %v1000, %v1133
  %v1166 = vmul.f32 %v1002, %v1134
  %v1167 = vmul.f32 %v1004, %v1135
  %v1168 = vmul.f32 %v1006, %v1136
  %v1169 = vmul.f32 %v1008, %v1137
  %v1170 = vmul.f32 %v1010, %v1138
  %v1171 = vpack.c.bf16 %v1140, %v1139
  %v1172 = vpack.c.bf16 %v1142, %v1141
  %v1173 = vpack.c.bf16 %v1144, %v1143
  %v1174 = vpack.c.bf16 %v1146, %v1145
  %v1175 = vpack.c.bf16 %v1148, %v1147
  %v1176 = vpack.c.bf16 %v1150, %v1149
  %v1177 = vpack.c.bf16 %v1152, %v1151
  %v1178 = vpack.c.bf16 %v1154, %v1153
  %v1179 = vpack.c.bf16 %v1156, %v1155
  %v1180 = vpack.c.bf16 %v1158, %v1157
  %v1181 = vpack.c.bf16 %v1160, %v1159
  %v1182 = vpack.c.bf16 %v1162, %v1161
  %v1183 = vpack.c.bf16 %v1164, %v1163
  %v1184 = vpack.c.bf16 %v1166, %v1165
  %v1185 = vpack.c.bf16 %v1168, %v1167
  %v1186 = vpack.c.bf16 %v1170, %v1169
  %v1188 = vsel %vm60, %v1171, 0
  %v1191 = vsel %vm60, %v1172, 0
  %v1194 = vsel %vm60, %v1173, 0
  %v1197 = vsel %vm60, %v1174, 0
  %v1200 = vsel %vm60, %v1175, 0
  %v1203 = vsel %vm60, %v1176, 0
  %v1206 = vsel %vm60, %v1177, 0
  %v1209 = vsel %vm60, %v1178, 0
  %v1212 = vsel %vm60, %v1179, 0
  %v1215 = vsel %vm60, %v1180, 0
  %v1218 = vsel %vm60, %v1181, 0
  %v1221 = vsel %vm60, %v1182, 0
  %v1224 = vsel %vm60, %v1183, 0
  %v1227 = vsel %vm60, %v1184, 0
  %v1230 = vsel %vm60, %v1185, 0
  %v1233 = vsel %vm60, %v1186, 0
  %1235 = vmatprep.subr.bf16.mxu0 0
  %1236 = vmatpush1.bf16.msra.mxu0 %v508
  %1237 = vmatprep.subr.bf16.mxu0 0
  %1238 = vmatpush1.bf16.msra.mxu0 %v510
  %1239 = vmatprep.subr.bf16.mxu0 0
  %1240 = vmatpush1.bf16.msra.mxu0 %v512
  %1241 = vmatprep.subr.bf16.mxu0 0
  %1242 = vmatpush1.bf16.msra.mxu0 %v514
  %1243 = vmatprep.subr.bf16.mxu0 0
  %1244 = vmatpush1.bf16.msra.mxu0 0
  %1245 = vmatprep.subr.bf16.mxu0 0
  %1246 = vmatpush1.bf16.msra.mxu0 0
  %1247 = vmatprep.subr.bf16.mxu0 0
  %1248 = vmatpush1.bf16.msra.mxu0 0
  %1249 = vmatprep.subr.bf16.mxu0 0
  %1250 = vmatpush1.bf16.msra.mxu0 0
  %1251 = vmatprep.subr.bf16.mxu0 0
  %1252 = vmatpush1.bf16.msra.mxu0 0
  %1253 = vmatprep.subr.bf16.mxu0 0
  %1254 = vmatpush1.bf16.msra.mxu0 0
  %1255 = vmatprep.subr.bf16.mxu0 0
  %1256 = vmatpush1.bf16.msra.mxu0 0
  %1257 = vmatprep.subr.bf16.mxu0 0
  %1258 = vmatpush1.bf16.msra.mxu0 0
  %1259 = vmatprep.subr.bf16.mxu0 0
  %1260 = vmatpush1.bf16.msra.mxu0 0
  %1261 = vmatprep.subr.bf16.mxu0 0
  %1262 = vmatpush1.bf16.msra.mxu0 0
  %1263 = vmatprep.subr.bf16.mxu0 0
  %1264 = vmatpush1.bf16.msra.mxu0 0
  %1265 = vmatprep.subr.bf16.mxu0 0
  %1266 = vmatpush1.bf16.msra.mxu0 0
  %1267 = vmatprep.mubr.bf16.mxu0 0
  %1268 = vmatmul.mubr.bf16.gmra.mrb[0].mxu0 %v1188
  %v1269 = vpop.f32.mrb[0].mxu0
  %v1270 = vadd.f32 0.0, %v1269
  %v1271 = vpop.f32.mrb[0].mxu0
  %v1272 = vpop.f32.mrb[0].mxu0
  %v1273 = vadd.f32 0.0, %v1272
  %v1274 = vpop.f32.mrb[0].mxu0
  %1275 = vmatprep.mubr.bf16.mxu0 0
  %1276 = vmatmul.mubr.bf16.gmra.mrb[0].mxu0 %v1191
  %v1277 = vpop.f32.mrb[0].mxu0
  %v1278 = vadd.f32 0.0, %v1277
  %v1279 = vpop.f32.mrb[0].mxu0
  %v1280 = vpop.f32.mrb[0].mxu0
  %v1281 = vadd.f32 0.0, %v1280
  %v1282 = vpop.f32.mrb[0].mxu0
  %1283 = vmatprep.mubr.bf16.mxu0 0
  %1284 = vmatmul.mubr.bf16.gmra.mrb[0].mxu0 %v1194
  %v1285 = vpop.f32.mrb[0].mxu0
  %v1286 = vadd.f32 0.0, %v1285
  %v1287 = vpop.f32.mrb[0].mxu0
  %v1288 = vpop.f32.mrb[0].mxu0
  %v1289 = vadd.f32 0.0, %v1288
  %v1290 = vpop.f32.mrb[0].mxu0
  %1291 = vmatprep.mubr.bf16.mxu0 0
  %1292 = vmatmul.mubr.bf16.gmra.mrb[0].mxu0 %v1197
  %v1293 = vpop.f32.mrb[0].mxu0
  %v1294 = vadd.f32 0.0, %v1293
  %v1295 = vpop.f32.mrb[0].mxu0
  %v1296 = vpop.f32.mrb[0].mxu0
  %v1297 = vadd.f32 0.0, %v1296
  %v1298 = vpop.f32.mrb[0].mxu0
  %1299 = vmatprep.mubr.bf16.mxu0 0
  %1300 = vmatmul.mubr.bf16.gmra.mrb[0].mxu0 %v1200
  %v1301 = vpop.f32.mrb[0].mxu0
  %v1302 = vadd.f32 0.0, %v1301
  %v1303 = vpop.f32.mrb[0].mxu0
  %v1304 = vpop.f32.mrb[0].mxu0
  %v1305 = vadd.f32 0.0, %v1304
  %v1306 = vpop.f32.mrb[0].mxu0
  %1307 = vmatprep.mubr.bf16.mxu0 0
  %1308 = vmatmul.mubr.bf16.gmra.mrb[0].mxu0 %v1203
  %v1309 = vpop.f32.mrb[0].mxu0
  %v1310 = vadd.f32 0.0, %v1309
  %v1311 = vpop.f32.mrb[0].mxu0
  %v1312 = vpop.f32.mrb[0].mxu0
  %v1313 = vadd.f32 0.0, %v1312
  %v1314 = vpop.f32.mrb[0].mxu0
  %1315 = vmatprep.mubr.bf16.mxu0 0
  %1316 = vmatmul.mubr.bf16.gmra.mrb[0].mxu0 %v1206
  %v1317 = vpop.f32.mrb[0].mxu0
  %v1318 = vadd.f32 0.0, %v1317
  %v1319 = vpop.f32.mrb[0].mxu0
  %v1320 = vpop.f32.mrb[0].mxu0
  %v1321 = vadd.f32 0.0, %v1320
  %v1322 = vpop.f32.mrb[0].mxu0
  %1323 = vmatprep.mubr.bf16.mxu0 0
  %1324 = vmatmul.mubr.bf16.gmra.mrb[0].mxu0 %v1209
  %v1325 = vpop.f32.mrb[0].mxu0
  %v1326 = vadd.f32 0.0, %v1325
  %v1327 = vpop.f32.mrb[0].mxu0
  %v1328 = vpop.f32.mrb[0].mxu0
  %v1329 = vadd.f32 0.0, %v1328
  %v1330 = vpop.f32.mrb[0].mxu0
  %1331 = vmatprep.mubr.bf16.mxu0 0
  %1332 = vmatmul.mubr.bf16.gmra.mrb[0].mxu0 %v1212
  %v1333 = vpop.f32.mrb[0].mxu0
  %v1334 = vadd.f32 0.0, %v1333
  %v1335 = vpop.f32.mrb[0].mxu0
  %v1336 = vpop.f32.mrb[0].mxu0
  %v1337 = vadd.f32 0.0, %v1336
  %v1338 = vpop.f32.mrb[0].mxu0
  %1339 = vmatprep.mubr.bf16.mxu0 0
  %1340 = vmatmul.mubr.bf16.gmra.mrb[0].mxu0 %v1215
  %v1341 = vpop.f32.mrb[0].mxu0
  %v1342 = vadd.f32 0.0, %v1341
  %v1343 = vpop.f32.mrb[0].mxu0
  %v1344 = vpop.f32.mrb[0].mxu0
  %v1345 = vadd.f32 0.0, %v1344
  %v1346 = vpop.f32.mrb[0].mxu0
  %1347 = vmatprep.mubr.bf16.mxu0 0
  %1348 = vmatmul.mubr.bf16.gmra.mrb[0].mxu0 %v1218
  %v1349 = vpop.f32.mrb[0].mxu0
  %v1350 = vadd.f32 0.0, %v1349
  %v1351 = vpop.f32.mrb[0].mxu0
  %v1352 = vpop.f32.mrb[0].mxu0
  %v1353 = vadd.f32 0.0, %v1352
  %v1354 = vpop.f32.mrb[0].mxu0
  %1355 = vmatprep.mubr.bf16.mxu0 0
  %1356 = vmatmul.mubr.bf16.gmra.mrb[0].mxu0 %v1221
  %v1357 = vpop.f32.mrb[0].mxu0
  %v1358 = vadd.f32 0.0, %v1357
  %v1359 = vpop.f32.mrb[0].mxu0
  %v1360 = vpop.f32.mrb[0].mxu0
  %v1361 = vadd.f32 0.0, %v1360
  %v1362 = vpop.f32.mrb[0].mxu0
  %1363 = vmatprep.mubr.bf16.mxu0 0
  %1364 = vmatmul.mubr.bf16.gmra.mrb[0].mxu0 %v1224
  %v1365 = vpop.f32.mrb[0].mxu0
  %v1366 = vadd.f32 0.0, %v1365
  %v1367 = vpop.f32.mrb[0].mxu0
  %v1368 = vpop.f32.mrb[0].mxu0
  %v1369 = vadd.f32 0.0, %v1368
  %v1370 = vpop.f32.mrb[0].mxu0
  %1371 = vmatprep.mubr.bf16.mxu0 0
  %1372 = vmatmul.mubr.bf16.gmra.mrb[0].mxu0 %v1227
  %v1373 = vpop.f32.mrb[0].mxu0
  %v1374 = vadd.f32 0.0, %v1373
  %v1375 = vpop.f32.mrb[0].mxu0
  %v1376 = vpop.f32.mrb[0].mxu0
  %v1377 = vadd.f32 0.0, %v1376
  %v1378 = vpop.f32.mrb[0].mxu0
  %1379 = vmatprep.mubr.bf16.mxu0 0
  %1380 = vmatmul.mubr.bf16.gmra.mrb[0].mxu0 %v1230
  %v1381 = vpop.f32.mrb[0].mxu0
  %v1382 = vadd.f32 0.0, %v1381
  %v1383 = vpop.f32.mrb[0].mxu0
  %v1384 = vpop.f32.mrb[0].mxu0
  %v1385 = vadd.f32 0.0, %v1384
  %v1386 = vpop.f32.mrb[0].mxu0
  %1387 = vmatprep.mubr.bf16.mxu0 0
  %1388 = vmatmul.mubr.bf16.gmra.mrb[0].mxu0 %v1233
  %v1389 = vpop.f32.mrb[0].mxu0
  %v1390 = vadd.f32 0.0, %v1389
  %v1391 = vpop.f32.mrb[0].mxu0
  %v1392 = vpop.f32.mrb[0].mxu0
  %v1393 = vadd.f32 0.0, %v1392
  %v1394 = vpop.f32.mrb[0].mxu0
  %1395 = vdwg.mxu0
  %v1396 = vmul.f32 %v1270, %v528
  %v1397 = vmul.f32 %v1273, %v528
  %v1398 = vmul.f32 %v1278, %v528
  %v1399 = vmul.f32 %v1281, %v528
  %v1400 = vmul.f32 %v1286, %v528
  %v1401 = vmul.f32 %v1289, %v528
  %v1402 = vmul.f32 %v1294, %v528
  %v1403 = vmul.f32 %v1297, %v528
  %v1404 = vmul.f32 %v1302, %v532
  %v1405 = vmul.f32 %v1305, %v532
  %v1406 = vmul.f32 %v1310, %v532
  %v1407 = vmul.f32 %v1313, %v532
  %v1408 = vmul.f32 %v1318, %v532
  %v1409 = vmul.f32 %v1321, %v532
  %v1410 = vmul.f32 %v1326, %v532
  %v1411 = vmul.f32 %v1329, %v532
  %v1412 = vmul.f32 %v1334, %v536
  %v1413 = vmul.f32 %v1337, %v536
  %v1414 = vmul.f32 %v1342, %v536
  %v1415 = vmul.f32 %v1345, %v536
  %v1416 = vmul.f32 %v1350, %v536
  %v1417 = vmul.f32 %v1353, %v536
  %v1418 = vmul.f32 %v1358, %v536
  %v1419 = vmul.f32 %v1361, %v536
  %v1420 = vmul.f32 %v1366, %v540
  %v1421 = vmul.f32 %v1369, %v540
  %v1422 = vmul.f32 %v1374, %v540
  %v1423 = vmul.f32 %v1377, %v540
  %v1424 = vmul.f32 %v1382, %v540
  %v1425 = vmul.f32 %v1385, %v540
  %v1426 = vmul.f32 %v1390, %v540
  %v1427 = vmul.f32 %v1393, %v540
  %v1428 = vadd.f32 %v1396, %v1404
  %v1429 = vadd.f32 %v1397, %v1405
  %v1430 = vadd.f32 %v1398, %v1406
  %v1431 = vadd.f32 %v1399, %v1407
  %v1432 = vadd.f32 %v1400, %v1408
  %v1433 = vadd.f32 %v1401, %v1409
  %v1434 = vadd.f32 %v1402, %v1410
  %v1435 = vadd.f32 %v1403, %v1411
  %v1436 = vadd.f32 %v1428, %v1412
  %v1437 = vadd.f32 %v1429, %v1413
  %v1438 = vadd.f32 %v1430, %v1414
  %v1439 = vadd.f32 %v1431, %v1415
  %v1440 = vadd.f32 %v1432, %v1416
  %v1441 = vadd.f32 %v1433, %v1417
  %v1442 = vadd.f32 %v1434, %v1418
  %v1443 = vadd.f32 %v1435, %v1419
  %v1444 = vadd.f32 %v1436, %v1420
  %v1445 = vadd.f32 %v1437, %v1421
  %v1446 = vadd.f32 %v1438, %v1422
  %v1447 = vadd.f32 %v1439, %v1423
  %v1448 = vadd.f32 %v1440, %v1424
  %v1449 = vadd.f32 %v1441, %v1425
  %v1450 = vadd.f32 %v1442, %v1426
  %v1451 = vadd.f32 %v1443, %v1427
  %v1452 = vmul.bf16 %v515, %v541
  %v1453 = vmul.bf16 %v517, %v541
  %v1454 = vmul.bf16 %v519, %v541
  %v1455 = vmul.bf16 %v521, %v541
  %v1456 = vmul.bf16 %v515, %v542
  %v1457 = vmul.bf16 %v517, %v542
  %v1458 = vmul.bf16 %v519, %v542
  %v1459 = vmul.bf16 %v521, %v542
  %v1460 = vmul.bf16 %v515, %v543
  %v1461 = vmul.bf16 %v517, %v543
  %v1462 = vmul.bf16 %v519, %v543
  %v1463 = vmul.bf16 %v521, %v543
  %v1464 = vmul.bf16 %v515, %v544
  %v1465 = vmul.bf16 %v517, %v544
  %v1466 = vmul.bf16 %v519, %v544
  %v1467 = vmul.bf16 %v521, %v544
  %1472 = vrot.lane.b32.xlu0 %v515, 64
  %v1473 = vpop.permute.xlu0 %1472
  %1474 = vrot.lane.b32.xlu0 %v517, 64
  %v1475 = vpop.permute.xlu0 %1474
  %1476 = vrot.lane.b32.xlu0 %v519, 64
  %v1477 = vpop.permute.xlu0 %1476
  %1478 = vrot.lane.b32.xlu0 %v521, 64
  %v1479 = vpop.permute.xlu0 %1478
  %v1481 = vsel %vm60, %v1452, 0
  %v1484 = vsel %vm60, %v1453, 0
  %v1487 = vsel %vm60, %v1454, 0
  %v1490 = vsel %vm60, %v1455, 0
  %v1493 = vsel %vm60, %v1456, 0
  %v1496 = vsel %vm60, %v1457, 0
  %v1499 = vsel %vm60, %v1458, 0
  %v1502 = vsel %vm60, %v1459, 0
  %v1505 = vsel %vm60, %v1460, 0
  %v1508 = vsel %vm60, %v1461, 0
  %v1511 = vsel %vm60, %v1462, 0
  %v1514 = vsel %vm60, %v1463, 0
  %v1517 = vsel %vm60, %v1464, 0
  %v1520 = vsel %vm60, %v1465, 0
  %v1523 = vsel %vm60, %v1466, 0
  %v1526 = vsel %vm60, %v1467, 0
  %v1529 = vsel %vm60, %v1473, 0
  %v1532 = vsel %vm60, %v1475, 0
  %v1535 = vsel %vm60, %v1477, 0
  %v1538 = vsel %vm60, %v1479, 0
  %1540 = vmatprep.subr.bf16.mxu0 0
  %1541 = vmatpush1.bf16.xpose.msra.mxu0 %v1529
  %1542 = vmatprep.subr.bf16.mxu0 0
  %1543 = vmatpush1.bf16.xpose.msra.mxu0 %v1532
  %1544 = vmatprep.subr.bf16.mxu0 0
  %1545 = vmatpush1.bf16.xpose.msra.mxu0 %v1535
  %1546 = vmatprep.subr.bf16.mxu0 0
  %1547 = vmatpush1.bf16.xpose.msra.mxu0 %v1538
  %1548 = vmatprep.subr.bf16.mxu0 0
  %1549 = vmatpush1.bf16.xpose.msra.mxu0 0
  %1550 = vmatprep.subr.bf16.mxu0 0
  %1551 = vmatpush1.bf16.xpose.msra.mxu0 0
  %1552 = vmatprep.subr.bf16.mxu0 0
  %1553 = vmatpush1.bf16.xpose.msra.mxu0 0
  %1554 = vmatprep.subr.bf16.mxu0 0
  %1555 = vmatpush1.bf16.xpose.msra.mxu0 0
  %1556 = vmatprep.subr.bf16.mxu0 0
  %1557 = vmatpush1.bf16.xpose.msra.mxu0 0
  %1558 = vmatprep.subr.bf16.mxu0 0
  %1559 = vmatpush1.bf16.xpose.msra.mxu0 0
  %1560 = vmatprep.subr.bf16.mxu0 0
  %1561 = vmatpush1.bf16.xpose.msra.mxu0 0
  %1562 = vmatprep.subr.bf16.mxu0 0
  %1563 = vmatpush1.bf16.xpose.msra.mxu0 0
  %1564 = vmatprep.subr.bf16.mxu0 0
  %1565 = vmatpush1.bf16.xpose.msra.mxu0 0
  %1566 = vmatprep.subr.bf16.mxu0 0
  %1567 = vmatpush1.bf16.xpose.msra.mxu0 0
  %1568 = vmatprep.subr.bf16.mxu0 0
  %1569 = vmatpush1.bf16.xpose.msra.mxu0 0
  %1570 = vmatprep.subr.bf16.mxu0 0
  %1571 = vmatpush1.bf16.xpose.msra.mxu0 0
  %1572 = vmatprep.mubr.bf16.mxu0 0
  %1573 = vmatmul.mubr.bf16.gmra.mrb[0].mxu0 %v1481
  %v1574 = vpop.f32.mrb[0].mxu0
  %v1575 = vadd.f32 %v562, %v1574
  %v1576 = vpop.f32.mrb[0].mxu0
  %v1577 = vpop.f32.mrb[0].mxu0
  %v1578 = vadd.f32 %v563, %v1577
  %v1579 = vpop.f32.mrb[0].mxu0
  %1580 = vmatprep.mubr.bf16.mxu0 0
  %1581 = vmatmul.mubr.bf16.gmra.mrb[0].mxu0 %v1484
  %v1582 = vpop.f32.mrb[0].mxu0
  %v1583 = vadd.f32 %v564, %v1582
  %v1584 = vpop.f32.mrb[0].mxu0
  %v1585 = vpop.f32.mrb[0].mxu0
  %v1586 = vadd.f32 %v565, %v1585
  %v1587 = vpop.f32.mrb[0].mxu0
  %1588 = vmatprep.mubr.bf16.mxu0 0
  %1589 = vmatmul.mubr.bf16.gmra.mrb[0].mxu0 %v1487
  %v1590 = vpop.f32.mrb[0].mxu0
  %v1591 = vadd.f32 %v566, %v1590
  %v1592 = vpop.f32.mrb[0].mxu0
  %v1593 = vpop.f32.mrb[0].mxu0
  %v1594 = vadd.f32 %v567, %v1593
  %v1595 = vpop.f32.mrb[0].mxu0
  %1596 = vmatprep.mubr.bf16.mxu0 0
  %1597 = vmatmul.mubr.bf16.gmra.mrb[0].mxu0 %v1490
  %v1598 = vpop.f32.mrb[0].mxu0
  %v1599 = vadd.f32 %v568, %v1598
  %v1600 = vpop.f32.mrb[0].mxu0
  %v1601 = vpop.f32.mrb[0].mxu0
  %v1602 = vadd.f32 %v569, %v1601
  %v1603 = vpop.f32.mrb[0].mxu0
  %1604 = vmatprep.mubr.bf16.mxu0 0
  %1605 = vmatmul.mubr.bf16.gmra.mrb[0].mxu0 %v1493
  %v1606 = vpop.f32.mrb[0].mxu0
  %v1607 = vadd.f32 %v562, %v1606
  %v1608 = vpop.f32.mrb[0].mxu0
  %v1609 = vpop.f32.mrb[0].mxu0
  %v1610 = vadd.f32 %v563, %v1609
  %v1611 = vpop.f32.mrb[0].mxu0
  %1612 = vmatprep.mubr.bf16.mxu0 0
  %1613 = vmatmul.mubr.bf16.gmra.mrb[0].mxu0 %v1496
  %v1614 = vpop.f32.mrb[0].mxu0
  %v1615 = vadd.f32 %v564, %v1614
  %v1616 = vpop.f32.mrb[0].mxu0
  %v1617 = vpop.f32.mrb[0].mxu0
  %v1618 = vadd.f32 %v565, %v1617
  %v1619 = vpop.f32.mrb[0].mxu0
  %1620 = vmatprep.mubr.bf16.mxu0 0
  %1621 = vmatmul.mubr.bf16.gmra.mrb[0].mxu0 %v1499
  %v1622 = vpop.f32.mrb[0].mxu0
  %v1623 = vadd.f32 %v566, %v1622
  %v1624 = vpop.f32.mrb[0].mxu0
  %v1625 = vpop.f32.mrb[0].mxu0
  %v1626 = vadd.f32 %v567, %v1625
  %v1627 = vpop.f32.mrb[0].mxu0
  %1628 = vmatprep.mubr.bf16.mxu0 0
  %1629 = vmatmul.mubr.bf16.gmra.mrb[0].mxu0 %v1502
  %v1630 = vpop.f32.mrb[0].mxu0
  %v1631 = vadd.f32 %v568, %v1630
  %v1632 = vpop.f32.mrb[0].mxu0
  %v1633 = vpop.f32.mrb[0].mxu0
  %v1634 = vadd.f32 %v569, %v1633
  %v1635 = vpop.f32.mrb[0].mxu0
  %1636 = vmatprep.mubr.bf16.mxu0 0
  %1637 = vmatmul.mubr.bf16.gmra.mrb[0].mxu0 %v1505
  %v1638 = vpop.f32.mrb[0].mxu0
  %v1639 = vadd.f32 %v562, %v1638
  %v1640 = vpop.f32.mrb[0].mxu0
  %v1641 = vpop.f32.mrb[0].mxu0
  %v1642 = vadd.f32 %v563, %v1641
  %v1643 = vpop.f32.mrb[0].mxu0
  %1644 = vmatprep.mubr.bf16.mxu0 0
  %1645 = vmatmul.mubr.bf16.gmra.mrb[0].mxu0 %v1508
  %v1646 = vpop.f32.mrb[0].mxu0
  %v1647 = vadd.f32 %v564, %v1646
  %v1648 = vpop.f32.mrb[0].mxu0
  %v1649 = vpop.f32.mrb[0].mxu0
  %v1650 = vadd.f32 %v565, %v1649
  %v1651 = vpop.f32.mrb[0].mxu0
  %1652 = vmatprep.mubr.bf16.mxu0 0
  %1653 = vmatmul.mubr.bf16.gmra.mrb[0].mxu0 %v1511
  %v1654 = vpop.f32.mrb[0].mxu0
  %v1655 = vadd.f32 %v566, %v1654
  %v1656 = vpop.f32.mrb[0].mxu0
  %v1657 = vpop.f32.mrb[0].mxu0
  %v1658 = vadd.f32 %v567, %v1657
  %v1659 = vpop.f32.mrb[0].mxu0
  %1660 = vmatprep.mubr.bf16.mxu0 0
  %1661 = vmatmul.mubr.bf16.gmra.mrb[0].mxu0 %v1514
  %v1662 = vpop.f32.mrb[0].mxu0
  %v1663 = vadd.f32 %v568, %v1662
  %v1664 = vpop.f32.mrb[0].mxu0
  %v1665 = vpop.f32.mrb[0].mxu0
  %v1666 = vadd.f32 %v569, %v1665
  %v1667 = vpop.f32.mrb[0].mxu0
  %1668 = vmatprep.mubr.bf16.mxu0 0
  %1669 = vmatmul.mubr.bf16.gmra.mrb[0].mxu0 %v1517
  %v1670 = vpop.f32.mrb[0].mxu0
  %v1671 = vadd.f32 %v562, %v1670
  %v1672 = vpop.f32.mrb[0].mxu0
  %v1673 = vpop.f32.mrb[0].mxu0
  %v1674 = vadd.f32 %v563, %v1673
  %v1675 = vpop.f32.mrb[0].mxu0
  %1676 = vmatprep.mubr.bf16.mxu0 0
  %1677 = vmatmul.mubr.bf16.gmra.mrb[0].mxu0 %v1520
  %v1678 = vpop.f32.mrb[0].mxu0
  %v1679 = vadd.f32 %v564, %v1678
  %v1680 = vpop.f32.mrb[0].mxu0
  %v1681 = vpop.f32.mrb[0].mxu0
  %v1682 = vadd.f32 %v565, %v1681
  %v1683 = vpop.f32.mrb[0].mxu0
  %1684 = vmatprep.mubr.bf16.mxu0 0
  %1685 = vmatmul.mubr.bf16.gmra.mrb[0].mxu0 %v1523
  %v1686 = vpop.f32.mrb[0].mxu0
  %v1687 = vadd.f32 %v566, %v1686
  %v1688 = vpop.f32.mrb[0].mxu0
  %v1689 = vpop.f32.mrb[0].mxu0
  %v1690 = vadd.f32 %v567, %v1689
  %v1691 = vpop.f32.mrb[0].mxu0
  %1692 = vmatprep.mubr.bf16.mxu0 0
  %1693 = vmatmul.mubr.bf16.gmra.mrb[0].mxu0 %v1526
  %v1694 = vpop.f32.mrb[0].mxu0
  %v1695 = vadd.f32 %v568, %v1694
  %v1696 = vpop.f32.mrb[0].mxu0
  %v1697 = vpop.f32.mrb[0].mxu0
  %v1698 = vadd.f32 %v569, %v1697
  %v1699 = vpop.f32.mrb[0].mxu0
  %1700 = vdwg.mxu0
  %v1701 = vsel %vm60, %v1575, -inf
  %1702 = vmax.xlane.f32.xlu0 %v1701
  %v1703 = vpop.xlane.xlu0 %1702
  %v1704 = vsel %vm60, %v1578, -inf
  %1705 = vmax.xlane.f32.xlu0 %v1704
  %v1706 = vpop.xlane.xlu0 %1705
  %v1707 = vsel %vm60, %v1583, -inf
  %1708 = vmax.xlane.f32.xlu0 %v1707
  %v1709 = vpop.xlane.xlu0 %1708
  %v1710 = vsel %vm60, %v1586, -inf
  %1711 = vmax.xlane.f32.xlu0 %v1710
  %v1712 = vpop.xlane.xlu0 %1711
  %v1713 = vsel %vm60, %v1591, -inf
  %1714 = vmax.xlane.f32.xlu0 %v1713
  %v1715 = vpop.xlane.xlu0 %1714
  %v1716 = vsel %vm60, %v1594, -inf
  %1717 = vmax.xlane.f32.xlu0 %v1716
  %v1718 = vpop.xlane.xlu0 %1717
  %v1719 = vsel %vm60, %v1599, -inf
  %1720 = vmax.xlane.f32.xlu0 %v1719
  %v1721 = vpop.xlane.xlu0 %1720
  %v1722 = vsel %vm60, %v1602, -inf
  %1723 = vmax.xlane.f32.xlu0 %v1722
  %v1724 = vpop.xlane.xlu0 %1723
  %v1725 = vsel %vm60, %v1607, -inf
  %1726 = vmax.xlane.f32.xlu0 %v1725
  %v1727 = vpop.xlane.xlu0 %1726
  %v1728 = vsel %vm60, %v1610, -inf
  %1729 = vmax.xlane.f32.xlu0 %v1728
  %v1730 = vpop.xlane.xlu0 %1729
  %v1731 = vsel %vm60, %v1615, -inf
  %1732 = vmax.xlane.f32.xlu0 %v1731
  %v1733 = vpop.xlane.xlu0 %1732
  %v1734 = vsel %vm60, %v1618, -inf
  %1735 = vmax.xlane.f32.xlu0 %v1734
  %v1736 = vpop.xlane.xlu0 %1735
  %v1737 = vsel %vm60, %v1623, -inf
  %1738 = vmax.xlane.f32.xlu0 %v1737
  %v1739 = vpop.xlane.xlu0 %1738
  %v1740 = vsel %vm60, %v1626, -inf
  %1741 = vmax.xlane.f32.xlu0 %v1740
  %v1742 = vpop.xlane.xlu0 %1741
  %v1743 = vsel %vm60, %v1631, -inf
  %1744 = vmax.xlane.f32.xlu0 %v1743
  %v1745 = vpop.xlane.xlu0 %1744
  %v1746 = vsel %vm60, %v1634, -inf
  %1747 = vmax.xlane.f32.xlu0 %v1746
  %v1748 = vpop.xlane.xlu0 %1747
  %v1749 = vsel %vm60, %v1639, -inf
  %1750 = vmax.xlane.f32.xlu0 %v1749
  %v1751 = vpop.xlane.xlu0 %1750
  %v1752 = vsel %vm60, %v1642, -inf
  %1753 = vmax.xlane.f32.xlu0 %v1752
  %v1754 = vpop.xlane.xlu0 %1753
  %v1755 = vsel %vm60, %v1647, -inf
  %1756 = vmax.xlane.f32.xlu0 %v1755
  %v1757 = vpop.xlane.xlu0 %1756
  %v1758 = vsel %vm60, %v1650, -inf
  %1759 = vmax.xlane.f32.xlu0 %v1758
  %v1760 = vpop.xlane.xlu0 %1759
  %v1761 = vsel %vm60, %v1655, -inf
  %1762 = vmax.xlane.f32.xlu0 %v1761
  %v1763 = vpop.xlane.xlu0 %1762
  %v1764 = vsel %vm60, %v1658, -inf
  %1765 = vmax.xlane.f32.xlu0 %v1764
  %v1766 = vpop.xlane.xlu0 %1765
  %v1767 = vsel %vm60, %v1663, -inf
  %1768 = vmax.xlane.f32.xlu0 %v1767
  %v1769 = vpop.xlane.xlu0 %1768
  %v1770 = vsel %vm60, %v1666, -inf
  %1771 = vmax.xlane.f32.xlu0 %v1770
  %v1772 = vpop.xlane.xlu0 %1771
  %v1773 = vsel %vm60, %v1671, -inf
  %1774 = vmax.xlane.f32.xlu0 %v1773
  %v1775 = vpop.xlane.xlu0 %1774
  %v1776 = vsel %vm60, %v1674, -inf
  %1777 = vmax.xlane.f32.xlu0 %v1776
  %v1778 = vpop.xlane.xlu0 %1777
  %v1779 = vsel %vm60, %v1679, -inf
  %1780 = vmax.xlane.f32.xlu0 %v1779
  %v1781 = vpop.xlane.xlu0 %1780
  %v1782 = vsel %vm60, %v1682, -inf
  %1783 = vmax.xlane.f32.xlu0 %v1782
  %v1784 = vpop.xlane.xlu0 %1783
  %v1785 = vsel %vm60, %v1687, -inf
  %1786 = vmax.xlane.f32.xlu0 %v1785
  %v1787 = vpop.xlane.xlu0 %1786
  %v1788 = vsel %vm60, %v1690, -inf
  %1789 = vmax.xlane.f32.xlu0 %v1788
  %v1790 = vpop.xlane.xlu0 %1789
  %v1791 = vsel %vm60, %v1695, -inf
  %1792 = vmax.xlane.f32.xlu0 %v1791
  %v1793 = vpop.xlane.xlu0 %1792
  %v1794 = vsel %vm60, %v1698, -inf
  %1795 = vmax.xlane.f32.xlu0 %v1794
  %v1796 = vpop.xlane.xlu0 %1795
  %v1797 = vsub.f32 %v1575, %v1703
  %v1798 = vsub.f32 %v1578, %v1706
  %v1799 = vsub.f32 %v1583, %v1709
  %v1800 = vsub.f32 %v1586, %v1712
  %v1801 = vsub.f32 %v1591, %v1715
  %v1802 = vsub.f32 %v1594, %v1718
  %v1803 = vsub.f32 %v1599, %v1721
  %v1804 = vsub.f32 %v1602, %v1724
  %v1805 = vsub.f32 %v1607, %v1727
  %v1806 = vsub.f32 %v1610, %v1730
  %v1807 = vsub.f32 %v1615, %v1733
  %v1808 = vsub.f32 %v1618, %v1736
  %v1809 = vsub.f32 %v1623, %v1739
  %v1810 = vsub.f32 %v1626, %v1742
  %v1811 = vsub.f32 %v1631, %v1745
  %v1812 = vsub.f32 %v1634, %v1748
  %v1813 = vsub.f32 %v1639, %v1751
  %v1814 = vsub.f32 %v1642, %v1754
  %v1815 = vsub.f32 %v1647, %v1757
  %v1816 = vsub.f32 %v1650, %v1760
  %v1817 = vsub.f32 %v1655, %v1763
  %v1818 = vsub.f32 %v1658, %v1766
  %v1819 = vsub.f32 %v1663, %v1769
  %v1820 = vsub.f32 %v1666, %v1772
  %v1821 = vsub.f32 %v1671, %v1775
  %v1822 = vsub.f32 %v1674, %v1778
  %v1823 = vsub.f32 %v1679, %v1781
  %v1824 = vsub.f32 %v1682, %v1784
  %v1825 = vsub.f32 %v1687, %v1787
  %v1826 = vsub.f32 %v1690, %v1790
  %v1827 = vsub.f32 %v1695, %v1793
  %v1828 = vsub.f32 %v1698, %v1796
  %v1829 = vmul.f32 %v1797, 1.442695
  %v1830 = vpow.pop %v1829
  %v1831 = vmul.f32 %v1798, 1.442695
  %v1832 = vpow.pop %v1831
  %v1833 = vmul.f32 %v1799, 1.442695
  %v1834 = vpow.pop %v1833
  %v1835 = vmul.f32 %v1800, 1.442695
  %v1836 = vpow.pop %v1835
  %v1837 = vmul.f32 %v1801, 1.442695
  %v1838 = vpow.pop %v1837
  %v1839 = vmul.f32 %v1802, 1.442695
  %v1840 = vpow.pop %v1839
  %v1841 = vmul.f32 %v1803, 1.442695
  %v1842 = vpow.pop %v1841
  %v1843 = vmul.f32 %v1804, 1.442695
  %v1844 = vpow.pop %v1843
  %v1845 = vmul.f32 %v1805, 1.442695
  %v1846 = vpow.pop %v1845
  %v1847 = vmul.f32 %v1806, 1.442695
  %v1848 = vpow.pop %v1847
  %v1849 = vmul.f32 %v1807, 1.442695
  %v1850 = vpow.pop %v1849
  %v1851 = vmul.f32 %v1808, 1.442695
  %v1852 = vpow.pop %v1851
  %v1853 = vmul.f32 %v1809, 1.442695
  %v1854 = vpow.pop %v1853
  %v1855 = vmul.f32 %v1810, 1.442695
  %v1856 = vpow.pop %v1855
  %v1857 = vmul.f32 %v1811, 1.442695
  %v1858 = vpow.pop %v1857
  %v1859 = vmul.f32 %v1812, 1.442695
  %v1860 = vpow.pop %v1859
  %v1861 = vmul.f32 %v1813, 1.442695
  %v1862 = vpow.pop %v1861
  %v1863 = vmul.f32 %v1814, 1.442695
  %v1864 = vpow.pop %v1863
  %v1865 = vmul.f32 %v1815, 1.442695
  %v1866 = vpow.pop %v1865
  %v1867 = vmul.f32 %v1816, 1.442695
  %v1868 = vpow.pop %v1867
  %v1869 = vmul.f32 %v1817, 1.442695
  %v1870 = vpow.pop %v1869
  %v1871 = vmul.f32 %v1818, 1.442695
  %v1872 = vpow.pop %v1871
  %v1873 = vmul.f32 %v1819, 1.442695
  %v1874 = vpow.pop %v1873
  %v1875 = vmul.f32 %v1820, 1.442695
  %v1876 = vpow.pop %v1875
  %v1877 = vmul.f32 %v1821, 1.442695
  %v1878 = vpow.pop %v1877
  %v1879 = vmul.f32 %v1822, 1.442695
  %v1880 = vpow.pop %v1879
  %v1881 = vmul.f32 %v1823, 1.442695
  %v1882 = vpow.pop %v1881
  %v1883 = vmul.f32 %v1824, 1.442695
  %v1884 = vpow.pop %v1883
  %v1885 = vmul.f32 %v1825, 1.442695
  %v1886 = vpow.pop %v1885
  %v1887 = vmul.f32 %v1826, 1.442695
  %v1888 = vpow.pop %v1887
  %v1889 = vmul.f32 %v1827, 1.442695
  %v1890 = vpow.pop %v1889
  %v1891 = vmul.f32 %v1828, 1.442695
  %v1892 = vpow.pop %v1891
  %v1893 = vsel %vm60, %v1830, 0.0
  %1894 = vadd.xlane.f32.xlu0 %v1893
  %v1895 = vpop.xlane.xlu0 %1894
  %v1896 = vsel %vm60, %v1832, 0.0
  %1897 = vadd.xlane.f32.xlu0 %v1896
  %v1898 = vpop.xlane.xlu0 %1897
  %v1899 = vsel %vm60, %v1834, 0.0
  %1900 = vadd.xlane.f32.xlu0 %v1899
  %v1901 = vpop.xlane.xlu0 %1900
  %v1902 = vsel %vm60, %v1836, 0.0
  %1903 = vadd.xlane.f32.xlu0 %v1902
  %v1904 = vpop.xlane.xlu0 %1903
  %v1905 = vsel %vm60, %v1838, 0.0
  %1906 = vadd.xlane.f32.xlu0 %v1905
  %v1907 = vpop.xlane.xlu0 %1906
  %v1908 = vsel %vm60, %v1840, 0.0
  %1909 = vadd.xlane.f32.xlu0 %v1908
  %v1910 = vpop.xlane.xlu0 %1909
  %v1911 = vsel %vm60, %v1842, 0.0
  %1912 = vadd.xlane.f32.xlu0 %v1911
  %v1913 = vpop.xlane.xlu0 %1912
  %v1914 = vsel %vm60, %v1844, 0.0
  %1915 = vadd.xlane.f32.xlu0 %v1914
  %v1916 = vpop.xlane.xlu0 %1915
  %v1917 = vsel %vm60, %v1846, 0.0
  %1918 = vadd.xlane.f32.xlu0 %v1917
  %v1919 = vpop.xlane.xlu0 %1918
  %v1920 = vsel %vm60, %v1848, 0.0
  %1921 = vadd.xlane.f32.xlu0 %v1920
  %v1922 = vpop.xlane.xlu0 %1921
  %v1923 = vsel %vm60, %v1850, 0.0
  %1924 = vadd.xlane.f32.xlu0 %v1923
  %v1925 = vpop.xlane.xlu0 %1924
  %v1926 = vsel %vm60, %v1852, 0.0
  %1927 = vadd.xlane.f32.xlu0 %v1926
  %v1928 = vpop.xlane.xlu0 %1927
  %v1929 = vsel %vm60, %v1854, 0.0
  %1930 = vadd.xlane.f32.xlu0 %v1929
  %v1931 = vpop.xlane.xlu0 %1930
  %v1932 = vsel %vm60, %v1856, 0.0
  %1933 = vadd.xlane.f32.xlu0 %v1932
  %v1934 = vpop.xlane.xlu0 %1933
  %v1935 = vsel %vm60, %v1858, 0.0
  %1936 = vadd.xlane.f32.xlu0 %v1935
  %v1937 = vpop.xlane.xlu0 %1936
  %v1938 = vsel %vm60, %v1860, 0.0
  %1939 = vadd.xlane.f32.xlu0 %v1938
  %v1940 = vpop.xlane.xlu0 %1939
  %v1941 = vsel %vm60, %v1862, 0.0
  %1942 = vadd.xlane.f32.xlu0 %v1941
  %v1943 = vpop.xlane.xlu0 %1942
  %v1944 = vsel %vm60, %v1864, 0.0
  %1945 = vadd.xlane.f32.xlu0 %v1944
  %v1946 = vpop.xlane.xlu0 %1945
  %v1947 = vsel %vm60, %v1866, 0.0
  %1948 = vadd.xlane.f32.xlu0 %v1947
  %v1949 = vpop.xlane.xlu0 %1948
  %v1950 = vsel %vm60, %v1868, 0.0
  %1951 = vadd.xlane.f32.xlu0 %v1950
  %v1952 = vpop.xlane.xlu0 %1951
  %v1953 = vsel %vm60, %v1870, 0.0
  %1954 = vadd.xlane.f32.xlu0 %v1953
  %v1955 = vpop.xlane.xlu0 %1954
  %v1956 = vsel %vm60, %v1872, 0.0
  %1957 = vadd.xlane.f32.xlu0 %v1956
  %v1958 = vpop.xlane.xlu0 %1957
  %v1959 = vsel %vm60, %v1874, 0.0
  %1960 = vadd.xlane.f32.xlu0 %v1959
  %v1961 = vpop.xlane.xlu0 %1960
  %v1962 = vsel %vm60, %v1876, 0.0
  %1963 = vadd.xlane.f32.xlu0 %v1962
  %v1964 = vpop.xlane.xlu0 %1963
  %v1965 = vsel %vm60, %v1878, 0.0
  %1966 = vadd.xlane.f32.xlu0 %v1965
  %v1967 = vpop.xlane.xlu0 %1966
  %v1968 = vsel %vm60, %v1880, 0.0
  %1969 = vadd.xlane.f32.xlu0 %v1968
  %v1970 = vpop.xlane.xlu0 %1969
  %v1971 = vsel %vm60, %v1882, 0.0
  %1972 = vadd.xlane.f32.xlu0 %v1971
  %v1973 = vpop.xlane.xlu0 %1972
  %v1974 = vsel %vm60, %v1884, 0.0
  %1975 = vadd.xlane.f32.xlu0 %v1974
  %v1976 = vpop.xlane.xlu0 %1975
  %v1977 = vsel %vm60, %v1886, 0.0
  %1978 = vadd.xlane.f32.xlu0 %v1977
  %v1979 = vpop.xlane.xlu0 %1978
  %v1980 = vsel %vm60, %v1888, 0.0
  %1981 = vadd.xlane.f32.xlu0 %v1980
  %v1982 = vpop.xlane.xlu0 %1981
  %v1983 = vsel %vm60, %v1890, 0.0
  %1984 = vadd.xlane.f32.xlu0 %v1983
  %v1985 = vpop.xlane.xlu0 %1984
  %v1986 = vsel %vm60, %v1892, 0.0
  %1987 = vadd.xlane.f32.xlu0 %v1986
  %v1988 = vpop.xlane.xlu0 %1987
  %v1989 = vrcp.pop %v1895
  %v1990 = vrcp.pop %v1898
  %v1991 = vrcp.pop %v1901
  %v1992 = vrcp.pop %v1904
  %v1993 = vrcp.pop %v1907
  %v1994 = vrcp.pop %v1910
  %v1995 = vrcp.pop %v1913
  %v1996 = vrcp.pop %v1916
  %v1997 = vrcp.pop %v1919
  %v1998 = vrcp.pop %v1922
  %v1999 = vrcp.pop %v1925
  %v2000 = vrcp.pop %v1928
  %v2001 = vrcp.pop %v1931
  %v2002 = vrcp.pop %v1934
  %v2003 = vrcp.pop %v1937
  %v2004 = vrcp.pop %v1940
  %v2005 = vrcp.pop %v1943
  %v2006 = vrcp.pop %v1946
  %v2007 = vrcp.pop %v1949
  %v2008 = vrcp.pop %v1952
  %v2009 = vrcp.pop %v1955
  %v2010 = vrcp.pop %v1958
  %v2011 = vrcp.pop %v1961
  %v2012 = vrcp.pop %v1964
  %v2013 = vrcp.pop %v1967
  %v2014 = vrcp.pop %v1970
  %v2015 = vrcp.pop %v1973
  %v2016 = vrcp.pop %v1976
  %v2017 = vrcp.pop %v1979
  %v2018 = vrcp.pop %v1982
  %v2019 = vrcp.pop %v1985
  %v2020 = vrcp.pop %v1988
  %v2021 = vmul.f32 %v1830, %v1989
  %v2022 = vmul.f32 %v1832, %v1990
  %v2023 = vmul.f32 %v1834, %v1991
  %v2024 = vmul.f32 %v1836, %v1992
  %v2025 = vmul.f32 %v1838, %v1993
  %v2026 = vmul.f32 %v1840, %v1994
  %v2027 = vmul.f32 %v1842, %v1995
  %v2028 = vmul.f32 %v1844, %v1996
  %v2029 = vmul.f32 %v1846, %v1997
  %v2030 = vmul.f32 %v1848, %v1998
  %v2031 = vmul.f32 %v1850, %v1999
  %v2032 = vmul.f32 %v1852, %v2000
  %v2033 = vmul.f32 %v1854, %v2001
  %v2034 = vmul.f32 %v1856, %v2002
  %v2035 = vmul.f32 %v1858, %v2003
  %v2036 = vmul.f32 %v1860, %v2004
  %v2037 = vmul.f32 %v1862, %v2005
  %v2038 = vmul.f32 %v1864, %v2006
  %v2039 = vmul.f32 %v1866, %v2007
  %v2040 = vmul.f32 %v1868, %v2008
  %v2041 = vmul.f32 %v1870, %v2009
  %v2042 = vmul.f32 %v1872, %v2010
  %v2043 = vmul.f32 %v1874, %v2011
  %v2044 = vmul.f32 %v1876, %v2012
  %v2045 = vmul.f32 %v1878, %v2013
  %v2046 = vmul.f32 %v1880, %v2014
  %v2047 = vmul.f32 %v1882, %v2015
  %v2048 = vmul.f32 %v1884, %v2016
  %v2049 = vmul.f32 %v1886, %v2017
  %v2050 = vmul.f32 %v1888, %v2018
  %v2051 = vmul.f32 %v1890, %v2019
  %v2052 = vmul.f32 %v1892, %v2020
  %v2053 = vpack.c.bf16 %v2022, %v2021
  %v2054 = vpack.c.bf16 %v2024, %v2023
  %v2055 = vpack.c.bf16 %v2026, %v2025
  %v2056 = vpack.c.bf16 %v2028, %v2027
  %v2057 = vpack.c.bf16 %v2030, %v2029
  %v2058 = vpack.c.bf16 %v2032, %v2031
  %v2059 = vpack.c.bf16 %v2034, %v2033
  %v2060 = vpack.c.bf16 %v2036, %v2035
  %v2061 = vpack.c.bf16 %v2038, %v2037
  %v2062 = vpack.c.bf16 %v2040, %v2039
  %v2063 = vpack.c.bf16 %v2042, %v2041
  %v2064 = vpack.c.bf16 %v2044, %v2043
  %v2065 = vpack.c.bf16 %v2046, %v2045
  %v2066 = vpack.c.bf16 %v2048, %v2047
  %v2067 = vpack.c.bf16 %v2050, %v2049
  %v2068 = vpack.c.bf16 %v2052, %v2051
  %v2070 = vsel %vm60, %v2053, 0
  %v2073 = vsel %vm60, %v2054, 0
  %v2076 = vsel %vm60, %v2055, 0
  %v2079 = vsel %vm60, %v2056, 0
  %v2082 = vsel %vm60, %v2057, 0
  %v2085 = vsel %vm60, %v2058, 0
  %v2088 = vsel %vm60, %v2059, 0
  %v2091 = vsel %vm60, %v2060, 0
  %v2094 = vsel %vm60, %v2061, 0
  %v2097 = vsel %vm60, %v2062, 0
  %v2100 = vsel %vm60, %v2063, 0
  %v2103 = vsel %vm60, %v2064, 0
  %v2106 = vsel %vm60, %v2065, 0
  %v2109 = vsel %vm60, %v2066, 0
  %v2112 = vsel %vm60, %v2067, 0
  %v2115 = vsel %vm60, %v2068, 0
  %2117 = vmatprep.subr.bf16.mxu0 0
  %2118 = vmatpush1.bf16.msra.mxu0 %v516
  %2119 = vmatprep.subr.bf16.mxu0 0
  %2120 = vmatpush1.bf16.msra.mxu0 %v518
  %2121 = vmatprep.subr.bf16.mxu0 0
  %2122 = vmatpush1.bf16.msra.mxu0 %v520
  %2123 = vmatprep.subr.bf16.mxu0 0
  %2124 = vmatpush1.bf16.msra.mxu0 %v522
  %2125 = vmatprep.subr.bf16.mxu0 0
  %2126 = vmatpush1.bf16.msra.mxu0 0
  %2127 = vmatprep.subr.bf16.mxu0 0
  %2128 = vmatpush1.bf16.msra.mxu0 0
  %2129 = vmatprep.subr.bf16.mxu0 0
  %2130 = vmatpush1.bf16.msra.mxu0 0
  %2131 = vmatprep.subr.bf16.mxu0 0
  %2132 = vmatpush1.bf16.msra.mxu0 0
  %2133 = vmatprep.subr.bf16.mxu0 0
  %2134 = vmatpush1.bf16.msra.mxu0 0
  %2135 = vmatprep.subr.bf16.mxu0 0
  %2136 = vmatpush1.bf16.msra.mxu0 0
  %2137 = vmatprep.subr.bf16.mxu0 0
  %2138 = vmatpush1.bf16.msra.mxu0 0
  %2139 = vmatprep.subr.bf16.mxu0 0
  %2140 = vmatpush1.bf16.msra.mxu0 0
  %2141 = vmatprep.subr.bf16.mxu0 0
  %2142 = vmatpush1.bf16.msra.mxu0 0
  %2143 = vmatprep.subr.bf16.mxu0 0
  %2144 = vmatpush1.bf16.msra.mxu0 0
  %2145 = vmatprep.subr.bf16.mxu0 0
  %2146 = vmatpush1.bf16.msra.mxu0 0
  %2147 = vmatprep.subr.bf16.mxu0 0
  %2148 = vmatpush1.bf16.msra.mxu0 0
  %2149 = vmatprep.mubr.bf16.mxu0 0
  %2150 = vmatmul.mubr.bf16.gmra.mrb[0].mxu0 %v2070
  %v2151 = vpop.f32.mrb[0].mxu0
  %v2152 = vadd.f32 0.0, %v2151
  %v2153 = vpop.f32.mrb[0].mxu0
  %v2154 = vpop.f32.mrb[0].mxu0
  %v2155 = vadd.f32 0.0, %v2154
  %v2156 = vpop.f32.mrb[0].mxu0
  %2157 = vmatprep.mubr.bf16.mxu0 0
  %2158 = vmatmul.mubr.bf16.gmra.mrb[0].mxu0 %v2073
  %v2159 = vpop.f32.mrb[0].mxu0
  %v2160 = vadd.f32 0.0, %v2159
  %v2161 = vpop.f32.mrb[0].mxu0
  %v2162 = vpop.f32.mrb[0].mxu0
  %v2163 = vadd.f32 0.0, %v2162
  %v2164 = vpop.f32.mrb[0].mxu0
  %2165 = vmatprep.mubr.bf16.mxu0 0
  %2166 = vmatmul.mubr.bf16.gmra.mrb[0].mxu0 %v2076
  %v2167 = vpop.f32.mrb[0].mxu0
  %v2168 = vadd.f32 0.0, %v2167
  %v2169 = vpop.f32.mrb[0].mxu0
  %v2170 = vpop.f32.mrb[0].mxu0
  %v2171 = vadd.f32 0.0, %v2170
  %v2172 = vpop.f32.mrb[0].mxu0
  %2173 = vmatprep.mubr.bf16.mxu0 0
  %2174 = vmatmul.mubr.bf16.gmra.mrb[0].mxu0 %v2079
  %v2175 = vpop.f32.mrb[0].mxu0
  %v2176 = vadd.f32 0.0, %v2175
  %v2177 = vpop.f32.mrb[0].mxu0
  %v2178 = vpop.f32.mrb[0].mxu0
  %v2179 = vadd.f32 0.0, %v2178
  %v2180 = vpop.f32.mrb[0].mxu0
  %2181 = vmatprep.mubr.bf16.mxu0 0
  %2182 = vmatmul.mubr.bf16.gmra.mrb[0].mxu0 %v2082
  %v2183 = vpop.f32.mrb[0].mxu0
  %v2184 = vadd.f32 0.0, %v2183
  %v2185 = vpop.f32.mrb[0].mxu0
  %v2186 = vpop.f32.mrb[0].mxu0
  %v2187 = vadd.f32 0.0, %v2186
  %v2188 = vpop.f32.mrb[0].mxu0
  %2189 = vmatprep.mubr.bf16.mxu0 0
  %2190 = vmatmul.mubr.bf16.gmra.mrb[0].mxu0 %v2085
  %v2191 = vpop.f32.mrb[0].mxu0
  %v2192 = vadd.f32 0.0, %v2191
  %v2193 = vpop.f32.mrb[0].mxu0
  %v2194 = vpop.f32.mrb[0].mxu0
  %v2195 = vadd.f32 0.0, %v2194
  %v2196 = vpop.f32.mrb[0].mxu0
  %2197 = vmatprep.mubr.bf16.mxu0 0
  %2198 = vmatmul.mubr.bf16.gmra.mrb[0].mxu0 %v2088
  %v2199 = vpop.f32.mrb[0].mxu0
  %v2200 = vadd.f32 0.0, %v2199
  %v2201 = vpop.f32.mrb[0].mxu0
  %v2202 = vpop.f32.mrb[0].mxu0
  %v2203 = vadd.f32 0.0, %v2202
  %v2204 = vpop.f32.mrb[0].mxu0
  %2205 = vmatprep.mubr.bf16.mxu0 0
  %2206 = vmatmul.mubr.bf16.gmra.mrb[0].mxu0 %v2091
  %v2207 = vpop.f32.mrb[0].mxu0
  %v2208 = vadd.f32 0.0, %v2207
  %v2209 = vpop.f32.mrb[0].mxu0
  %v2210 = vpop.f32.mrb[0].mxu0
  %v2211 = vadd.f32 0.0, %v2210
  %v2212 = vpop.f32.mrb[0].mxu0
  %2213 = vmatprep.mubr.bf16.mxu0 0
  %2214 = vmatmul.mubr.bf16.gmra.mrb[0].mxu0 %v2094
  %v2215 = vpop.f32.mrb[0].mxu0
  %v2216 = vadd.f32 0.0, %v2215
  %v2217 = vpop.f32.mrb[0].mxu0
  %v2218 = vpop.f32.mrb[0].mxu0
  %v2219 = vadd.f32 0.0, %v2218
  %v2220 = vpop.f32.mrb[0].mxu0
  %2221 = vmatprep.mubr.bf16.mxu0 0
  %2222 = vmatmul.mubr.bf16.gmra.mrb[0].mxu0 %v2097
  %v2223 = vpop.f32.mrb[0].mxu0
  %v2224 = vadd.f32 0.0, %v2223
  %v2225 = vpop.f32.mrb[0].mxu0
  %v2226 = vpop.f32.mrb[0].mxu0
  %v2227 = vadd.f32 0.0, %v2226
  %v2228 = vpop.f32.mrb[0].mxu0
  %2229 = vmatprep.mubr.bf16.mxu0 0
  %2230 = vmatmul.mubr.bf16.gmra.mrb[0].mxu0 %v2100
  %v2231 = vpop.f32.mrb[0].mxu0
  %v2232 = vadd.f32 0.0, %v2231
  %v2233 = vpop.f32.mrb[0].mxu0
  %v2234 = vpop.f32.mrb[0].mxu0
  %v2235 = vadd.f32 0.0, %v2234
  %v2236 = vpop.f32.mrb[0].mxu0
  %2237 = vmatprep.mubr.bf16.mxu0 0
  %2238 = vmatmul.mubr.bf16.gmra.mrb[0].mxu0 %v2103
  %v2239 = vpop.f32.mrb[0].mxu0
  %v2240 = vadd.f32 0.0, %v2239
  %v2241 = vpop.f32.mrb[0].mxu0
  %v2242 = vpop.f32.mrb[0].mxu0
  %v2243 = vadd.f32 0.0, %v2242
  %v2244 = vpop.f32.mrb[0].mxu0
  %2245 = vmatprep.mubr.bf16.mxu0 0
  %2246 = vmatmul.mubr.bf16.gmra.mrb[0].mxu0 %v2106
  %v2247 = vpop.f32.mrb[0].mxu0
  %v2248 = vadd.f32 0.0, %v2247
  %v2249 = vpop.f32.mrb[0].mxu0
  %v2250 = vpop.f32.mrb[0].mxu0
  %v2251 = vadd.f32 0.0, %v2250
  %v2252 = vpop.f32.mrb[0].mxu0
  %2253 = vmatprep.mubr.bf16.mxu0 0
  %2254 = vmatmul.mubr.bf16.gmra.mrb[0].mxu0 %v2109
  %v2255 = vpop.f32.mrb[0].mxu0
  %v2256 = vadd.f32 0.0, %v2255
  %v2257 = vpop.f32.mrb[0].mxu0
  %v2258 = vpop.f32.mrb[0].mxu0
  %v2259 = vadd.f32 0.0, %v2258
  %v2260 = vpop.f32.mrb[0].mxu0
  %2261 = vmatprep.mubr.bf16.mxu0 0
  %2262 = vmatmul.mubr.bf16.gmra.mrb[0].mxu0 %v2112
  %v2263 = vpop.f32.mrb[0].mxu0
  %v2264 = vadd.f32 0.0, %v2263
  %v2265 = vpop.f32.mrb[0].mxu0
  %v2266 = vpop.f32.mrb[0].mxu0
  %v2267 = vadd.f32 0.0, %v2266
  %v2268 = vpop.f32.mrb[0].mxu0
  %2269 = vmatprep.mubr.bf16.mxu0 0
  %2270 = vmatmul.mubr.bf16.gmra.mrb[0].mxu0 %v2115
  %v2271 = vpop.f32.mrb[0].mxu0
  %v2272 = vadd.f32 0.0, %v2271
  %v2273 = vpop.f32.mrb[0].mxu0
  %v2274 = vpop.f32.mrb[0].mxu0
  %v2275 = vadd.f32 0.0, %v2274
  %v2276 = vpop.f32.mrb[0].mxu0
  %2277 = vdwg.mxu0
  %v2278 = vmul.f32 %v2152, %v528
  %v2279 = vmul.f32 %v2155, %v528
  %v2280 = vmul.f32 %v2160, %v528
  %v2281 = vmul.f32 %v2163, %v528
  %v2282 = vmul.f32 %v2168, %v528
  %v2283 = vmul.f32 %v2171, %v528
  %v2284 = vmul.f32 %v2176, %v528
  %v2285 = vmul.f32 %v2179, %v528
  %v2286 = vmul.f32 %v2184, %v532
  %v2287 = vmul.f32 %v2187, %v532
  %v2288 = vmul.f32 %v2192, %v532
  %v2289 = vmul.f32 %v2195, %v532
  %v2290 = vmul.f32 %v2200, %v532
  %v2291 = vmul.f32 %v2203, %v532
  %v2292 = vmul.f32 %v2208, %v532
  %v2293 = vmul.f32 %v2211, %v532
  %v2294 = vmul.f32 %v2216, %v536
  %v2295 = vmul.f32 %v2219, %v536
  %v2296 = vmul.f32 %v2224, %v536
  %v2297 = vmul.f32 %v2227, %v536
  %v2298 = vmul.f32 %v2232, %v536
  %v2299 = vmul.f32 %v2235, %v536
  %v2300 = vmul.f32 %v2240, %v536
  %v2301 = vmul.f32 %v2243, %v536
  %v2302 = vmul.f32 %v2248, %v540
  %v2303 = vmul.f32 %v2251, %v540
  %v2304 = vmul.f32 %v2256, %v540
  %v2305 = vmul.f32 %v2259, %v540
  %v2306 = vmul.f32 %v2264, %v540
  %v2307 = vmul.f32 %v2267, %v540
  %v2308 = vmul.f32 %v2272, %v540
  %v2309 = vmul.f32 %v2275, %v540
  %v2310 = vadd.f32 %v2278, %v2286
  %v2311 = vadd.f32 %v2279, %v2287
  %v2312 = vadd.f32 %v2280, %v2288
  %v2313 = vadd.f32 %v2281, %v2289
  %v2314 = vadd.f32 %v2282, %v2290
  %v2315 = vadd.f32 %v2283, %v2291
  %v2316 = vadd.f32 %v2284, %v2292
  %v2317 = vadd.f32 %v2285, %v2293
  %v2318 = vadd.f32 %v2310, %v2294
  %v2319 = vadd.f32 %v2311, %v2295
  %v2320 = vadd.f32 %v2312, %v2296
  %v2321 = vadd.f32 %v2313, %v2297
  %v2322 = vadd.f32 %v2314, %v2298
  %v2323 = vadd.f32 %v2315, %v2299
  %v2324 = vadd.f32 %v2316, %v2300
  %v2325 = vadd.f32 %v2317, %v2301
  %v2326 = vadd.f32 %v2318, %v2302
  %v2327 = vadd.f32 %v2319, %v2303
  %v2328 = vadd.f32 %v2320, %v2304
  %v2329 = vadd.f32 %v2321, %v2305
  %v2330 = vadd.f32 %v2322, %v2306
  %v2331 = vadd.f32 %v2323, %v2307
  %v2332 = vadd.f32 %v2324, %v2308
  %v2333 = vadd.f32 %v2325, %v2309
  %v2334 = vpack.c.bf16 %v1445, %v1444
  %v2335 = vpack.c.bf16 %v1447, %v1446
  %v2336 = vpack.c.bf16 %v1449, %v1448
  %v2337 = vpack.c.bf16 %v1451, %v1450
  %v2338 = vpack.c.bf16 %v2327, %v2326
  %v2339 = vpack.c.bf16 %v2329, %v2328
  %v2340 = vpack.c.bf16 %v2331, %v2330
  %v2341 = vpack.c.bf16 %v2333, %v2332
  %v2342 = vld [vmem:[%s4] sm:$0xf]
  %v2343 = vld [vmem:[%s4 + $0x4] sm:$0xf]
  %v2344 = vld [vmem:[%s4 + $0x8] sm:$0xf]
  %v2345 = vld [vmem:[%s4 + $0xc] sm:$0xf]
  %v2346 = vld [vmem:[%s4 + $0x10] sm:$0xf]
  %v2347 = vld [vmem:[%s4 + $0x14] sm:$0xf]
  %v2348 = vld [vmem:[%s4 + $0x18] sm:$0xf]
  %v2349 = vld [vmem:[%s4 + $0x1c] sm:$0xf]
  %v2350 = vld [vmem:[%s5] sm:$0x1]
  %v2352 = vlaneseq
  %v2353 = vshrl.u32 %v2352, 7
  %v2354 = vsub.s32 0, %v2353
  %v2355 = vrot.slane %v2350, %v2354
  %v2365 = vunpack.c.l.b16 %v2342
  %v2366 = vunpack.c.l.b16 %v2343
  %v2367 = vunpack.c.l.b16 %v2344
  %v2368 = vunpack.c.l.b16 %v2345
  %v2369 = vunpack.c.l.b16 %v2346
  %v2370 = vunpack.c.l.b16 %v2347
  %v2371 = vunpack.c.l.b16 %v2348
  %v2372 = vunpack.c.l.b16 %v2349
  %v2373 = vpack.c.b16 %v2366, %v2365
  %v2374 = vpack.c.b16 %v2368, %v2367
  %v2375 = vpack.c.b16 %v2370, %v2369
  %v2376 = vpack.c.b16 %v2372, %v2371
  %v2382 = vsel %vm60, %v2334, 0
  %v2385 = vsel %vm60, %v2335, 0
  %v2388 = vsel %vm60, %v2336, 0
  %v2391 = vsel %vm60, %v2337, 0
  %v2394 = vsel %vm60, %v2338, 0
  %v2397 = vsel %vm60, %v2339, 0
  %v2400 = vsel %vm60, %v2340, 0
  %v2403 = vsel %vm60, %v2341, 0
  %2405 = vmatprep.subr.bf16.mxu0 0
  %2406 = vmatpush1.bf16.msra.mxu0 %v2373
  %2407 = vmatprep.subr.bf16.mxu0 0
  %2408 = vmatpush1.bf16.msra.mxu0 %v2374
  %2409 = vmatprep.subr.bf16.mxu0 0
  %2410 = vmatpush1.bf16.msra.mxu0 %v2375
  %2411 = vmatprep.subr.bf16.mxu0 0
  %2412 = vmatpush1.bf16.msra.mxu0 %v2376
  %2413 = vmatprep.subr.bf16.mxu0 0
  %2414 = vmatpush1.bf16.msra.mxu0 0
  %2415 = vmatprep.subr.bf16.mxu0 0
  %2416 = vmatpush1.bf16.msra.mxu0 0
  %2417 = vmatprep.subr.bf16.mxu0 0
  %2418 = vmatpush1.bf16.msra.mxu0 0
  %2419 = vmatprep.subr.bf16.mxu0 0
  %2420 = vmatpush1.bf16.msra.mxu0 0
  %2421 = vmatprep.subr.bf16.mxu0 0
  %2422 = vmatpush1.bf16.msra.mxu0 0
  %2423 = vmatprep.subr.bf16.mxu0 0
  %2424 = vmatpush1.bf16.msra.mxu0 0
  %2425 = vmatprep.subr.bf16.mxu0 0
  %2426 = vmatpush1.bf16.msra.mxu0 0
  %2427 = vmatprep.subr.bf16.mxu0 0
  %2428 = vmatpush1.bf16.msra.mxu0 0
  %2429 = vmatprep.subr.bf16.mxu0 0
  %2430 = vmatpush1.bf16.msra.mxu0 0
  %2431 = vmatprep.subr.bf16.mxu0 0
  %2432 = vmatpush1.bf16.msra.mxu0 0
  %2433 = vmatprep.subr.bf16.mxu0 0
  %2434 = vmatpush1.bf16.msra.mxu0 0
  %2435 = vmatprep.subr.bf16.mxu0 0
  %2436 = vmatpush1.bf16.msra.mxu0 0
  %2437 = vmatprep.mubr.bf16.mxu0 0
  %2438 = vmatmul.mubr.bf16.gmra.mrb[0].mxu0 %v2382
  %v2439 = vpop.f32.mrb[0].mxu0
  %v2440 = vadd.f32 %v2355, %v2439
  %v2441 = vpop.f32.mrb[0].mxu0
  %v2442 = vpop.f32.mrb[0].mxu0
  %v2443 = vadd.f32 %v2355, %v2442
  %v2444 = vpop.f32.mrb[0].mxu0
  %2445 = vmatprep.mubr.bf16.mxu0 0
  %2446 = vmatmul.mubr.bf16.gmra.mrb[0].mxu0 %v2385
  %v2447 = vpop.f32.mrb[0].mxu0
  %v2448 = vadd.f32 %v2355, %v2447
  %v2449 = vpop.f32.mrb[0].mxu0
  %v2450 = vpop.f32.mrb[0].mxu0
  %v2451 = vadd.f32 %v2355, %v2450
  %v2452 = vpop.f32.mrb[0].mxu0
  %2453 = vmatprep.mubr.bf16.mxu0 0
  %2454 = vmatmul.mubr.bf16.gmra.mrb[0].mxu0 %v2388
  %v2455 = vpop.f32.mrb[0].mxu0
  %v2456 = vadd.f32 %v2355, %v2455
  %v2457 = vpop.f32.mrb[0].mxu0
  %v2458 = vpop.f32.mrb[0].mxu0
  %v2459 = vadd.f32 %v2355, %v2458
  %v2460 = vpop.f32.mrb[0].mxu0
  %2461 = vmatprep.mubr.bf16.mxu0 0
  %2462 = vmatmul.mubr.bf16.gmra.mrb[0].mxu0 %v2391
  %v2463 = vpop.f32.mrb[0].mxu0
  %v2464 = vadd.f32 %v2355, %v2463
  %v2465 = vpop.f32.mrb[0].mxu0
  %v2466 = vpop.f32.mrb[0].mxu0
  %v2467 = vadd.f32 %v2355, %v2466
  %v2468 = vpop.f32.mrb[0].mxu0
  %2469 = vmatprep.mubr.bf16.mxu0 0
  %2470 = vmatmul.mubr.bf16.gmra.mrb[0].mxu0 %v2394
  %v2471 = vpop.f32.mrb[0].mxu0
  %v2472 = vadd.f32 %v2355, %v2471
  %v2473 = vpop.f32.mrb[0].mxu0
  %v2474 = vpop.f32.mrb[0].mxu0
  %v2475 = vadd.f32 %v2355, %v2474
  %v2476 = vpop.f32.mrb[0].mxu0
  %2477 = vmatprep.mubr.bf16.mxu0 0
  %2478 = vmatmul.mubr.bf16.gmra.mrb[0].mxu0 %v2397
  %v2479 = vpop.f32.mrb[0].mxu0
  %v2480 = vadd.f32 %v2355, %v2479
  %v2481 = vpop.f32.mrb[0].mxu0
  %v2482 = vpop.f32.mrb[0].mxu0
  %v2483 = vadd.f32 %v2355, %v2482
  %v2484 = vpop.f32.mrb[0].mxu0
  %2485 = vmatprep.mubr.bf16.mxu0 0
  %2486 = vmatmul.mubr.bf16.gmra.mrb[0].mxu0 %v2400
  %v2487 = vpop.f32.mrb[0].mxu0
  %v2488 = vadd.f32 %v2355, %v2487
  %v2489 = vpop.f32.mrb[0].mxu0
  %v2490 = vpop.f32.mrb[0].mxu0
  %v2491 = vadd.f32 %v2355, %v2490
  %v2492 = vpop.f32.mrb[0].mxu0
  %2493 = vmatprep.mubr.bf16.mxu0 0
  %2494 = vmatmul.mubr.bf16.gmra.mrb[0].mxu0 %v2403
  %v2495 = vpop.f32.mrb[0].mxu0
  %v2496 = vadd.f32 %v2355, %v2495
  %v2497 = vpop.f32.mrb[0].mxu0
  %v2498 = vpop.f32.mrb[0].mxu0
  %v2499 = vadd.f32 %v2355, %v2498
  %v2500 = vpop.f32.mrb[0].mxu0
  %2501 = vdwg.mxu0
  %v2502 = vadd.f32 %v42, %v2440
  %v2503 = vadd.f32 %v43, %v2443
  %v2504 = vadd.f32 %v44, %v2448
  %v2505 = vadd.f32 %v45, %v2451
  %v2506 = vadd.f32 %v46, %v2456
  %v2507 = vadd.f32 %v47, %v2459
  %v2508 = vadd.f32 %v48, %v2464
  %v2509 = vadd.f32 %v49, %v2467
  %v2510 = vadd.f32 %v50, %v2472
  %v2511 = vadd.f32 %v51, %v2475
  %v2512 = vadd.f32 %v52, %v2480
  %v2513 = vadd.f32 %v53, %v2483
  %v2514 = vadd.f32 %v54, %v2488
  %v2515 = vadd.f32 %v55, %v2491
  %v2516 = vadd.f32 %v56, %v2496
  %v2517 = vadd.f32 %v57, %v2499
  %v2518 = vld [vmem:[%s6] sm:$0x1]
  %v2519 = vld [vmem:[%s7] sm:$0x1]
  %v2520 = vsel %vm60, %v2502, 0.0
  %2521 = vadd.xlane.f32.xlu0 %v2520
  %v2522 = vpop.xlane.xlu0 %2521
  %v2523 = vsel %vm60, %v2503, 0.0
  %2524 = vadd.xlane.f32.xlu0 %v2523
  %v2525 = vpop.xlane.xlu0 %2524
  %v2526 = vsel %vm60, %v2504, 0.0
  %2527 = vadd.xlane.f32.xlu0 %v2526
  %v2528 = vpop.xlane.xlu0 %2527
  %v2529 = vsel %vm60, %v2505, 0.0
  %2530 = vadd.xlane.f32.xlu0 %v2529
  %v2531 = vpop.xlane.xlu0 %2530
  %v2532 = vsel %vm60, %v2506, 0.0
  %2533 = vadd.xlane.f32.xlu0 %v2532
  %v2534 = vpop.xlane.xlu0 %2533
  %v2535 = vsel %vm60, %v2507, 0.0
  %2536 = vadd.xlane.f32.xlu0 %v2535
  %v2537 = vpop.xlane.xlu0 %2536
  %v2538 = vsel %vm60, %v2508, 0.0
  %2539 = vadd.xlane.f32.xlu0 %v2538
  %v2540 = vpop.xlane.xlu0 %2539
  %v2541 = vsel %vm60, %v2509, 0.0
  %2542 = vadd.xlane.f32.xlu0 %v2541
  %v2543 = vpop.xlane.xlu0 %2542
  %v2544 = vsel %vm60, %v2510, 0.0
  %2545 = vadd.xlane.f32.xlu0 %v2544
  %v2546 = vpop.xlane.xlu0 %2545
  %v2547 = vsel %vm60, %v2511, 0.0
  %2548 = vadd.xlane.f32.xlu0 %v2547
  %v2549 = vpop.xlane.xlu0 %2548
  %v2550 = vsel %vm60, %v2512, 0.0
  %2551 = vadd.xlane.f32.xlu0 %v2550
  %v2552 = vpop.xlane.xlu0 %2551
  %v2553 = vsel %vm60, %v2513, 0.0
  %2554 = vadd.xlane.f32.xlu0 %v2553
  %v2555 = vpop.xlane.xlu0 %2554
  %v2556 = vsel %vm60, %v2514, 0.0
  %2557 = vadd.xlane.f32.xlu0 %v2556
  %v2558 = vpop.xlane.xlu0 %2557
  %v2559 = vsel %vm60, %v2515, 0.0
  %2560 = vadd.xlane.f32.xlu0 %v2559
  %v2561 = vpop.xlane.xlu0 %2560
  %v2562 = vsel %vm60, %v2516, 0.0
  %2563 = vadd.xlane.f32.xlu0 %v2562
  %v2564 = vpop.xlane.xlu0 %2563
  %v2565 = vsel %vm60, %v2517, 0.0
  %2566 = vadd.xlane.f32.xlu0 %v2565
  %v2567 = vpop.xlane.xlu0 %2566
  %v2568 = vmul.f32 %v2522, %v109
  %v2569 = vmul.f32 %v2525, %v109
  %v2570 = vmul.f32 %v2528, %v109
  %v2571 = vmul.f32 %v2531, %v109
  %v2572 = vmul.f32 %v2534, %v109
  %v2573 = vmul.f32 %v2537, %v109
  %v2574 = vmul.f32 %v2540, %v109
  %v2575 = vmul.f32 %v2543, %v109
  %v2576 = vmul.f32 %v2546, %v109
  %v2577 = vmul.f32 %v2549, %v109
  %v2578 = vmul.f32 %v2552, %v109
  %v2579 = vmul.f32 %v2555, %v109
  %v2580 = vmul.f32 %v2558, %v109
  %v2581 = vmul.f32 %v2561, %v109
  %v2582 = vmul.f32 %v2564, %v109
  %v2583 = vmul.f32 %v2567, %v109
  %v2584 = vsub.f32 %v2502, %v2568
  %v2585 = vsub.f32 %v2503, %v2569
  %v2586 = vsub.f32 %v2504, %v2570
  %v2587 = vsub.f32 %v2505, %v2571
  %v2588 = vsub.f32 %v2506, %v2572
  %v2589 = vsub.f32 %v2507, %v2573
  %v2590 = vsub.f32 %v2508, %v2574
  %v2591 = vsub.f32 %v2509, %v2575
  %v2592 = vsub.f32 %v2510, %v2576
  %v2593 = vsub.f32 %v2511, %v2577
  %v2594 = vsub.f32 %v2512, %v2578
  %v2595 = vsub.f32 %v2513, %v2579
  %v2596 = vsub.f32 %v2514, %v2580
  %v2597 = vsub.f32 %v2515, %v2581
  %v2598 = vsub.f32 %v2516, %v2582
  %v2599 = vsub.f32 %v2517, %v2583
  %v2600 = vmul.f32 %v2584, %v2584
  %v2601 = vmul.f32 %v2585, %v2585
  %v2602 = vmul.f32 %v2586, %v2586
  %v2603 = vmul.f32 %v2587, %v2587
  %v2604 = vmul.f32 %v2588, %v2588
  %v2605 = vmul.f32 %v2589, %v2589
  %v2606 = vmul.f32 %v2590, %v2590
  %v2607 = vmul.f32 %v2591, %v2591
  %v2608 = vmul.f32 %v2592, %v2592
  %v2609 = vmul.f32 %v2593, %v2593
  %v2610 = vmul.f32 %v2594, %v2594
  %v2611 = vmul.f32 %v2595, %v2595
  %v2612 = vmul.f32 %v2596, %v2596
  %v2613 = vmul.f32 %v2597, %v2597
  %v2614 = vmul.f32 %v2598, %v2598
  %v2615 = vmul.f32 %v2599, %v2599
  %v2616 = vsel %vm60, %v2600, 0.0
  %2617 = vadd.xlane.f32.xlu0 %v2616
  %v2618 = vpop.xlane.xlu0 %2617
  %v2619 = vsel %vm60, %v2601, 0.0
  %2620 = vadd.xlane.f32.xlu0 %v2619
  %v2621 = vpop.xlane.xlu0 %2620
  %v2622 = vsel %vm60, %v2602, 0.0
  %2623 = vadd.xlane.f32.xlu0 %v2622
  %v2624 = vpop.xlane.xlu0 %2623
  %v2625 = vsel %vm60, %v2603, 0.0
  %2626 = vadd.xlane.f32.xlu0 %v2625
  %v2627 = vpop.xlane.xlu0 %2626
  %v2628 = vsel %vm60, %v2604, 0.0
  %2629 = vadd.xlane.f32.xlu0 %v2628
  %v2630 = vpop.xlane.xlu0 %2629
  %v2631 = vsel %vm60, %v2605, 0.0
  %2632 = vadd.xlane.f32.xlu0 %v2631
  %v2633 = vpop.xlane.xlu0 %2632
  %v2634 = vsel %vm60, %v2606, 0.0
  %2635 = vadd.xlane.f32.xlu0 %v2634
  %v2636 = vpop.xlane.xlu0 %2635
  %v2637 = vsel %vm60, %v2607, 0.0
  %2638 = vadd.xlane.f32.xlu0 %v2637
  %v2639 = vpop.xlane.xlu0 %2638
  %v2640 = vsel %vm60, %v2608, 0.0
  %2641 = vadd.xlane.f32.xlu0 %v2640
  %v2642 = vpop.xlane.xlu0 %2641
  %v2643 = vsel %vm60, %v2609, 0.0
  %2644 = vadd.xlane.f32.xlu0 %v2643
  %v2645 = vpop.xlane.xlu0 %2644
  %v2646 = vsel %vm60, %v2610, 0.0
  %2647 = vadd.xlane.f32.xlu0 %v2646
  %v2648 = vpop.xlane.xlu0 %2647
  %v2649 = vsel %vm60, %v2611, 0.0
  %2650 = vadd.xlane.f32.xlu0 %v2649
  %v2651 = vpop.xlane.xlu0 %2650
  %v2652 = vsel %vm60, %v2612, 0.0
  %2653 = vadd.xlane.f32.xlu0 %v2652
  %v2654 = vpop.xlane.xlu0 %2653
  %v2655 = vsel %vm60, %v2613, 0.0
  %2656 = vadd.xlane.f32.xlu0 %v2655
  %v2657 = vpop.xlane.xlu0 %2656
  %v2658 = vsel %vm60, %v2614, 0.0
  %2659 = vadd.xlane.f32.xlu0 %v2658
  %v2660 = vpop.xlane.xlu0 %2659
  %v2661 = vsel %vm60, %v2615, 0.0
  %2662 = vadd.xlane.f32.xlu0 %v2661
  %v2663 = vpop.xlane.xlu0 %2662
  %v2664 = vmul.f32 %v2618, %v109
  %v2665 = vmul.f32 %v2621, %v109
  %v2666 = vmul.f32 %v2624, %v109
  %v2667 = vmul.f32 %v2627, %v109
  %v2668 = vmul.f32 %v2630, %v109
  %v2669 = vmul.f32 %v2633, %v109
  %v2670 = vmul.f32 %v2636, %v109
  %v2671 = vmul.f32 %v2639, %v109
  %v2672 = vmul.f32 %v2642, %v109
  %v2673 = vmul.f32 %v2645, %v109
  %v2674 = vmul.f32 %v2648, %v109
  %v2675 = vmul.f32 %v2651, %v109
  %v2676 = vmul.f32 %v2654, %v109
  %v2677 = vmul.f32 %v2657, %v109
  %v2678 = vmul.f32 %v2660, %v109
  %v2679 = vmul.f32 %v2663, %v109
  %v2680 = vadd.f32 %v2664, 1e-05
  %v2681 = vadd.f32 %v2665, 1e-05
  %v2682 = vadd.f32 %v2666, 1e-05
  %v2683 = vadd.f32 %v2667, 1e-05
  %v2684 = vadd.f32 %v2668, 1e-05
  %v2685 = vadd.f32 %v2669, 1e-05
  %v2686 = vadd.f32 %v2670, 1e-05
  %v2687 = vadd.f32 %v2671, 1e-05
  %v2688 = vadd.f32 %v2672, 1e-05
  %v2689 = vadd.f32 %v2673, 1e-05
  %v2690 = vadd.f32 %v2674, 1e-05
  %v2691 = vadd.f32 %v2675, 1e-05
  %v2692 = vadd.f32 %v2676, 1e-05
  %v2693 = vadd.f32 %v2677, 1e-05
  %v2694 = vadd.f32 %v2678, 1e-05
  %v2695 = vadd.f32 %v2679, 1e-05
  %v2696 = vrsqrt.pop %v2680
  %v2697 = vrsqrt.pop %v2681
  %v2698 = vrsqrt.pop %v2682
  %v2699 = vrsqrt.pop %v2683
  %v2700 = vrsqrt.pop %v2684
  %v2701 = vrsqrt.pop %v2685
  %v2702 = vrsqrt.pop %v2686
  %v2703 = vrsqrt.pop %v2687
  %v2704 = vrsqrt.pop %v2688
  %v2705 = vrsqrt.pop %v2689
  %v2706 = vrsqrt.pop %v2690
  %v2707 = vrsqrt.pop %v2691
  %v2708 = vrsqrt.pop %v2692
  %v2709 = vrsqrt.pop %v2693
  %v2710 = vrsqrt.pop %v2694
  %v2711 = vrsqrt.pop %v2695
  %v2712 = vmul.f32 %v2584, %v2696
  %v2713 = vmul.f32 %v2585, %v2697
  %v2714 = vmul.f32 %v2586, %v2698
  %v2715 = vmul.f32 %v2587, %v2699
  %v2716 = vmul.f32 %v2588, %v2700
  %v2717 = vmul.f32 %v2589, %v2701
  %v2718 = vmul.f32 %v2590, %v2702
  %v2719 = vmul.f32 %v2591, %v2703
  %v2720 = vmul.f32 %v2592, %v2704
  %v2721 = vmul.f32 %v2593, %v2705
  %v2722 = vmul.f32 %v2594, %v2706
  %v2723 = vmul.f32 %v2595, %v2707
  %v2724 = vmul.f32 %v2596, %v2708
  %v2725 = vmul.f32 %v2597, %v2709
  %v2726 = vmul.f32 %v2598, %v2710
  %v2727 = vmul.f32 %v2599, %v2711
  %v2729 = vlaneseq
  %v2730 = vshrl.u32 %v2729, 7
  %v2731 = vsub.s32 0, %v2730
  %v2732 = vrot.slane %v2518, %v2731
  %v2734 = vmul.f32 %v2712, %v2732
  %v2735 = vmul.f32 %v2713, %v2732
  %v2736 = vmul.f32 %v2714, %v2732
  %v2737 = vmul.f32 %v2715, %v2732
  %v2738 = vmul.f32 %v2716, %v2732
  %v2739 = vmul.f32 %v2717, %v2732
  %v2740 = vmul.f32 %v2718, %v2732
  %v2741 = vmul.f32 %v2719, %v2732
  %v2742 = vmul.f32 %v2720, %v2732
  %v2743 = vmul.f32 %v2721, %v2732
  %v2744 = vmul.f32 %v2722, %v2732
  %v2745 = vmul.f32 %v2723, %v2732
  %v2746 = vmul.f32 %v2724, %v2732
  %v2747 = vmul.f32 %v2725, %v2732
  %v2748 = vmul.f32 %v2726, %v2732
  %v2749 = vmul.f32 %v2727, %v2732
  %v2751 = vlaneseq
  %v2752 = vshrl.u32 %v2751, 7
  %v2753 = vsub.s32 0, %v2752
  %v2754 = vrot.slane %v2519, %v2753
  %v2756 = vadd.f32 %v2734, %v2754
  %v2757 = vadd.f32 %v2735, %v2754
  %v2758 = vadd.f32 %v2736, %v2754
  %v2759 = vadd.f32 %v2737, %v2754
  %v2760 = vadd.f32 %v2738, %v2754
  %v2761 = vadd.f32 %v2739, %v2754
  %v2762 = vadd.f32 %v2740, %v2754
  %v2763 = vadd.f32 %v2741, %v2754
  %v2764 = vadd.f32 %v2742, %v2754
  %v2765 = vadd.f32 %v2743, %v2754
  %v2766 = vadd.f32 %v2744, %v2754
  %v2767 = vadd.f32 %v2745, %v2754
  %v2768 = vadd.f32 %v2746, %v2754
  %v2769 = vadd.f32 %v2747, %v2754
  %v2770 = vadd.f32 %v2748, %v2754
  %v2771 = vadd.f32 %v2749, %v2754
  %v2772 = vpack.c.bf16 %v2757, %v2756
  %v2773 = vpack.c.bf16 %v2759, %v2758
  %v2774 = vpack.c.bf16 %v2761, %v2760
  %v2775 = vpack.c.bf16 %v2763, %v2762
  %v2776 = vpack.c.bf16 %v2765, %v2764
  %v2777 = vpack.c.bf16 %v2767, %v2766
  %v2778 = vpack.c.bf16 %v2769, %v2768
  %v2779 = vpack.c.bf16 %v2771, %v2770
  %v2780 = vld [vmem:[%s8] sm:$0xff]
  %v2781 = vld [vmem:[%s8 + $0x8] sm:$0xff]
  %v2782 = vld [vmem:[%s8 + $0x10] sm:$0xff]
  %v2783 = vld [vmem:[%s8 + $0x18] sm:$0xff]
  %v2784 = vld [vmem:[%s8 + $0x20] sm:$0xff]
  %v2785 = vld [vmem:[%s8 + $0x28] sm:$0xff]
  %v2786 = vld [vmem:[%s8 + $0x30] sm:$0xff]
  %v2787 = vld [vmem:[%s8 + $0x38] sm:$0xff]
  %v2788 = vld [vmem:[%s9] sm:$0x3]
  %v2790 = vlaneseq
  %v2791 = vshrl.u32 %v2790, 7
  %v2792 = vsub.s32 0, %v2791
  %v2793 = vrot.slane %v2788, %v2792
  %v2794 = vlaneseq
  %v2795 = vshrl.u32 %v2794, 7
  %v2796 = vsub.s32 1, %v2795
  %v2797 = vrot.slane %v2788, %v2796
  %v2808 = vunpack.c.l.b16 %v2780
  %v2809 = vunpack.c.h.b16 %v2780
  %v2810 = vunpack.c.l.b16 %v2781
  %v2811 = vunpack.c.h.b16 %v2781
  %v2812 = vunpack.c.l.b16 %v2782
  %v2813 = vunpack.c.h.b16 %v2782
  %v2814 = vunpack.c.l.b16 %v2783
  %v2815 = vunpack.c.h.b16 %v2783
  %v2816 = vunpack.c.l.b16 %v2784
  %v2817 = vunpack.c.h.b16 %v2784
  %v2818 = vunpack.c.l.b16 %v2785
  %v2819 = vunpack.c.h.b16 %v2785
  %v2820 = vunpack.c.l.b16 %v2786
  %v2821 = vunpack.c.h.b16 %v2786
  %v2822 = vunpack.c.l.b16 %v2787
  %v2823 = vunpack.c.h.b16 %v2787
  %v2824 = vpack.c.b16 %v2810, %v2808
  %v2825 = vpack.c.b16 %v2811, %v2809
  %v2826 = vpack.c.b16 %v2814, %v2812
  %v2827 = vpack.c.b16 %v2815, %v2813
  %v2828 = vpack.c.b16 %v2818, %v2816
  %v2829 = vpack.c.b16 %v2819, %v2817
  %v2830 = vpack.c.b16 %v2822, %v2820
  %v2831 = vpack.c.b16 %v2823, %v2821
  %v2841 = vsel %vm60, %v2772, 0
  %v2844 = vsel %vm60, %v2773, 0
  %v2847 = vsel %vm60, %v2774, 0
  %v2850 = vsel %vm60, %v2775, 0
  %v2853 = vsel %vm60, %v2776, 0
  %v2856 = vsel %vm60, %v2777, 0
  %v2859 = vsel %vm60, %v2778, 0
  %v2862 = vsel %vm60, %v2779, 0
  %2864 = vmatprep.subr.bf16.mxu0 %v2825
  %2865 = vmatpush1.bf16.msra.mxu0 %v2824
  %2866 = vmatprep.subr.bf16.mxu0 %v2827
  %2867 = vmatpush1.bf16.msra.mxu0 %v2826
  %2868 = vmatprep.subr.bf16.mxu0 %v2829
  %2869 = vmatpush1.bf16.msra.mxu0 %v2828
  %2870 = vmatprep.subr.bf16.mxu0 %v2831
  %2871 = vmatpush1.bf16.msra.mxu0 %v2830
  %2872 = vmatprep.subr.bf16.mxu0 0
  %2873 = vmatpush1.bf16.msra.mxu0 0
  %2874 = vmatprep.subr.bf16.mxu0 0
  %2875 = vmatpush1.bf16.msra.mxu0 0
  %2876 = vmatprep.subr.bf16.mxu0 0
  %2877 = vmatpush1.bf16.msra.mxu0 0
  %2878 = vmatprep.subr.bf16.mxu0 0
  %2879 = vmatpush1.bf16.msra.mxu0 0
  %2880 = vmatprep.subr.bf16.mxu0 0
  %2881 = vmatpush1.bf16.msra.mxu0 0
  %2882 = vmatprep.subr.bf16.mxu0 0
  %2883 = vmatpush1.bf16.msra.mxu0 0
  %2884 = vmatprep.subr.bf16.mxu0 0
  %2885 = vmatpush1.bf16.msra.mxu0 0
  %2886 = vmatprep.subr.bf16.mxu0 0
  %2887 = vmatpush1.bf16.msra.mxu0 0
  %2888 = vmatprep.subr.bf16.mxu0 0
  %2889 = vmatpush1.bf16.msra.mxu0 0
  %2890 = vmatprep.subr.bf16.mxu0 0
  %2891 = vmatpush1.bf16.msra.mxu0 0
  %2892 = vmatprep.subr.bf16.mxu0 0
  %2893 = vmatpush1.bf16.msra.mxu0 0
  %2894 = vmatprep.subr.bf16.mxu0 0
  %2895 = vmatpush1.bf16.msra.mxu0 0
  %2896 = vmatprep.mubr.bf16.mxu0 0
  %2897 = vmatmul.mubr.bf16.gmra.mrb[0].mxu0 %v2841
  %v2898 = vpop.f32.mrb[0].mxu0
  %v2899 = vadd.f32 %v2793, %v2898
  %v2900 = vpop.f32.mrb[0].mxu0
  %v2901 = vadd.f32 %v2797, %v2900
  %v2902 = vpop.f32.mrb[0].mxu0
  %v2903 = vadd.f32 %v2793, %v2902
  %v2904 = vpop.f32.mrb[0].mxu0
  %v2905 = vadd.f32 %v2797, %v2904
  %2906 = vmatprep.mubr.bf16.mxu0 0
  %2907 = vmatmul.mubr.bf16.gmra.mrb[0].mxu0 %v2844
  %v2908 = vpop.f32.mrb[0].mxu0
  %v2909 = vadd.f32 %v2793, %v2908
  %v2910 = vpop.f32.mrb[0].mxu0
  %v2911 = vadd.f32 %v2797, %v2910
  %v2912 = vpop.f32.mrb[0].mxu0
  %v2913 = vadd.f32 %v2793, %v2912
  %v2914 = vpop.f32.mrb[0].mxu0
  %v2915 = vadd.f32 %v2797, %v2914
  %2916 = vmatprep.mubr.bf16.mxu0 0
  %2917 = vmatmul.mubr.bf16.gmra.mrb[0].mxu0 %v2847
  %v2918 = vpop.f32.mrb[0].mxu0
  %v2919 = vadd.f32 %v2793, %v2918
  %v2920 = vpop.f32.mrb[0].mxu0
  %v2921 = vadd.f32 %v2797, %v2920
  %v2922 = vpop.f32.mrb[0].mxu0
  %v2923 = vadd.f32 %v2793, %v2922
  %v2924 = vpop.f32.mrb[0].mxu0
  %v2925 = vadd.f32 %v2797, %v2924
  %2926 = vmatprep.mubr.bf16.mxu0 0
  %2927 = vmatmul.mubr.bf16.gmra.mrb[0].mxu0 %v2850
  %v2928 = vpop.f32.mrb[0].mxu0
  %v2929 = vadd.f32 %v2793, %v2928
  %v2930 = vpop.f32.mrb[0].mxu0
  %v2931 = vadd.f32 %v2797, %v2930
  %v2932 = vpop.f32.mrb[0].mxu0
  %v2933 = vadd.f32 %v2793, %v2932
  %v2934 = vpop.f32.mrb[0].mxu0
  %v2935 = vadd.f32 %v2797, %v2934
  %2936 = vmatprep.mubr.bf16.mxu0 0
  %2937 = vmatmul.mubr.bf16.gmra.mrb[0].mxu0 %v2853
  %v2938 = vpop.f32.mrb[0].mxu0
  %v2939 = vadd.f32 %v2793, %v2938
  %v2940 = vpop.f32.mrb[0].mxu0
  %v2941 = vadd.f32 %v2797, %v2940
  %v2942 = vpop.f32.mrb[0].mxu0
  %v2943 = vadd.f32 %v2793, %v2942
  %v2944 = vpop.f32.mrb[0].mxu0
  %v2945 = vadd.f32 %v2797, %v2944
  %2946 = vmatprep.mubr.bf16.mxu0 0
  %2947 = vmatmul.mubr.bf16.gmra.mrb[0].mxu0 %v2856
  %v2948 = vpop.f32.mrb[0].mxu0
  %v2949 = vadd.f32 %v2793, %v2948
  %v2950 = vpop.f32.mrb[0].mxu0
  %v2951 = vadd.f32 %v2797, %v2950
  %v2952 = vpop.f32.mrb[0].mxu0
  %v2953 = vadd.f32 %v2793, %v2952
  %v2954 = vpop.f32.mrb[0].mxu0
  %v2955 = vadd.f32 %v2797, %v2954
  %2956 = vmatprep.mubr.bf16.mxu0 0
  %2957 = vmatmul.mubr.bf16.gmra.mrb[0].mxu0 %v2859
  %v2958 = vpop.f32.mrb[0].mxu0
  %v2959 = vadd.f32 %v2793, %v2958
  %v2960 = vpop.f32.mrb[0].mxu0
  %v2961 = vadd.f32 %v2797, %v2960
  %v2962 = vpop.f32.mrb[0].mxu0
  %v2963 = vadd.f32 %v2793, %v2962
  %v2964 = vpop.f32.mrb[0].mxu0
  %v2965 = vadd.f32 %v2797, %v2964
  %2966 = vmatprep.mubr.bf16.mxu0 0
  %2967 = vmatmul.mubr.bf16.gmra.mrb[0].mxu0 %v2862
  %v2968 = vpop.f32.mrb[0].mxu0
  %v2969 = vadd.f32 %v2793, %v2968
  %v2970 = vpop.f32.mrb[0].mxu0
  %v2971 = vadd.f32 %v2797, %v2970
  %v2972 = vpop.f32.mrb[0].mxu0
  %v2973 = vadd.f32 %v2793, %v2972
  %v2974 = vpop.f32.mrb[0].mxu0
  %v2975 = vadd.f32 %v2797, %v2974
  %2976 = vdwg.mxu0
  %v2977 = vmax.f32 %v2899, 0.0
  %v2978 = vmax.f32 %v2901, 0.0
  %v2979 = vmax.f32 %v2903, 0.0
  %v2980 = vmax.f32 %v2905, 0.0
  %v2981 = vmax.f32 %v2909, 0.0
  %v2982 = vmax.f32 %v2911, 0.0
  %v2983 = vmax.f32 %v2913, 0.0
  %v2984 = vmax.f32 %v2915, 0.0
  %v2985 = vmax.f32 %v2919, 0.0
  %v2986 = vmax.f32 %v2921, 0.0
  %v2987 = vmax.f32 %v2923, 0.0
  %v2988 = vmax.f32 %v2925, 0.0
  %v2989 = vmax.f32 %v2929, 0.0
  %v2990 = vmax.f32 %v2931, 0.0
  %v2991 = vmax.f32 %v2933, 0.0
  %v2992 = vmax.f32 %v2935, 0.0
  %v2993 = vmax.f32 %v2939, 0.0
  %v2994 = vmax.f32 %v2941, 0.0
  %v2995 = vmax.f32 %v2943, 0.0
  %v2996 = vmax.f32 %v2945, 0.0
  %v2997 = vmax.f32 %v2949, 0.0
  %v2998 = vmax.f32 %v2951, 0.0
  %v2999 = vmax.f32 %v2953, 0.0
  %v3000 = vmax.f32 %v2955, 0.0
  %v3001 = vmax.f32 %v2959, 0.0
  %v3002 = vmax.f32 %v2961, 0.0
  %v3003 = vmax.f32 %v2963, 0.0
  %v3004 = vmax.f32 %v2965, 0.0
  %v3005 = vmax.f32 %v2969, 0.0
  %v3006 = vmax.f32 %v2971, 0.0
  %v3007 = vmax.f32 %v2973, 0.0
  %v3008 = vmax.f32 %v2975, 0.0
  %v3009 = vpack.c.bf16 %v2979, %v2977
  %v3010 = vpack.c.bf16 %v2980, %v2978
  %v3011 = vpack.c.bf16 %v2983, %v2981
  %v3012 = vpack.c.bf16 %v2984, %v2982
  %v3013 = vpack.c.bf16 %v2987, %v2985
  %v3014 = vpack.c.bf16 %v2988, %v2986
  %v3015 = vpack.c.bf16 %v2991, %v2989
  %v3016 = vpack.c.bf16 %v2992, %v2990
  %v3017 = vpack.c.bf16 %v2995, %v2993
  %v3018 = vpack.c.bf16 %v2996, %v2994
  %v3019 = vpack.c.bf16 %v2999, %v2997
  %v3020 = vpack.c.bf16 %v3000, %v2998
  %v3021 = vpack.c.bf16 %v3003, %v3001
  %v3022 = vpack.c.bf16 %v3004, %v3002
  %v3023 = vpack.c.bf16 %v3007, %v3005
  %v3024 = vpack.c.bf16 %v3008, %v3006
  %v3025 = vld [vmem:[%s10] sm:$0xf]
  %v3026 = vld [vmem:[%s10 + $0x4] sm:$0xf]
  %v3027 = vld [vmem:[%s10 + $0x8] sm:$0xf]
  %v3028 = vld [vmem:[%s10 + $0xc] sm:$0xf]
  %v3029 = vld [vmem:[%s10 + $0x10] sm:$0xf]
  %v3030 = vld [vmem:[%s10 + $0x14] sm:$0xf]
  %v3031 = vld [vmem:[%s10 + $0x18] sm:$0xf]
  %v3032 = vld [vmem:[%s10 + $0x1c] sm:$0xf]
  %v3033 = vld [vmem:[%s10 + $0x20] sm:$0xf]
  %v3034 = vld [vmem:[%s10 + $0x24] sm:$0xf]
  %v3035 = vld [vmem:[%s10 + $0x28] sm:$0xf]
  %v3036 = vld [vmem:[%s10 + $0x2c] sm:$0xf]
  %v3037 = vld [vmem:[%s10 + $0x30] sm:$0xf]
  %v3038 = vld [vmem:[%s10 + $0x34] sm:$0xf]
  %v3039 = vld [vmem:[%s10 + $0x38] sm:$0xf]
  %v3040 = vld [vmem:[%s10 + $0x3c] sm:$0xf]
  %v3041 = vld [vmem:[%s10 + $0x40] sm:$0xf]
  %v3042 = vld [vmem:[%s10 + $0x44] sm:$0xf]
  %v3043 = vld [vmem:[%s10 + $0x48] sm:$0xf]
  %v3044 = vld [vmem:[%s10 + $0x4c] sm:$0xf]
  %v3045 = vld [vmem:[%s10 + $0x50] sm:$0xf]
  %v3046 = vld [vmem:[%s10 + $0x54] sm:$0xf]
  %v3047 = vld [vmem:[%s10 + $0x58] sm:$0xf]
  %v3048 = vld [vmem:[%s10 + $0x5c] sm:$0xf]
  %v3049 = vld [vmem:[%s10 + $0x60] sm:$0xf]
  %v3050 = vld [vmem:[%s10 + $0x64] sm:$0xf]
  %v3051 = vld [vmem:[%s10 + $0x68] sm:$0xf]
  %v3052 = vld [vmem:[%s10 + $0x6c] sm:$0xf]
  %v3053 = vld [vmem:[%s10 + $0x70] sm:$0xf]
  %v3054 = vld [vmem:[%s10 + $0x74] sm:$0xf]
  %v3055 = vld [vmem:[%s10 + $0x78] sm:$0xf]
  %v3056 = vld [vmem:[%s10 + $0x7c] sm:$0xf]
  %v3057 = vld [vmem:[%s11] sm:$0x1]
  %v3059 = vlaneseq
  %v3060 = vshrl.u32 %v3059, 7
  %v3061 = vsub.s32 0, %v3060
  %v3062 = vrot.slane %v3057, %v3061
  %v3096 = vunpack.c.l.b16 %v3025
  %v3097 = vunpack.c.l.b16 %v3026
  %v3098 = vunpack.c.l.b16 %v3027
  %v3099 = vunpack.c.l.b16 %v3028
  %v3100 = vunpack.c.l.b16 %v3029
  %v3101 = vunpack.c.l.b16 %v3030
  %v3102 = vunpack.c.l.b16 %v3031
  %v3103 = vunpack.c.l.b16 %v3032
  %v3104 = vunpack.c.l.b16 %v3033
  %v3105 = vunpack.c.l.b16 %v3034
  %v3106 = vunpack.c.l.b16 %v3035
  %v3107 = vunpack.c.l.b16 %v3036
  %v3108 = vunpack.c.l.b16 %v3037
  %v3109 = vunpack.c.l.b16 %v3038
  %v3110 = vunpack.c.l.b16 %v3039
  %v3111 = vunpack.c.l.b16 %v3040
  %v3112 = vunpack.c.l.b16 %v3041
  %v3113 = vunpack.c.l.b16 %v3042
  %v3114 = vunpack.c.l.b16 %v3043
  %v3115 = vunpack.c.l.b16 %v3044
  %v3116 = vunpack.c.l.b16 %v3045
  %v3117 = vunpack.c.l.b16 %v3046
  %v3118 = vunpack.c.l.b16 %v3047
  %v3119 = vunpack.c.l.b16 %v3048
  %v3120 = vunpack.c.l.b16 %v3049
  %v3121 = vunpack.c.l.b16 %v3050
  %v3122 = vunpack.c.l.b16 %v3051
  %v3123 = vunpack.c.l.b16 %v3052
  %v3124 = vunpack.c.l.b16 %v3053
  %v3125 = vunpack.c.l.b16 %v3054
  %v3126 = vunpack.c.l.b16 %v3055
  %v3127 = vunpack.c.l.b16 %v3056
  %v3128 = vpack.c.b16 %v3097, %v3096
  %v3129 = vpack.c.b16 %v3099, %v3098
  %v3130 = vpack.c.b16 %v3101, %v3100
  %v3131 = vpack.c.b16 %v3103, %v3102
  %v3132 = vpack.c.b16 %v3105, %v3104
  %v3133 = vpack.c.b16 %v3107, %v3106
  %v3134 = vpack.c.b16 %v3109, %v3108
  %v3135 = vpack.c.b16 %v3111, %v3110
  %v3136 = vpack.c.b16 %v3113, %v3112
  %v3137 = vpack.c.b16 %v3115, %v3114
  %v3138 = vpack.c.b16 %v3117, %v3116
  %v3139 = vpack.c.b16 %v3119, %v3118
  %v3140 = vpack.c.b16 %v3121, %v3120
  %v3141 = vpack.c.b16 %v3123, %v3122
  %v3142 = vpack.c.b16 %v3125, %v3124
  %v3143 = vpack.c.b16 %v3127, %v3126
  %3160 = vmatprep.subr.bf16.mxu0 0
  %3161 = vmatpush1.bf16.msra.mxu0 %v3128
  %3162 = vmatprep.subr.bf16.mxu0 0
  %3163 = vmatpush1.bf16.msra.mxu0 %v3129
  %3164 = vmatprep.subr.bf16.mxu0 0
  %3165 = vmatpush1.bf16.msra.mxu0 %v3130
  %3166 = vmatprep.subr.bf16.mxu0 0
  %3167 = vmatpush1.bf16.msra.mxu0 %v3131
  %3168 = vmatprep.subr.bf16.mxu0 0
  %3169 = vmatpush1.bf16.msra.mxu0 %v3132
  %3170 = vmatprep.subr.bf16.mxu0 0
  %3171 = vmatpush1.bf16.msra.mxu0 %v3133
  %3172 = vmatprep.subr.bf16.mxu0 0
  %3173 = vmatpush1.bf16.msra.mxu0 %v3134
  %3174 = vmatprep.subr.bf16.mxu0 0
  %3175 = vmatpush1.bf16.msra.mxu0 %v3135
  %3176 = vmatprep.subr.bf16.mxu0 0
  %3177 = vmatpush1.bf16.msra.mxu0 %v3136
  %3178 = vmatprep.subr.bf16.mxu0 0
  %3179 = vmatpush1.bf16.msra.mxu0 %v3137
  %3180 = vmatprep.subr.bf16.mxu0 0
  %3181 = vmatpush1.bf16.msra.mxu0 %v3138
  %3182 = vmatprep.subr.bf16.mxu0 0
  %3183 = vmatpush1.bf16.msra.mxu0 %v3139
  %3184 = vmatprep.subr.bf16.mxu0 0
  %3185 = vmatpush1.bf16.msra.mxu0 %v3140
  %3186 = vmatprep.subr.bf16.mxu0 0
  %3187 = vmatpush1.bf16.msra.mxu0 %v3141
  %3188 = vmatprep.subr.bf16.mxu0 0
  %3189 = vmatpush1.bf16.msra.mxu0 %v3142
  %3190 = vmatprep.subr.bf16.mxu0 0
  %3191 = vmatpush1.bf16.msra.mxu0 %v3143
  %3192 = vmatprep.mubr.bf16.mxu0 %v3010
  %3193 = vmatmul.mubr.bf16.gmra.mrb[0].mxu0 %v3009
  %v3194 = vpop.f32.mrb[0].mxu0
  %v3195 = vadd.f32 %v3062, %v3194
  %v3196 = vpop.f32.mrb[0].mxu0
  %v3197 = vpop.f32.mrb[0].mxu0
  %v3198 = vadd.f32 %v3062, %v3197
  %v3199 = vpop.f32.mrb[0].mxu0
  %3200 = vmatprep.mubr.bf16.mxu0 %v3012
  %3201 = vmatmul.mubr.bf16.gmra.mrb[0].mxu0 %v3011
  %v3202 = vpop.f32.mrb[0].mxu0
  %v3203 = vadd.f32 %v3062, %v3202
  %v3204 = vpop.f32.mrb[0].mxu0
  %v3205 = vpop.f32.mrb[0].mxu0
  %v3206 = vadd.f32 %v3062, %v3205
  %v3207 = vpop.f32.mrb[0].mxu0
  %3208 = vmatprep.mubr.bf16.mxu0 %v3014
  %3209 = vmatmul.mubr.bf16.gmra.mrb[0].mxu0 %v3013
  %v3210 = vpop.f32.mrb[0].mxu0
  %v3211 = vadd.f32 %v3062, %v3210
  %v3212 = vpop.f32.mrb[0].mxu0
  %v3213 = vpop.f32.mrb[0].mxu0
  %v3214 = vadd.f32 %v3062, %v3213
  %v3215 = vpop.f32.mrb[0].mxu0
  %3216 = vmatprep.mubr.bf16.mxu0 %v3016
  %3217 = vmatmul.mubr.bf16.gmra.mrb[0].mxu0 %v3015
  %v3218 = vpop.f32.mrb[0].mxu0
  %v3219 = vadd.f32 %v3062, %v3218
  %v3220 = vpop.f32.mrb[0].mxu0
  %v3221 = vpop.f32.mrb[0].mxu0
  %v3222 = vadd.f32 %v3062, %v3221
  %v3223 = vpop.f32.mrb[0].mxu0
  %3224 = vmatprep.mubr.bf16.mxu0 %v3018
  %3225 = vmatmul.mubr.bf16.gmra.mrb[0].mxu0 %v3017
  %v3226 = vpop.f32.mrb[0].mxu0
  %v3227 = vadd.f32 %v3062, %v3226
  %v3228 = vpop.f32.mrb[0].mxu0
  %v3229 = vpop.f32.mrb[0].mxu0
  %v3230 = vadd.f32 %v3062, %v3229
  %v3231 = vpop.f32.mrb[0].mxu0
  %3232 = vmatprep.mubr.bf16.mxu0 %v3020
  %3233 = vmatmul.mubr.bf16.gmra.mrb[0].mxu0 %v3019
  %v3234 = vpop.f32.mrb[0].mxu0
  %v3235 = vadd.f32 %v3062, %v3234
  %v3236 = vpop.f32.mrb[0].mxu0
  %v3237 = vpop.f32.mrb[0].mxu0
  %v3238 = vadd.f32 %v3062, %v3237
  %v3239 = vpop.f32.mrb[0].mxu0
  %3240 = vmatprep.mubr.bf16.mxu0 %v3022
  %3241 = vmatmul.mubr.bf16.gmra.mrb[0].mxu0 %v3021
  %v3242 = vpop.f32.mrb[0].mxu0
  %v3243 = vadd.f32 %v3062, %v3242
  %v3244 = vpop.f32.mrb[0].mxu0
  %v3245 = vpop.f32.mrb[0].mxu0
  %v3246 = vadd.f32 %v3062, %v3245
  %v3247 = vpop.f32.mrb[0].mxu0
  %3248 = vmatprep.mubr.bf16.mxu0 %v3024
  %3249 = vmatmul.mubr.bf16.gmra.mrb[0].mxu0 %v3023
  %v3250 = vpop.f32.mrb[0].mxu0
  %v3251 = vadd.f32 %v3062, %v3250
  %v3252 = vpop.f32.mrb[0].mxu0
  %v3253 = vpop.f32.mrb[0].mxu0
  %v3254 = vadd.f32 %v3062, %v3253
  %v3255 = vpop.f32.mrb[0].mxu0
  %3256 = vdwg.mxu0
  %v3257 = vadd.f32 %v2502, %v3195
  %v3258 = vadd.f32 %v2503, %v3198
  %v3259 = vadd.f32 %v2504, %v3203
  %v3260 = vadd.f32 %v2505, %v3206
  %v3261 = vadd.f32 %v2506, %v3211
  %v3262 = vadd.f32 %v2507, %v3214
  %v3263 = vadd.f32 %v2508, %v3219
  %v3264 = vadd.f32 %v2509, %v3222
  %v3265 = vadd.f32 %v2510, %v3227
  %v3266 = vadd.f32 %v2511, %v3230
  %v3267 = vadd.f32 %v2512, %v3235
  %v3268 = vadd.f32 %v2513, %v3238
  %v3269 = vadd.f32 %v2514, %v3243
  %v3270 = vadd.f32 %v2515, %v3246
  %v3271 = vadd.f32 %v2516, %v3251
  %v3272 = vadd.f32 %v2517, %v3254
  %3273 = vst.msk [vmem:[%s12] sm:$0xff] %vm60, %v3257
  %3274 = vst.msk [vmem:[%s12 + $0x8] sm:$0xff] %vm60, %v3258
  %3275 = vst.msk [vmem:[%s12 + $0x10] sm:$0xff] %vm60, %v3259
  %3276 = vst.msk [vmem:[%s12 + $0x18] sm:$0xff] %vm60, %v3260
  %3277 = vst.msk [vmem:[%s12 + $0x20] sm:$0xff] %vm60, %v3261
  %3278 = vst.msk [vmem:[%s12 + $0x28] sm:$0xff] %vm60, %v3262
  %3279 = vst.msk [vmem:[%s12 + $0x30] sm:$0xff] %vm60, %v3263
  %3280 = vst.msk [vmem:[%s12 + $0x38] sm:$0xff] %vm60, %v3264
  %3281 = vst.msk [vmem:[%s12 + $0x40] sm:$0xff] %vm60, %v3265
  %3282 = vst.msk [vmem:[%s12 + $0x48] sm:$0xff] %vm60, %v3266
  %3283 = vst.msk [vmem:[%s12 + $0x50] sm:$0xff] %vm60, %v3267
  %3284 = vst.msk [vmem:[%s12 + $0x58] sm:$0xff] %vm60, %v3268
  %3285 = vst.msk [vmem:[%s12 + $0x60] sm:$0xff] %vm60, %v3269
  %3286 = vst.msk [vmem:[%s12 + $0x68] sm:$0xff] %vm60, %v3270
  %3287 = vst.msk [vmem:[%s12 + $0x70] sm:$0xff] %vm60, %v3271
  %3288 = vst.msk [vmem:[%s12 + $0x78] sm:$0xff] %vm60, %v3272
  // Predicated region
  $region50: #{tpu_custom_call.1} parent=0 // pred_check
    _
  $region51: #{tpu_custom_call.1} parent=0 // pred_check_branch
    %3290 = sbr.rel (0) target = $region53
  $region52: #{tpu_custom_call.1} parent=0 // pred_region
    _
  $region53: #{tpu_custom_call.1} parent=0 // pred_fallthru
    _
  // Predicated region
  $region54: #{tpu_custom_call.1} parent=0 // pred_check
    _
  $region55: #{tpu_custom_call.1} parent=0 // pred_check_branch
    %3292 = sbr.rel (0) target = $region57
  $region56: #{tpu_custom_call.1} parent=0 // pred_region
    _
  $region57: #{tpu_custom_call.1} parent=0 // pred_fallthru
    _

</llo_original>
